<compile_context>
chip_gen: v7x
topology: tpu7x:2x2x1
jax: 0.10.0
libtpu: 0.0.40
codegen_flags: <defaults>
</compile_context>

<pallas_src>
import functools

import jax
import jax.numpy as jnp
from jax.experimental import pallas as pl
from jax.experimental.pallas import tpu as pltpu


# ----------------------------------------------------------------------------- kernel
def bigru_kernel(x_ref, wih_ref, bih_ref, whh_f_ref, whh_b_ref,
                 bhh_f_ref, bhh_b_ref, out_ref, hcat_ref, gx_ref):
    """Whole bidirectional GRU in one kernel.

    x_ref     : [T*B, D]      time-major flattened input
    wih_ref   : [D, 6*GP]     input weights, 128-wide gate slots [r_f z_f n_f | r_b z_b n_b]
    bih_ref   : [1, 6*GP]     input biases (same slot layout)
    whh_f_ref : [GP, 3*GP]    forward recurrent weights (rows/cols zero-padded to GP)
    whh_b_ref : [GP, 3*GP]    backward recurrent weights
    bhh_f_ref : [1, 3*GP]     forward recurrent biases
    bhh_b_ref : [1, 3*GP]     backward recurrent biases
    out_ref   : [B, T*2H]     lane-dense combined output (reshaped to [B,T,2H] outside)
    hcat_ref  : [B, 2H]       final hidden (fwd || bwd)
    gx_ref    : [T, B, 6*GP]  VMEM scratch: pre-paired input-gate pre-activations
                              (fwd slot holds x[t], bwd slot holds x[T-1-t])
    """
    T, B, _ = gx_ref.shape
    H2 = hcat_ref.shape[-1]
    H = H2 // 2
    GP3 = bhh_f_ref.shape[-1]      # 3 gate slots, each GP lanes wide
    GP = GP3 // 3

    # ---- Phase 1: one big matmul for every input projection, biases folded in.
    gx = (jnp.dot(x_ref[...], wih_ref[...], preferred_element_type=jnp.float32)
          + bih_ref[...])                                        # [T*B, 6*GP]
    # Pre-pair fwd(t) with bwd(T-1-t) once (one-time, off the serial chain).
    for t in range(T):
        gx_ref[t, :, :GP3] = gx[t * B:(t + 1) * B, :GP3]
        gx_ref[t, :, GP3:] = gx[(T - 1 - t) * B:(T - t) * B, GP3:]

    whh_f = whh_f_ref[...]
    whh_b = whh_b_ref[...]
    bhh_f = jnp.broadcast_to(bhh_f_ref[...], (B, GP3))    # hoisted broadcasts (once)
    bhh_b = jnp.broadcast_to(bhh_b_ref[...], (B, GP3))

    def gate_update(gx_d, hg_d, h_prev):
        # gx_d / hg_d: [B, 3*GP]; all slices 128-aligned. PyTorch gate order r, z, n.
        r = jax.nn.sigmoid(gx_d[:, :GP] + hg_d[:, :GP])
        z = jax.nn.sigmoid(gx_d[:, GP:2 * GP] + hg_d[:, GP:2 * GP])
        n = jnp.tanh(gx_d[:, 2 * GP:] + r * hg_d[:, 2 * GP:])
        return (1.0 - z) * n + z * h_prev

    # Padded lanes (>= H) of h stay exactly 0: weights/biases are zero there.
    h_f = jnp.zeros((B, GP), jnp.float32)
    h_b = jnp.zeros((B, GP), jnp.float32)
    hf_steps = []
    hb_steps = []

    # ---- Phase 2: fully-unrolled serial recurrence; two independent per-direction
    # chains the scheduler can interleave. No per-step concat, no per-step stores.
    for t in range(T):
        gxt = gx_ref[t]                                          # [B, 6*GP] whole block
        hg_f = jnp.dot(h_f, whh_f, preferred_element_type=jnp.float32) + bhh_f
        hg_b = jnp.dot(h_b, whh_b, preferred_element_type=jnp.float32) + bhh_b
        h_f = gate_update(gxt[:, :GP3], hg_f, h_f)
        h_b = gate_update(gxt[:, GP3:], hg_b, h_b)
        hf_steps.append(h_f)
        hb_steps.append(h_b)

    # ---- Single bulk, lane-dense output store (T*2H = multiple of 128 lanes).
    pieces = []
    for t in range(T):
        pieces.append(hf_steps[t][:, :H])            # output[:, t, :H]
        pieces.append(hb_steps[T - 1 - t][:, :H])    # output[:, t, H:]
    out_ref[...] = jnp.concatenate(pieces, axis=-1)              # [B, T*2H]
    hcat_ref[...] = jnp.concatenate(
        [hf_steps[-1][:, :H], hb_steps[-1][:, :H]], axis=-1)     # [B, 2H]


# ----------------------------------------------------------------------------- packing
_GATE_PAD = 128  # one 128-lane slot per gate per direction


def _pad_gate_cols(w, P):
    """[3, R, H] per-gate weights -> [R, 3*P], gate order r|z|n, H cols in a P slot."""
    G, R, H = w.shape
    wp = jnp.zeros((G, R, P), w.dtype).at[:, :, :H].set(w)
    return jnp.transpose(wp, (1, 0, 2)).reshape(R, G * P)


def _pad_recurrent(w_hh, P):
    """[3, H, H] -> [P, 3*P] with rows and per-gate columns zero-padded to P."""
    G, H, _ = w_hh.shape
    wp = jnp.zeros((G, P, P), w_hh.dtype).at[:, :H, :H].set(w_hh)
    return jnp.transpose(wp, (1, 0, 2)).reshape(P, G * P)


def _pad_bias(b, P):
    """[3, 1, H] -> [1, 3*P]."""
    G, _, H = b.shape
    bp = jnp.zeros((G, 1, P), b.dtype).at[:, :, :H].set(b)
    return jnp.transpose(bp, (1, 0, 2)).reshape(1, G * P)


def pack_params(params):
    """One-time (outside the per-call jit) packing into 128-padded gate slots."""
    H = params["w_hh_f"].shape[-1]
    P = ((H + _GATE_PAD - 1) // _GATE_PAD) * _GATE_PAD
    return {
        "wih": jnp.concatenate([_pad_gate_cols(params["w_ih_f"], P),
                                _pad_gate_cols(params["w_ih_b"], P)], axis=1),
        "bih": jnp.concatenate([_pad_bias(params["b_ih_f"], P),
                                _pad_bias(params["b_ih_b"], P)], axis=1),
        "whh_f": _pad_recurrent(params["w_hh_f"], P),
        "whh_b": _pad_recurrent(params["w_hh_b"], P),
        "bhh_f": _pad_bias(params["b_hh_f"], P),
        "bhh_b": _pad_bias(params["b_hh_b"], P),
    }


# ----------------------------------------------------------------------------- wrapper
@functools.partial(jax.jit, static_argnames=("hidden_size",))
def encoder_forward(embedded_src, packed, hidden_size):
    """Pallas equivalent of Encoder.forward.  embedded_src: [B, T, D] float32."""
    B, T, D = embedded_src.shape
    H = hidden_size
    GP = packed["bhh_f"].shape[-1] // 3

    # emb_dropout(p=0.0) and single-layer rnn dropout are identities.
    x_flat = jnp.transpose(embedded_src, (1, 0, 2)).reshape(T * B, D)  # time-major

    vmem = pl.BlockSpec(memory_space=pltpu.MemorySpace.VMEM)
    out_flat, hidden_concat = pl.pallas_call(
        bigru_kernel,
        out_shape=(
            jax.ShapeDtypeStruct((B, T * 2 * H), jnp.float32),   # lane-dense
            jax.ShapeDtypeStruct((B, 2 * H), jnp.float32),
        ),
        in_specs=[vmem] * 7,
        out_specs=(vmem, vmem),
        scratch_shapes=[pltpu.VMEM((T, B, 6 * GP), jnp.float32)],
    )(x_flat, packed["wih"], packed["bih"], packed["whh_f"], packed["whh_b"],
      packed["bhh_f"], packed["bhh_b"])

    output = out_flat.reshape(B, T, 2 * H)
    return output, hidden_concat


# ----------------------------------------------------------------------------- reference
def _gru_cell(x_t, h_prev, w_ih, w_hh, b_ih, b_hh):
    """One GRU step (PyTorch gate equations, gate order r, z, n)."""
    i_r = jnp.dot(x_t, w_ih[0], preferred_element_type=jnp.float32) + b_ih[0]
    i_z = jnp.dot(x_t, w_ih[1], preferred_element_type=jnp.float32) + b_ih[1]
    i_n = jnp.dot(x_t, w_ih[2], preferred_element_type=jnp.float32) + b_ih[2]
    h_r = jnp.dot(h_prev, w_hh[0], preferred_element_type=jnp.float32) + b_hh[0]
    h_z = jnp.dot(h_prev, w_hh[1], preferred_element_type=jnp.float32) + b_hh[1]
    h_n = jnp.dot(h_prev, w_hh[2], preferred_element_type=jnp.float32) + b_hh[2]
    r = jax.nn.sigmoid(i_r + h_r)
    z = jax.nn.sigmoid(i_z + h_z)
    n = jnp.tanh(i_n + r * h_n)
    return (1.0 - z) * n + z * h_prev


def encoder_reference(embedded_src, params):
    """Pure-JAX reference (lax.scan) with identical semantics, for validation."""
    B, T, D = embedded_src.shape
    H = params["w_hh_f"].shape[-1]
    x_tbd = jnp.transpose(embedded_src, (1, 0, 2))

    def run(xs, w_ih, w_hh, b_ih, b_hh):
        def step(h, x_t):
            h = _gru_cell(x_t, h, w_ih, w_hh, b_ih, b_hh)
            return h, h
        h_last, hs = jax.lax.scan(step, jnp.zeros((B, H), jnp.float32), xs)
        return hs, h_last

    hs_f, hf = run(x_tbd, params["w_ih_f"], params["w_hh_f"],
                   params["b_ih_f"], params["b_hh_f"])
    hs_b_rev, hb = run(x_tbd[::-1], params["w_ih_b"], params["w_hh_b"],
                       params["b_ih_b"], params["b_hh_b"])
    hs_b = hs_b_rev[::-1]
    output = jnp.transpose(jnp.concatenate([hs_f, hs_b], axis=-1), (1, 0, 2))
    hidden_concat = jnp.concatenate([hf, hb], axis=-1)
    return output, hidden_concat


def init_params(key, input_size, hidden_size):
    """Deterministic synthetic GRU weights, PyTorch-style U(-1/sqrt(H), 1/sqrt(H))."""
    k = 1.0 / (hidden_size ** 0.5)
    names_shapes = [
        ("w_ih_f", (3, input_size, hidden_size)),
        ("w_hh_f", (3, hidden_size, hidden_size)),
        ("b_ih_f", (3, 1, hidden_size)),
        ("b_hh_f", (3, 1, hidden_size)),
        ("w_ih_b", (3, input_size, hidden_size)),
        ("w_hh_b", (3, hidden_size, hidden_size)),
        ("b_ih_b", (3, 1, hidden_size)),
        ("b_hh_b", (3, 1, hidden_size)),
    ]
    params = {}
    keys = jax.random.split(key, len(names_shapes))
    for sub, (name, shape) in zip(keys, names_shapes):
        params[name] = jax.random.uniform(sub, shape, jnp.float32, minval=-k, maxval=k)
    return params


if __name__ == "__main__":
    B, T, D, H = 2, 8, 4, 16  # batch, seq_len, input_size (default 4), hidden_size (default 16)

    root = jax.random.PRNGKey(0)
    kx, kp = jax.random.split(root)
    x = jax.random.normal(kx, (B, T, D), jnp.float32)  # embedded_src [batch, seq, emb]
    params = init_params(kp, D, H)
    packed = pack_params(params)  # packed once, outside the jitted per-call forward

    output, hidden_concat = encoder_forward(x, packed, hidden_size=H)
    jax.block_until_ready((output, hidden_concat))

    ref_output, ref_hidden = encoder_reference(x, params)

    assert output.shape == (B, T, 2 * H), output.shape
    assert hidden_concat.shape == (B, 2 * H), hidden_concat.shape
    assert jnp.allclose(output, ref_output, atol=1e-5, rtol=1e-5)
    assert jnp.allclose(hidden_concat, ref_hidden, atol=1e-5, rtol=1e-5)

    print("KERNEL_OK")
</pallas_src>

<mosaic_0001>
module attributes {stable_mosaic.version = 11 : i64} {
  func.func @bigru_kernel(%arg0: memref<16x4xf32, #tpu.memory_space<vmem>>, %arg1: memref<4x768xf32, #tpu.memory_space<vmem>>, %arg2: memref<1x768xf32, #tpu.memory_space<vmem>>, %arg3: memref<128x384xf32, #tpu.memory_space<vmem>>, %arg4: memref<128x384xf32, #tpu.memory_space<vmem>>, %arg5: memref<1x384xf32, #tpu.memory_space<vmem>>, %arg6: memref<1x384xf32, #tpu.memory_space<vmem>>, %arg7: memref<2x256xf32, #tpu.memory_space<vmem>>, %arg8: memref<2x32xf32, #tpu.memory_space<vmem>>, %arg9: memref<8x2x768xf32, #tpu.memory_space<vmem>>) attributes {dimension_semantics = [], scalar_prefetch = 0 : i64, scratch_operands = 1 : i64, tpu.core_type = #tpu.core_type<tc>} {
    %c0 = arith.constant 0 : index
    %c0_0 = arith.constant 0 : index
    %0 = vector.load %arg0[%c0, %c0_0] : memref<16x4xf32, #tpu.memory_space<vmem>>, vector<16x4xf32>
    %c0_1 = arith.constant 0 : index
    %c0_2 = arith.constant 0 : index
    %1 = vector.load %arg1[%c0_1, %c0_2] : memref<4x768xf32, #tpu.memory_space<vmem>>, vector<4x768xf32>
    %cst = arith.constant dense<0.000000e+00> : vector<16x768xf32>
    %2 = tpu.matmul %0, %1, %cst {dimension_numbers = #tpu.dot_dimension_numbers<[1], [0], [0], [1], [0, 0, 1, 1], [], []>} : vector<16x4xf32>, vector<4x768xf32>, vector<16x768xf32> -> vector<16x768xf32>
    %c0_3 = arith.constant 0 : index
    %c0_4 = arith.constant 0 : index
    %3 = vector.load %arg2[%c0_3, %c0_4] : memref<1x768xf32, #tpu.memory_space<vmem>>, vector<1x768xf32>
    %4 = vector.broadcast %3 : vector<1x768xf32> to vector<16x768xf32>
    %5 = arith.addf %2, %4 : vector<16x768xf32>
    %6 = vector.extract_strided_slice %5 {offsets = [0, 0], sizes = [2, 384], strides = [1, 1]} : vector<16x768xf32> to vector<2x384xf32>
    %c0_5 = arith.constant 0 : index
    %c0_6 = arith.constant 0 : index
    %c0_7 = arith.constant 0 : index
    %7 = vector.load %arg9[%c0_5, %c0_6, %c0_7] : memref<8x2x768xf32, #tpu.memory_space<vmem>>, vector<1x2x384xf32>
    %8 = vector.shape_cast %7 : vector<1x2x384xf32> to vector<2x384xf32>
    %9 = vector.shape_cast %6 : vector<2x384xf32> to vector<1x2x384xf32>
    tpu.vector_store %arg9[%c0_5, %c0_6, %c0_7], %9 {strides = array<i32>} : memref<8x2x768xf32, #tpu.memory_space<vmem>>, vector<1x2x384xf32>,
    %10 = vector.extract_strided_slice %5 {offsets = [14, 384], sizes = [2, 384], strides = [1, 1]} : vector<16x768xf32> to vector<2x384xf32>
    %c0_8 = arith.constant 0 : index
    %c0_9 = arith.constant 0 : index
    %c384 = arith.constant 384 : index
    %11 = vector.load %arg9[%c0_8, %c0_9, %c384] : memref<8x2x768xf32, #tpu.memory_space<vmem>>, vector<1x2x384xf32>
    %12 = vector.shape_cast %11 : vector<1x2x384xf32> to vector<2x384xf32>
    %13 = vector.shape_cast %10 : vector<2x384xf32> to vector<1x2x384xf32>
    tpu.vector_store %arg9[%c0_8, %c0_9, %c384], %13 {strides = array<i32>} : memref<8x2x768xf32, #tpu.memory_space<vmem>>, vector<1x2x384xf32>,
    %14 = vector.extract_strided_slice %5 {offsets = [2, 0], sizes = [2, 384], strides = [1, 1]} : vector<16x768xf32> to vector<2x384xf32>
    %c1 = arith.constant 1 : index
    %c0_10 = arith.constant 0 : index
    %c0_11 = arith.constant 0 : index
    %15 = vector.load %arg9[%c1, %c0_10, %c0_11] : memref<8x2x768xf32, #tpu.memory_space<vmem>>, vector<1x2x384xf32>
    %16 = vector.shape_cast %15 : vector<1x2x384xf32> to vector<2x384xf32>
    %17 = vector.shape_cast %14 : vector<2x384xf32> to vector<1x2x384xf32>
    tpu.vector_store %arg9[%c1, %c0_10, %c0_11], %17 {strides = array<i32>} : memref<8x2x768xf32, #tpu.memory_space<vmem>>, vector<1x2x384xf32>,
    %18 = vector.extract_strided_slice %5 {offsets = [12, 384], sizes = [2, 384], strides = [1, 1]} : vector<16x768xf32> to vector<2x384xf32>
    %c1_12 = arith.constant 1 : index
    %c0_13 = arith.constant 0 : index
    %c384_14 = arith.constant 384 : index
    %19 = vector.load %arg9[%c1_12, %c0_13, %c384_14] : memref<8x2x768xf32, #tpu.memory_space<vmem>>, vector<1x2x384xf32>
    %20 = vector.shape_cast %19 : vector<1x2x384xf32> to vector<2x384xf32>
    %21 = vector.shape_cast %18 : vector<2x384xf32> to vector<1x2x384xf32>
    tpu.vector_store %arg9[%c1_12, %c0_13, %c384_14], %21 {strides = array<i32>} : memref<8x2x768xf32, #tpu.memory_space<vmem>>, vector<1x2x384xf32>,
    %22 = vector.extract_strided_slice %5 {offsets = [4, 0], sizes = [2, 384], strides = [1, 1]} : vector<16x768xf32> to vector<2x384xf32>
    %c2 = arith.constant 2 : index
    %c0_15 = arith.constant 0 : index
    %c0_16 = arith.constant 0 : index
    %23 = vector.load %arg9[%c2, %c0_15, %c0_16] : memref<8x2x768xf32, #tpu.memory_space<vmem>>, vector<1x2x384xf32>
    %24 = vector.shape_cast %23 : vector<1x2x384xf32> to vector<2x384xf32>
    %25 = vector.shape_cast %22 : vector<2x384xf32> to vector<1x2x384xf32>
    tpu.vector_store %arg9[%c2, %c0_15, %c0_16], %25 {strides = array<i32>} : memref<8x2x768xf32, #tpu.memory_space<vmem>>, vector<1x2x384xf32>,
    %26 = vector.extract_strided_slice %5 {offsets = [10, 384], sizes = [2, 384], strides = [1, 1]} : vector<16x768xf32> to vector<2x384xf32>
    %c2_17 = arith.constant 2 : index
    %c0_18 = arith.constant 0 : index
    %c384_19 = arith.constant 384 : index
    %27 = vector.load %arg9[%c2_17, %c0_18, %c384_19] : memref<8x2x768xf32, #tpu.memory_space<vmem>>, vector<1x2x384xf32>
    %28 = vector.shape_cast %27 : vector<1x2x384xf32> to vector<2x384xf32>
    %29 = vector.shape_cast %26 : vector<2x384xf32> to vector<1x2x384xf32>
    tpu.vector_store %arg9[%c2_17, %c0_18, %c384_19], %29 {strides = array<i32>} : memref<8x2x768xf32, #tpu.memory_space<vmem>>, vector<1x2x384xf32>,
    %30 = vector.extract_strided_slice %5 {offsets = [6, 0], sizes = [2, 384], strides = [1, 1]} : vector<16x768xf32> to vector<2x384xf32>
    %c3 = arith.constant 3 : index
    %c0_20 = arith.constant 0 : index
    %c0_21 = arith.constant 0 : index
    %31 = vector.load %arg9[%c3, %c0_20, %c0_21] : memref<8x2x768xf32, #tpu.memory_space<vmem>>, vector<1x2x384xf32>
    %32 = vector.shape_cast %31 : vector<1x2x384xf32> to vector<2x384xf32>
    %33 = vector.shape_cast %30 : vector<2x384xf32> to vector<1x2x384xf32>
    tpu.vector_store %arg9[%c3, %c0_20, %c0_21], %33 {strides = array<i32>} : memref<8x2x768xf32, #tpu.memory_space<vmem>>, vector<1x2x384xf32>,
    %34 = vector.extract_strided_slice %5 {offsets = [8, 384], sizes = [2, 384], strides = [1, 1]} : vector<16x768xf32> to vector<2x384xf32>
    %c3_22 = arith.constant 3 : index
    %c0_23 = arith.constant 0 : index
    %c384_24 = arith.constant 384 : index
    %35 = vector.load %arg9[%c3_22, %c0_23, %c384_24] : memref<8x2x768xf32, #tpu.memory_space<vmem>>, vector<1x2x384xf32>
    %36 = vector.shape_cast %35 : vector<1x2x384xf32> to vector<2x384xf32>
    %37 = vector.shape_cast %34 : vector<2x384xf32> to vector<1x2x384xf32>
    tpu.vector_store %arg9[%c3_22, %c0_23, %c384_24], %37 {strides = array<i32>} : memref<8x2x768xf32, #tpu.memory_space<vmem>>, vector<1x2x384xf32>,
    %38 = vector.extract_strided_slice %5 {offsets = [8, 0], sizes = [2, 384], strides = [1, 1]} : vector<16x768xf32> to vector<2x384xf32>
    %c4 = arith.constant 4 : index
    %c0_25 = arith.constant 0 : index
    %c0_26 = arith.constant 0 : index
    %39 = vector.load %arg9[%c4, %c0_25, %c0_26] : memref<8x2x768xf32, #tpu.memory_space<vmem>>, vector<1x2x384xf32>
    %40 = vector.shape_cast %39 : vector<1x2x384xf32> to vector<2x384xf32>
    %41 = vector.shape_cast %38 : vector<2x384xf32> to vector<1x2x384xf32>
    tpu.vector_store %arg9[%c4, %c0_25, %c0_26], %41 {strides = array<i32>} : memref<8x2x768xf32, #tpu.memory_space<vmem>>, vector<1x2x384xf32>,
    %42 = vector.extract_strided_slice %5 {offsets = [6, 384], sizes = [2, 384], strides = [1, 1]} : vector<16x768xf32> to vector<2x384xf32>
    %c4_27 = arith.constant 4 : index
    %c0_28 = arith.constant 0 : index
    %c384_29 = arith.constant 384 : index
    %43 = vector.load %arg9[%c4_27, %c0_28, %c384_29] : memref<8x2x768xf32, #tpu.memory_space<vmem>>, vector<1x2x384xf32>
    %44 = vector.shape_cast %43 : vector<1x2x384xf32> to vector<2x384xf32>
    %45 = vector.shape_cast %42 : vector<2x384xf32> to vector<1x2x384xf32>
    tpu.vector_store %arg9[%c4_27, %c0_28, %c384_29], %45 {strides = array<i32>} : memref<8x2x768xf32, #tpu.memory_space<vmem>>, vector<1x2x384xf32>,
    %46 = vector.extract_strided_slice %5 {offsets = [10, 0], sizes = [2, 384], strides = [1, 1]} : vector<16x768xf32> to vector<2x384xf32>
    %c5 = arith.constant 5 : index
    %c0_30 = arith.constant 0 : index
    %c0_31 = arith.constant 0 : index
    %47 = vector.load %arg9[%c5, %c0_30, %c0_31] : memref<8x2x768xf32, #tpu.memory_space<vmem>>, vector<1x2x384xf32>
    %48 = vector.shape_cast %47 : vector<1x2x384xf32> to vector<2x384xf32>
    %49 = vector.shape_cast %46 : vector<2x384xf32> to vector<1x2x384xf32>
    tpu.vector_store %arg9[%c5, %c0_30, %c0_31], %49 {strides = array<i32>} : memref<8x2x768xf32, #tpu.memory_space<vmem>>, vector<1x2x384xf32>,
    %50 = vector.extract_strided_slice %5 {offsets = [4, 384], sizes = [2, 384], strides = [1, 1]} : vector<16x768xf32> to vector<2x384xf32>
    %c5_32 = arith.constant 5 : index
    %c0_33 = arith.constant 0 : index
    %c384_34 = arith.constant 384 : index
    %51 = vector.load %arg9[%c5_32, %c0_33, %c384_34] : memref<8x2x768xf32, #tpu.memory_space<vmem>>, vector<1x2x384xf32>
    %52 = vector.shape_cast %51 : vector<1x2x384xf32> to vector<2x384xf32>
    %53 = vector.shape_cast %50 : vector<2x384xf32> to vector<1x2x384xf32>
    tpu.vector_store %arg9[%c5_32, %c0_33, %c384_34], %53 {strides = array<i32>} : memref<8x2x768xf32, #tpu.memory_space<vmem>>, vector<1x2x384xf32>,
    %54 = vector.extract_strided_slice %5 {offsets = [12, 0], sizes = [2, 384], strides = [1, 1]} : vector<16x768xf32> to vector<2x384xf32>
    %c6 = arith.constant 6 : index
    %c0_35 = arith.constant 0 : index
    %c0_36 = arith.constant 0 : index
    %55 = vector.load %arg9[%c6, %c0_35, %c0_36] : memref<8x2x768xf32, #tpu.memory_space<vmem>>, vector<1x2x384xf32>
    %56 = vector.shape_cast %55 : vector<1x2x384xf32> to vector<2x384xf32>
    %57 = vector.shape_cast %54 : vector<2x384xf32> to vector<1x2x384xf32>
    tpu.vector_store %arg9[%c6, %c0_35, %c0_36], %57 {strides = array<i32>} : memref<8x2x768xf32, #tpu.memory_space<vmem>>, vector<1x2x384xf32>,
    %58 = vector.extract_strided_slice %5 {offsets = [2, 384], sizes = [2, 384], strides = [1, 1]} : vector<16x768xf32> to vector<2x384xf32>
    %c6_37 = arith.constant 6 : index
    %c0_38 = arith.constant 0 : index
    %c384_39 = arith.constant 384 : index
    %59 = vector.load %arg9[%c6_37, %c0_38, %c384_39] : memref<8x2x768xf32, #tpu.memory_space<vmem>>, vector<1x2x384xf32>
    %60 = vector.shape_cast %59 : vector<1x2x384xf32> to vector<2x384xf32>
    %61 = vector.shape_cast %58 : vector<2x384xf32> to vector<1x2x384xf32>
    tpu.vector_store %arg9[%c6_37, %c0_38, %c384_39], %61 {strides = array<i32>} : memref<8x2x768xf32, #tpu.memory_space<vmem>>, vector<1x2x384xf32>,
    %62 = vector.extract_strided_slice %5 {offsets = [14, 0], sizes = [2, 384], strides = [1, 1]} : vector<16x768xf32> to vector<2x384xf32>
    %c7 = arith.constant 7 : index
    %c0_40 = arith.constant 0 : index
    %c0_41 = arith.constant 0 : index
    %63 = vector.load %arg9[%c7, %c0_40, %c0_41] : memref<8x2x768xf32, #tpu.memory_space<vmem>>, vector<1x2x384xf32>
    %64 = vector.shape_cast %63 : vector<1x2x384xf32> to vector<2x384xf32>
    %65 = vector.shape_cast %62 : vector<2x384xf32> to vector<1x2x384xf32>
    tpu.vector_store %arg9[%c7, %c0_40, %c0_41], %65 {strides = array<i32>} : memref<8x2x768xf32, #tpu.memory_space<vmem>>, vector<1x2x384xf32>,
    %66 = vector.extract_strided_slice %5 {offsets = [0, 384], sizes = [2, 384], strides = [1, 1]} : vector<16x768xf32> to vector<2x384xf32>
    %c7_42 = arith.constant 7 : index
    %c0_43 = arith.constant 0 : index
    %c384_44 = arith.constant 384 : index
    %67 = vector.load %arg9[%c7_42, %c0_43, %c384_44] : memref<8x2x768xf32, #tpu.memory_space<vmem>>, vector<1x2x384xf32>
    %68 = vector.shape_cast %67 : vector<1x2x384xf32> to vector<2x384xf32>
    %69 = vector.shape_cast %66 : vector<2x384xf32> to vector<1x2x384xf32>
    tpu.vector_store %arg9[%c7_42, %c0_43, %c384_44], %69 {strides = array<i32>} : memref<8x2x768xf32, #tpu.memory_space<vmem>>, vector<1x2x384xf32>,
    %c0_45 = arith.constant 0 : index
    %c0_46 = arith.constant 0 : index
    %70 = vector.load %arg3[%c0_45, %c0_46] : memref<128x384xf32, #tpu.memory_space<vmem>>, vector<128x384xf32>
    %c0_47 = arith.constant 0 : index
    %c0_48 = arith.constant 0 : index
    %71 = vector.load %arg4[%c0_47, %c0_48] : memref<128x384xf32, #tpu.memory_space<vmem>>, vector<128x384xf32>
    %c0_49 = arith.constant 0 : index
    %c0_50 = arith.constant 0 : index
    %72 = vector.load %arg5[%c0_49, %c0_50] : memref<1x384xf32, #tpu.memory_space<vmem>>, vector<1x384xf32>
    %73 = vector.shape_cast %72 : vector<1x384xf32> to vector<1x384xf32>
    %74 = vector.broadcast %73 : vector<1x384xf32> to vector<2x384xf32>
    %c0_51 = arith.constant 0 : index
    %c0_52 = arith.constant 0 : index
    %75 = vector.load %arg6[%c0_51, %c0_52] : memref<1x384xf32, #tpu.memory_space<vmem>>, vector<1x384xf32>
    %76 = vector.shape_cast %75 : vector<1x384xf32> to vector<1x384xf32>
    %77 = vector.broadcast %76 : vector<1x384xf32> to vector<2x384xf32>
    %cst_53 = arith.constant 0.000000e+00 : f32
    %78 = vector.broadcast %cst_53 : f32 to vector<2x128xf32>
    %cst_54 = arith.constant 0.000000e+00 : f32
    %79 = vector.broadcast %cst_54 : f32 to vector<2x128xf32>
    %c0_55 = arith.constant 0 : index
    %c0_56 = arith.constant 0 : index
    %c0_57 = arith.constant 0 : index
    %80 = vector.load %arg9[%c0_55, %c0_56, %c0_57] : memref<8x2x768xf32, #tpu.memory_space<vmem>>, vector<1x2x768xf32>
    %81 = vector.shape_cast %80 : vector<1x2x768xf32> to vector<2x768xf32>
    %cst_58 = arith.constant dense<0.000000e+00> : vector<2x384xf32>
    %82 = tpu.matmul %78, %70, %cst_58 {dimension_numbers = #tpu.dot_dimension_numbers<[1], [0], [0], [1], [0, 0, 1, 1], [], []>} : vector<2x128xf32>, vector<128x384xf32>, vector<2x384xf32> -> vector<2x384xf32>
    %83 = arith.addf %82, %74 : vector<2x384xf32>
    %cst_59 = arith.constant dense<0.000000e+00> : vector<2x384xf32>
    %84 = tpu.matmul %79, %71, %cst_59 {dimension_numbers = #tpu.dot_dimension_numbers<[1], [0], [0], [1], [0, 0, 1, 1], [], []>} : vector<2x128xf32>, vector<128x384xf32>, vector<2x384xf32> -> vector<2x384xf32>
    %85 = arith.addf %84, %77 : vector<2x384xf32>
    %86 = vector.extract_strided_slice %81 {offsets = [0, 0], sizes = [2, 384], strides = [1, 1]} : vector<2x768xf32> to vector<2x384xf32>
    %87 = vector.extract_strided_slice %86 {offsets = [0, 0], sizes = [2, 128], strides = [1, 1]} : vector<2x384xf32> to vector<2x128xf32>
    %88 = vector.extract_strided_slice %83 {offsets = [0, 0], sizes = [2, 128], strides = [1, 1]} : vector<2x384xf32> to vector<2x128xf32>
    %89 = arith.addf %87, %88 : vector<2x128xf32>
    %90 = arith.negf %89 : vector<2x128xf32>
    %91 = math.exp %90 : vector<2x128xf32>
    %cst_60 = arith.constant 1.000000e+00 : f32
    %92 = vector.broadcast %cst_60 : f32 to vector<2x128xf32>
    %93 = arith.addf %92, %91 : vector<2x128xf32>
    %94 = arith.divf %92, %93 : vector<2x128xf32>
    %95 = vector.extract_strided_slice %86 {offsets = [0, 128], sizes = [2, 128], strides = [1, 1]} : vector<2x384xf32> to vector<2x128xf32>
    %96 = vector.extract_strided_slice %83 {offsets = [0, 128], sizes = [2, 128], strides = [1, 1]} : vector<2x384xf32> to vector<2x128xf32>
    %97 = arith.addf %95, %96 : vector<2x128xf32>
    %98 = arith.negf %97 : vector<2x128xf32>
    %99 = math.exp %98 : vector<2x128xf32>
    %cst_61 = arith.constant 1.000000e+00 : f32
    %100 = vector.broadcast %cst_61 : f32 to vector<2x128xf32>
    %101 = arith.addf %100, %99 : vector<2x128xf32>
    %102 = arith.divf %100, %101 : vector<2x128xf32>
    %103 = vector.extract_strided_slice %86 {offsets = [0, 256], sizes = [2, 128], strides = [1, 1]} : vector<2x384xf32> to vector<2x128xf32>
    %104 = vector.extract_strided_slice %83 {offsets = [0, 256], sizes = [2, 128], strides = [1, 1]} : vector<2x384xf32> to vector<2x128xf32>
    %105 = arith.mulf %94, %104 : vector<2x128xf32>
    %106 = arith.addf %103, %105 : vector<2x128xf32>
    %107 = math.tanh %106 : vector<2x128xf32>
    %cst_62 = arith.constant 1.000000e+00 : f32
    %108 = vector.broadcast %cst_62 : f32 to vector<2x128xf32>
    %109 = arith.subf %108, %102 : vector<2x128xf32>
    %110 = arith.mulf %109, %107 : vector<2x128xf32>
    %111 = arith.mulf %102, %78 : vector<2x128xf32>
    %112 = arith.addf %110, %111 : vector<2x128xf32>
    %113 = vector.extract_strided_slice %81 {offsets = [0, 384], sizes = [2, 384], strides = [1, 1]} : vector<2x768xf32> to vector<2x384xf32>
    %114 = vector.extract_strided_slice %113 {offsets = [0, 0], sizes = [2, 128], strides = [1, 1]} : vector<2x384xf32> to vector<2x128xf32>
    %115 = vector.extract_strided_slice %85 {offsets = [0, 0], sizes = [2, 128], strides = [1, 1]} : vector<2x384xf32> to vector<2x128xf32>
    %116 = arith.addf %114, %115 : vector<2x128xf32>
    %117 = arith.negf %116 : vector<2x128xf32>
    %118 = math.exp %117 : vector<2x128xf32>
    %cst_63 = arith.constant 1.000000e+00 : f32
    %119 = vector.broadcast %cst_63 : f32 to vector<2x128xf32>
    %120 = arith.addf %119, %118 : vector<2x128xf32>
    %121 = arith.divf %119, %120 : vector<2x128xf32>
    %122 = vector.extract_strided_slice %113 {offsets = [0, 128], sizes = [2, 128], strides = [1, 1]} : vector<2x384xf32> to vector<2x128xf32>
    %123 = vector.extract_strided_slice %85 {offsets = [0, 128], sizes = [2, 128], strides = [1, 1]} : vector<2x384xf32> to vector<2x128xf32>
    %124 = arith.addf %122, %123 : vector<2x128xf32>
    %125 = arith.negf %124 : vector<2x128xf32>
    %126 = math.exp %125 : vector<2x128xf32>
    %cst_64 = arith.constant 1.000000e+00 : f32
    %127 = vector.broadcast %cst_64 : f32 to vector<2x128xf32>
    %128 = arith.addf %127, %126 : vector<2x128xf32>
    %129 = arith.divf %127, %128 : vector<2x128xf32>
    %130 = vector.extract_strided_slice %113 {offsets = [0, 256], sizes = [2, 128], strides = [1, 1]} : vector<2x384xf32> to vector<2x128xf32>
    %131 = vector.extract_strided_slice %85 {offsets = [0, 256], sizes = [2, 128], strides = [1, 1]} : vector<2x384xf32> to vector<2x128xf32>
    %132 = arith.mulf %121, %131 : vector<2x128xf32>
    %133 = arith.addf %130, %132 : vector<2x128xf32>
    %134 = math.tanh %133 : vector<2x128xf32>
    %cst_65 = arith.constant 1.000000e+00 : f32
    %135 = vector.broadcast %cst_65 : f32 to vector<2x128xf32>
    %136 = arith.subf %135, %129 : vector<2x128xf32>
    %137 = arith.mulf %136, %134 : vector<2x128xf32>
    %138 = arith.mulf %129, %79 : vector<2x128xf32>
    %139 = arith.addf %137, %138 : vector<2x128xf32>
    %c1_66 = arith.constant 1 : index
    %c0_67 = arith.constant 0 : index
    %c0_68 = arith.constant 0 : index
    %140 = vector.load %arg9[%c1_66, %c0_67, %c0_68] : memref<8x2x768xf32, #tpu.memory_space<vmem>>, vector<1x2x768xf32>
    %141 = vector.shape_cast %140 : vector<1x2x768xf32> to vector<2x768xf32>
    %cst_69 = arith.constant dense<0.000000e+00> : vector<2x384xf32>
    %142 = tpu.matmul %112, %70, %cst_69 {dimension_numbers = #tpu.dot_dimension_numbers<[1], [0], [0], [1], [0, 0, 1, 1], [], []>} : vector<2x128xf32>, vector<128x384xf32>, vector<2x384xf32> -> vector<2x384xf32>
    %143 = arith.addf %142, %74 : vector<2x384xf32>
    %cst_70 = arith.constant dense<0.000000e+00> : vector<2x384xf32>
    %144 = tpu.matmul %139, %71, %cst_70 {dimension_numbers = #tpu.dot_dimension_numbers<[1], [0], [0], [1], [0, 0, 1, 1], [], []>} : vector<2x128xf32>, vector<128x384xf32>, vector<2x384xf32> -> vector<2x384xf32>
    %145 = arith.addf %144, %77 : vector<2x384xf32>
    %146 = vector.extract_strided_slice %141 {offsets = [0, 0], sizes = [2, 384], strides = [1, 1]} : vector<2x768xf32> to vector<2x384xf32>
    %147 = vector.extract_strided_slice %146 {offsets = [0, 0], sizes = [2, 128], strides = [1, 1]} : vector<2x384xf32> to vector<2x128xf32>
    %148 = vector.extract_strided_slice %143 {offsets = [0, 0], sizes = [2, 128], strides = [1, 1]} : vector<2x384xf32> to vector<2x128xf32>
    %149 = arith.addf %147, %148 : vector<2x128xf32>
    %150 = arith.negf %149 : vector<2x128xf32>
    %151 = math.exp %150 : vector<2x128xf32>
    %cst_71 = arith.constant 1.000000e+00 : f32
    %152 = vector.broadcast %cst_71 : f32 to vector<2x128xf32>
    %153 = arith.addf %152, %151 : vector<2x128xf32>
    %154 = arith.divf %152, %153 : vector<2x128xf32>
    %155 = vector.extract_strided_slice %146 {offsets = [0, 128], sizes = [2, 128], strides = [1, 1]} : vector<2x384xf32> to vector<2x128xf32>
    %156 = vector.extract_strided_slice %143 {offsets = [0, 128], sizes = [2, 128], strides = [1, 1]} : vector<2x384xf32> to vector<2x128xf32>
    %157 = arith.addf %155, %156 : vector<2x128xf32>
    %158 = arith.negf %157 : vector<2x128xf32>
    %159 = math.exp %158 : vector<2x128xf32>
    %cst_72 = arith.constant 1.000000e+00 : f32
    %160 = vector.broadcast %cst_72 : f32 to vector<2x128xf32>
    %161 = arith.addf %160, %159 : vector<2x128xf32>
    %162 = arith.divf %160, %161 : vector<2x128xf32>
    %163 = vector.extract_strided_slice %146 {offsets = [0, 256], sizes = [2, 128], strides = [1, 1]} : vector<2x384xf32> to vector<2x128xf32>
    %164 = vector.extract_strided_slice %143 {offsets = [0, 256], sizes = [2, 128], strides = [1, 1]} : vector<2x384xf32> to vector<2x128xf32>
    %165 = arith.mulf %154, %164 : vector<2x128xf32>
    %166 = arith.addf %163, %165 : vector<2x128xf32>
    %167 = math.tanh %166 : vector<2x128xf32>
    %cst_73 = arith.constant 1.000000e+00 : f32
    %168 = vector.broadcast %cst_73 : f32 to vector<2x128xf32>
    %169 = arith.subf %168, %162 : vector<2x128xf32>
    %170 = arith.mulf %169, %167 : vector<2x128xf32>
    %171 = arith.mulf %162, %112 : vector<2x128xf32>
    %172 = arith.addf %170, %171 : vector<2x128xf32>
    %173 = vector.extract_strided_slice %141 {offsets = [0, 384], sizes = [2, 384], strides = [1, 1]} : vector<2x768xf32> to vector<2x384xf32>
    %174 = vector.extract_strided_slice %173 {offsets = [0, 0], sizes = [2, 128], strides = [1, 1]} : vector<2x384xf32> to vector<2x128xf32>
    %175 = vector.extract_strided_slice %145 {offsets = [0, 0], sizes = [2, 128], strides = [1, 1]} : vector<2x384xf32> to vector<2x128xf32>
    %176 = arith.addf %174, %175 : vector<2x128xf32>
    %177 = arith.negf %176 : vector<2x128xf32>
    %178 = math.exp %177 : vector<2x128xf32>
    %cst_74 = arith.constant 1.000000e+00 : f32
    %179 = vector.broadcast %cst_74 : f32 to vector<2x128xf32>
    %180 = arith.addf %179, %178 : vector<2x128xf32>
    %181 = arith.divf %179, %180 : vector<2x128xf32>
    %182 = vector.extract_strided_slice %173 {offsets = [0, 128], sizes = [2, 128], strides = [1, 1]} : vector<2x384xf32> to vector<2x128xf32>
    %183 = vector.extract_strided_slice %145 {offsets = [0, 128], sizes = [2, 128], strides = [1, 1]} : vector<2x384xf32> to vector<2x128xf32>
    %184 = arith.addf %182, %183 : vector<2x128xf32>
    %185 = arith.negf %184 : vector<2x128xf32>
    %186 = math.exp %185 : vector<2x128xf32>
    %cst_75 = arith.constant 1.000000e+00 : f32
    %187 = vector.broadcast %cst_75 : f32 to vector<2x128xf32>
    %188 = arith.addf %187, %186 : vector<2x128xf32>
    %189 = arith.divf %187, %188 : vector<2x128xf32>
    %190 = vector.extract_strided_slice %173 {offsets = [0, 256], sizes = [2, 128], strides = [1, 1]} : vector<2x384xf32> to vector<2x128xf32>
    %191 = vector.extract_strided_slice %145 {offsets = [0, 256], sizes = [2, 128], strides = [1, 1]} : vector<2x384xf32> to vector<2x128xf32>
    %192 = arith.mulf %181, %191 : vector<2x128xf32>
    %193 = arith.addf %190, %192 : vector<2x128xf32>
    %194 = math.tanh %193 : vector<2x128xf32>
    %cst_76 = arith.constant 1.000000e+00 : f32
    %195 = vector.broadcast %cst_76 : f32 to vector<2x128xf32>
    %196 = arith.subf %195, %189 : vector<2x128xf32>
    %197 = arith.mulf %196, %194 : vector<2x128xf32>
    %198 = arith.mulf %189, %139 : vector<2x128xf32>
    %199 = arith.addf %197, %198 : vector<2x128xf32>
    %c2_77 = arith.constant 2 : index
    %c0_78 = arith.constant 0 : index
    %c0_79 = arith.constant 0 : index
    %200 = vector.load %arg9[%c2_77, %c0_78, %c0_79] : memref<8x2x768xf32, #tpu.memory_space<vmem>>, vector<1x2x768xf32>
    %201 = vector.shape_cast %200 : vector<1x2x768xf32> to vector<2x768xf32>
    %cst_80 = arith.constant dense<0.000000e+00> : vector<2x384xf32>
    %202 = tpu.matmul %172, %70, %cst_80 {dimension_numbers = #tpu.dot_dimension_numbers<[1], [0], [0], [1], [0, 0, 1, 1], [], []>} : vector<2x128xf32>, vector<128x384xf32>, vector<2x384xf32> -> vector<2x384xf32>
    %203 = arith.addf %202, %74 : vector<2x384xf32>
    %cst_81 = arith.constant dense<0.000000e+00> : vector<2x384xf32>
    %204 = tpu.matmul %199, %71, %cst_81 {dimension_numbers = #tpu.dot_dimension_numbers<[1], [0], [0], [1], [0, 0, 1, 1], [], []>} : vector<2x128xf32>, vector<128x384xf32>, vector<2x384xf32> -> vector<2x384xf32>
    %205 = arith.addf %204, %77 : vector<2x384xf32>
    %206 = vector.extract_strided_slice %201 {offsets = [0, 0], sizes = [2, 384], strides = [1, 1]} : vector<2x768xf32> to vector<2x384xf32>
    %207 = vector.extract_strided_slice %206 {offsets = [0, 0], sizes = [2, 128], strides = [1, 1]} : vector<2x384xf32> to vector<2x128xf32>
    %208 = vector.extract_strided_slice %203 {offsets = [0, 0], sizes = [2, 128], strides = [1, 1]} : vector<2x384xf32> to vector<2x128xf32>
    %209 = arith.addf %207, %208 : vector<2x128xf32>
    %210 = arith.negf %209 : vector<2x128xf32>
    %211 = math.exp %210 : vector<2x128xf32>
    %cst_82 = arith.constant 1.000000e+00 : f32
    %212 = vector.broadcast %cst_82 : f32 to vector<2x128xf32>
    %213 = arith.addf %212, %211 : vector<2x128xf32>
    %214 = arith.divf %212, %213 : vector<2x128xf32>
    %215 = vector.extract_strided_slice %206 {offsets = [0, 128], sizes = [2, 128], strides = [1, 1]} : vector<2x384xf32> to vector<2x128xf32>
    %216 = vector.extract_strided_slice %203 {offsets = [0, 128], sizes = [2, 128], strides = [1, 1]} : vector<2x384xf32> to vector<2x128xf32>
    %217 = arith.addf %215, %216 : vector<2x128xf32>
    %218 = arith.negf %217 : vector<2x128xf32>
    %219 = math.exp %218 : vector<2x128xf32>
    %cst_83 = arith.constant 1.000000e+00 : f32
    %220 = vector.broadcast %cst_83 : f32 to vector<2x128xf32>
    %221 = arith.addf %220, %219 : vector<2x128xf32>
    %222 = arith.divf %220, %221 : vector<2x128xf32>
    %223 = vector.extract_strided_slice %206 {offsets = [0, 256], sizes = [2, 128], strides = [1, 1]} : vector<2x384xf32> to vector<2x128xf32>
    %224 = vector.extract_strided_slice %203 {offsets = [0, 256], sizes = [2, 128], strides = [1, 1]} : vector<2x384xf32> to vector<2x128xf32>
    %225 = arith.mulf %214, %224 : vector<2x128xf32>
    %226 = arith.addf %223, %225 : vector<2x128xf32>
    %227 = math.tanh %226 : vector<2x128xf32>
    %cst_84 = arith.constant 1.000000e+00 : f32
    %228 = vector.broadcast %cst_84 : f32 to vector<2x128xf32>
    %229 = arith.subf %228, %222 : vector<2x128xf32>
    %230 = arith.mulf %229, %227 : vector<2x128xf32>
    %231 = arith.mulf %222, %172 : vector<2x128xf32>
    %232 = arith.addf %230, %231 : vector<2x128xf32>
    %233 = vector.extract_strided_slice %201 {offsets = [0, 384], sizes = [2, 384], strides = [1, 1]} : vector<2x768xf32> to vector<2x384xf32>
    %234 = vector.extract_strided_slice %233 {offsets = [0, 0], sizes = [2, 128], strides = [1, 1]} : vector<2x384xf32> to vector<2x128xf32>
    %235 = vector.extract_strided_slice %205 {offsets = [0, 0], sizes = [2, 128], strides = [1, 1]} : vector<2x384xf32> to vector<2x128xf32>
    %236 = arith.addf %234, %235 : vector<2x128xf32>
    %237 = arith.negf %236 : vector<2x128xf32>
    %238 = math.exp %237 : vector<2x128xf32>
    %cst_85 = arith.constant 1.000000e+00 : f32
    %239 = vector.broadcast %cst_85 : f32 to vector<2x128xf32>
    %240 = arith.addf %239, %238 : vector<2x128xf32>
    %241 = arith.divf %239, %240 : vector<2x128xf32>
    %242 = vector.extract_strided_slice %233 {offsets = [0, 128], sizes = [2, 128], strides = [1, 1]} : vector<2x384xf32> to vector<2x128xf32>
    %243 = vector.extract_strided_slice %205 {offsets = [0, 128], sizes = [2, 128], strides = [1, 1]} : vector<2x384xf32> to vector<2x128xf32>
    %244 = arith.addf %242, %243 : vector<2x128xf32>
    %245 = arith.negf %244 : vector<2x128xf32>
    %246 = math.exp %245 : vector<2x128xf32>
    %cst_86 = arith.constant 1.000000e+00 : f32
    %247 = vector.broadcast %cst_86 : f32 to vector<2x128xf32>
    %248 = arith.addf %247, %246 : vector<2x128xf32>
    %249 = arith.divf %247, %248 : vector<2x128xf32>
    %250 = vector.extract_strided_slice %233 {offsets = [0, 256], sizes = [2, 128], strides = [1, 1]} : vector<2x384xf32> to vector<2x128xf32>
    %251 = vector.extract_strided_slice %205 {offsets = [0, 256], sizes = [2, 128], strides = [1, 1]} : vector<2x384xf32> to vector<2x128xf32>
    %252 = arith.mulf %241, %251 : vector<2x128xf32>
    %253 = arith.addf %250, %252 : vector<2x128xf32>
    %254 = math.tanh %253 : vector<2x128xf32>
    %cst_87 = arith.constant 1.000000e+00 : f32
    %255 = vector.broadcast %cst_87 : f32 to vector<2x128xf32>
    %256 = arith.subf %255, %249 : vector<2x128xf32>
    %257 = arith.mulf %256, %254 : vector<2x128xf32>
    %258 = arith.mulf %249, %199 : vector<2x128xf32>
    %259 = arith.addf %257, %258 : vector<2x128xf32>
    %c3_88 = arith.constant 3 : index
    %c0_89 = arith.constant 0 : index
    %c0_90 = arith.constant 0 : index
    %260 = vector.load %arg9[%c3_88, %c0_89, %c0_90] : memref<8x2x768xf32, #tpu.memory_space<vmem>>, vector<1x2x768xf32>
    %261 = vector.shape_cast %260 : vector<1x2x768xf32> to vector<2x768xf32>
    %cst_91 = arith.constant dense<0.000000e+00> : vector<2x384xf32>
    %262 = tpu.matmul %232, %70, %cst_91 {dimension_numbers = #tpu.dot_dimension_numbers<[1], [0], [0], [1], [0, 0, 1, 1], [], []>} : vector<2x128xf32>, vector<128x384xf32>, vector<2x384xf32> -> vector<2x384xf32>
    %263 = arith.addf %262, %74 : vector<2x384xf32>
    %cst_92 = arith.constant dense<0.000000e+00> : vector<2x384xf32>
    %264 = tpu.matmul %259, %71, %cst_92 {dimension_numbers = #tpu.dot_dimension_numbers<[1], [0], [0], [1], [0, 0, 1, 1], [], []>} : vector<2x128xf32>, vector<128x384xf32>, vector<2x384xf32> -> vector<2x384xf32>
    %265 = arith.addf %264, %77 : vector<2x384xf32>
    %266 = vector.extract_strided_slice %261 {offsets = [0, 0], sizes = [2, 384], strides = [1, 1]} : vector<2x768xf32> to vector<2x384xf32>
    %267 = vector.extract_strided_slice %266 {offsets = [0, 0], sizes = [2, 128], strides = [1, 1]} : vector<2x384xf32> to vector<2x128xf32>
    %268 = vector.extract_strided_slice %263 {offsets = [0, 0], sizes = [2, 128], strides = [1, 1]} : vector<2x384xf32> to vector<2x128xf32>
    %269 = arith.addf %267, %268 : vector<2x128xf32>
    %270 = arith.negf %269 : vector<2x128xf32>
    %271 = math.exp %270 : vector<2x128xf32>
    %cst_93 = arith.constant 1.000000e+00 : f32
    %272 = vector.broadcast %cst_93 : f32 to vector<2x128xf32>
    %273 = arith.addf %272, %271 : vector<2x128xf32>
    %274 = arith.divf %272, %273 : vector<2x128xf32>
    %275 = vector.extract_strided_slice %266 {offsets = [0, 128], sizes = [2, 128], strides = [1, 1]} : vector<2x384xf32> to vector<2x128xf32>
    %276 = vector.extract_strided_slice %263 {offsets = [0, 128], sizes = [2, 128], strides = [1, 1]} : vector<2x384xf32> to vector<2x128xf32>
    %277 = arith.addf %275, %276 : vector<2x128xf32>
    %278 = arith.negf %277 : vector<2x128xf32>
    %279 = math.exp %278 : vector<2x128xf32>
    %cst_94 = arith.constant 1.000000e+00 : f32
    %280 = vector.broadcast %cst_94 : f32 to vector<2x128xf32>
    %281 = arith.addf %280, %279 : vector<2x128xf32>
    %282 = arith.divf %280, %281 : vector<2x128xf32>
    %283 = vector.extract_strided_slice %266 {offsets = [0, 256], sizes = [2, 128], strides = [1, 1]} : vector<2x384xf32> to vector<2x128xf32>
    %284 = vector.extract_strided_slice %263 {offsets = [0, 256], sizes = [2, 128], strides = [1, 1]} : vector<2x384xf32> to vector<2x128xf32>
    %285 = arith.mulf %274, %284 : vector<2x128xf32>
    %286 = arith.addf %283, %285 : vector<2x128xf32>
    %287 = math.tanh %286 : vector<2x128xf32>
    %cst_95 = arith.constant 1.000000e+00 : f32
    %288 = vector.broadcast %cst_95 : f32 to vector<2x128xf32>
    %289 = arith.subf %288, %282 : vector<2x128xf32>
    %290 = arith.mulf %289, %287 : vector<2x128xf32>
    %291 = arith.mulf %282, %232 : vector<2x128xf32>
    %292 = arith.addf %290, %291 : vector<2x128xf32>
    %293 = vector.extract_strided_slice %261 {offsets = [0, 384], sizes = [2, 384], strides = [1, 1]} : vector<2x768xf32> to vector<2x384xf32>
    %294 = vector.extract_strided_slice %293 {offsets = [0, 0], sizes = [2, 128], strides = [1, 1]} : vector<2x384xf32> to vector<2x128xf32>
    %295 = vector.extract_strided_slice %265 {offsets = [0, 0], sizes = [2, 128], strides = [1, 1]} : vector<2x384xf32> to vector<2x128xf32>
    %296 = arith.addf %294, %295 : vector<2x128xf32>
    %297 = arith.negf %296 : vector<2x128xf32>
    %298 = math.exp %297 : vector<2x128xf32>
    %cst_96 = arith.constant 1.000000e+00 : f32
    %299 = vector.broadcast %cst_96 : f32 to vector<2x128xf32>
    %300 = arith.addf %299, %298 : vector<2x128xf32>
    %301 = arith.divf %299, %300 : vector<2x128xf32>
    %302 = vector.extract_strided_slice %293 {offsets = [0, 128], sizes = [2, 128], strides = [1, 1]} : vector<2x384xf32> to vector<2x128xf32>
    %303 = vector.extract_strided_slice %265 {offsets = [0, 128], sizes = [2, 128], strides = [1, 1]} : vector<2x384xf32> to vector<2x128xf32>
    %304 = arith.addf %302, %303 : vector<2x128xf32>
    %305 = arith.negf %304 : vector<2x128xf32>
    %306 = math.exp %305 : vector<2x128xf32>
    %cst_97 = arith.constant 1.000000e+00 : f32
    %307 = vector.broadcast %cst_97 : f32 to vector<2x128xf32>
    %308 = arith.addf %307, %306 : vector<2x128xf32>
    %309 = arith.divf %307, %308 : vector<2x128xf32>
    %310 = vector.extract_strided_slice %293 {offsets = [0, 256], sizes = [2, 128], strides = [1, 1]} : vector<2x384xf32> to vector<2x128xf32>
    %311 = vector.extract_strided_slice %265 {offsets = [0, 256], sizes = [2, 128], strides = [1, 1]} : vector<2x384xf32> to vector<2x128xf32>
    %312 = arith.mulf %301, %311 : vector<2x128xf32>
    %313 = arith.addf %310, %312 : vector<2x128xf32>
    %314 = math.tanh %313 : vector<2x128xf32>
    %cst_98 = arith.constant 1.000000e+00 : f32
    %315 = vector.broadcast %cst_98 : f32 to vector<2x128xf32>
    %316 = arith.subf %315, %309 : vector<2x128xf32>
    %317 = arith.mulf %316, %314 : vector<2x128xf32>
    %318 = arith.mulf %309, %259 : vector<2x128xf32>
    %319 = arith.addf %317, %318 : vector<2x128xf32>
    %c4_99 = arith.constant 4 : index
    %c0_100 = arith.constant 0 : index
    %c0_101 = arith.constant 0 : index
    %320 = vector.load %arg9[%c4_99, %c0_100, %c0_101] : memref<8x2x768xf32, #tpu.memory_space<vmem>>, vector<1x2x768xf32>
    %321 = vector.shape_cast %320 : vector<1x2x768xf32> to vector<2x768xf32>
    %cst_102 = arith.constant dense<0.000000e+00> : vector<2x384xf32>
    %322 = tpu.matmul %292, %70, %cst_102 {dimension_numbers = #tpu.dot_dimension_numbers<[1], [0], [0], [1], [0, 0, 1, 1], [], []>} : vector<2x128xf32>, vector<128x384xf32>, vector<2x384xf32> -> vector<2x384xf32>
    %323 = arith.addf %322, %74 : vector<2x384xf32>
    %cst_103 = arith.constant dense<0.000000e+00> : vector<2x384xf32>
    %324 = tpu.matmul %319, %71, %cst_103 {dimension_numbers = #tpu.dot_dimension_numbers<[1], [0], [0], [1], [0, 0, 1, 1], [], []>} : vector<2x128xf32>, vector<128x384xf32>, vector<2x384xf32> -> vector<2x384xf32>
    %325 = arith.addf %324, %77 : vector<2x384xf32>
    %326 = vector.extract_strided_slice %321 {offsets = [0, 0], sizes = [2, 384], strides = [1, 1]} : vector<2x768xf32> to vector<2x384xf32>
    %327 = vector.extract_strided_slice %326 {offsets = [0, 0], sizes = [2, 128], strides = [1, 1]} : vector<2x384xf32> to vector<2x128xf32>
    %328 = vector.extract_strided_slice %323 {offsets = [0, 0], sizes = [2, 128], strides = [1, 1]} : vector<2x384xf32> to vector<2x128xf32>
    %329 = arith.addf %327, %328 : vector<2x128xf32>
    %330 = arith.negf %329 : vector<2x128xf32>
    %331 = math.exp %330 : vector<2x128xf32>
    %cst_104 = arith.constant 1.000000e+00 : f32
    %332 = vector.broadcast %cst_104 : f32 to vector<2x128xf32>
    %333 = arith.addf %332, %331 : vector<2x128xf32>
    %334 = arith.divf %332, %333 : vector<2x128xf32>
    %335 = vector.extract_strided_slice %326 {offsets = [0, 128], sizes = [2, 128], strides = [1, 1]} : vector<2x384xf32> to vector<2x128xf32>
    %336 = vector.extract_strided_slice %323 {offsets = [0, 128], sizes = [2, 128], strides = [1, 1]} : vector<2x384xf32> to vector<2x128xf32>
    %337 = arith.addf %335, %336 : vector<2x128xf32>
    %338 = arith.negf %337 : vector<2x128xf32>
    %339 = math.exp %338 : vector<2x128xf32>
    %cst_105 = arith.constant 1.000000e+00 : f32
    %340 = vector.broadcast %cst_105 : f32 to vector<2x128xf32>
    %341 = arith.addf %340, %339 : vector<2x128xf32>
    %342 = arith.divf %340, %341 : vector<2x128xf32>
    %343 = vector.extract_strided_slice %326 {offsets = [0, 256], sizes = [2, 128], strides = [1, 1]} : vector<2x384xf32> to vector<2x128xf32>
    %344 = vector.extract_strided_slice %323 {offsets = [0, 256], sizes = [2, 128], strides = [1, 1]} : vector<2x384xf32> to vector<2x128xf32>
    %345 = arith.mulf %334, %344 : vector<2x128xf32>
    %346 = arith.addf %343, %345 : vector<2x128xf32>
    %347 = math.tanh %346 : vector<2x128xf32>
    %cst_106 = arith.constant 1.000000e+00 : f32
    %348 = vector.broadcast %cst_106 : f32 to vector<2x128xf32>
    %349 = arith.subf %348, %342 : vector<2x128xf32>
    %350 = arith.mulf %349, %347 : vector<2x128xf32>
    %351 = arith.mulf %342, %292 : vector<2x128xf32>
    %352 = arith.addf %350, %351 : vector<2x128xf32>
    %353 = vector.extract_strided_slice %321 {offsets = [0, 384], sizes = [2, 384], strides = [1, 1]} : vector<2x768xf32> to vector<2x384xf32>
    %354 = vector.extract_strided_slice %353 {offsets = [0, 0], sizes = [2, 128], strides = [1, 1]} : vector<2x384xf32> to vector<2x128xf32>
    %355 = vector.extract_strided_slice %325 {offsets = [0, 0], sizes = [2, 128], strides = [1, 1]} : vector<2x384xf32> to vector<2x128xf32>
    %356 = arith.addf %354, %355 : vector<2x128xf32>
    %357 = arith.negf %356 : vector<2x128xf32>
    %358 = math.exp %357 : vector<2x128xf32>
    %cst_107 = arith.constant 1.000000e+00 : f32
    %359 = vector.broadcast %cst_107 : f32 to vector<2x128xf32>
    %360 = arith.addf %359, %358 : vector<2x128xf32>
    %361 = arith.divf %359, %360 : vector<2x128xf32>
    %362 = vector.extract_strided_slice %353 {offsets = [0, 128], sizes = [2, 128], strides = [1, 1]} : vector<2x384xf32> to vector<2x128xf32>
    %363 = vector.extract_strided_slice %325 {offsets = [0, 128], sizes = [2, 128], strides = [1, 1]} : vector<2x384xf32> to vector<2x128xf32>
    %364 = arith.addf %362, %363 : vector<2x128xf32>
    %365 = arith.negf %364 : vector<2x128xf32>
    %366 = math.exp %365 : vector<2x128xf32>
    %cst_108 = arith.constant 1.000000e+00 : f32
    %367 = vector.broadcast %cst_108 : f32 to vector<2x128xf32>
    %368 = arith.addf %367, %366 : vector<2x128xf32>
    %369 = arith.divf %367, %368 : vector<2x128xf32>
    %370 = vector.extract_strided_slice %353 {offsets = [0, 256], sizes = [2, 128], strides = [1, 1]} : vector<2x384xf32> to vector<2x128xf32>
    %371 = vector.extract_strided_slice %325 {offsets = [0, 256], sizes = [2, 128], strides = [1, 1]} : vector<2x384xf32> to vector<2x128xf32>
    %372 = arith.mulf %361, %371 : vector<2x128xf32>
    %373 = arith.addf %370, %372 : vector<2x128xf32>
    %374 = math.tanh %373 : vector<2x128xf32>
    %cst_109 = arith.constant 1.000000e+00 : f32
    %375 = vector.broadcast %cst_109 : f32 to vector<2x128xf32>
    %376 = arith.subf %375, %369 : vector<2x128xf32>
    %377 = arith.mulf %376, %374 : vector<2x128xf32>
    %378 = arith.mulf %369, %319 : vector<2x128xf32>
    %379 = arith.addf %377, %378 : vector<2x128xf32>
    %c5_110 = arith.constant 5 : index
    %c0_111 = arith.constant 0 : index
    %c0_112 = arith.constant 0 : index
    %380 = vector.load %arg9[%c5_110, %c0_111, %c0_112] : memref<8x2x768xf32, #tpu.memory_space<vmem>>, vector<1x2x768xf32>
    %381 = vector.shape_cast %380 : vector<1x2x768xf32> to vector<2x768xf32>
    %cst_113 = arith.constant dense<0.000000e+00> : vector<2x384xf32>
    %382 = tpu.matmul %352, %70, %cst_113 {dimension_numbers = #tpu.dot_dimension_numbers<[1], [0], [0], [1], [0, 0, 1, 1], [], []>} : vector<2x128xf32>, vector<128x384xf32>, vector<2x384xf32> -> vector<2x384xf32>
    %383 = arith.addf %382, %74 : vector<2x384xf32>
    %cst_114 = arith.constant dense<0.000000e+00> : vector<2x384xf32>
    %384 = tpu.matmul %379, %71, %cst_114 {dimension_numbers = #tpu.dot_dimension_numbers<[1], [0], [0], [1], [0, 0, 1, 1], [], []>} : vector<2x128xf32>, vector<128x384xf32>, vector<2x384xf32> -> vector<2x384xf32>
    %385 = arith.addf %384, %77 : vector<2x384xf32>
    %386 = vector.extract_strided_slice %381 {offsets = [0, 0], sizes = [2, 384], strides = [1, 1]} : vector<2x768xf32> to vector<2x384xf32>
    %387 = vector.extract_strided_slice %386 {offsets = [0, 0], sizes = [2, 128], strides = [1, 1]} : vector<2x384xf32> to vector<2x128xf32>
    %388 = vector.extract_strided_slice %383 {offsets = [0, 0], sizes = [2, 128], strides = [1, 1]} : vector<2x384xf32> to vector<2x128xf32>
    %389 = arith.addf %387, %388 : vector<2x128xf32>
    %390 = arith.negf %389 : vector<2x128xf32>
    %391 = math.exp %390 : vector<2x128xf32>
    %cst_115 = arith.constant 1.000000e+00 : f32
    %392 = vector.broadcast %cst_115 : f32 to vector<2x128xf32>
    %393 = arith.addf %392, %391 : vector<2x128xf32>
    %394 = arith.divf %392, %393 : vector<2x128xf32>
    %395 = vector.extract_strided_slice %386 {offsets = [0, 128], sizes = [2, 128], strides = [1, 1]} : vector<2x384xf32> to vector<2x128xf32>
    %396 = vector.extract_strided_slice %383 {offsets = [0, 128], sizes = [2, 128], strides = [1, 1]} : vector<2x384xf32> to vector<2x128xf32>
    %397 = arith.addf %395, %396 : vector<2x128xf32>
    %398 = arith.negf %397 : vector<2x128xf32>
    %399 = math.exp %398 : vector<2x128xf32>
    %cst_116 = arith.constant 1.000000e+00 : f32
    %400 = vector.broadcast %cst_116 : f32 to vector<2x128xf32>
    %401 = arith.addf %400, %399 : vector<2x128xf32>
    %402 = arith.divf %400, %401 : vector<2x128xf32>
    %403 = vector.extract_strided_slice %386 {offsets = [0, 256], sizes = [2, 128], strides = [1, 1]} : vector<2x384xf32> to vector<2x128xf32>
    %404 = vector.extract_strided_slice %383 {offsets = [0, 256], sizes = [2, 128], strides = [1, 1]} : vector<2x384xf32> to vector<2x128xf32>
    %405 = arith.mulf %394, %404 : vector<2x128xf32>
    %406 = arith.addf %403, %405 : vector<2x128xf32>
    %407 = math.tanh %406 : vector<2x128xf32>
    %cst_117 = arith.constant 1.000000e+00 : f32
    %408 = vector.broadcast %cst_117 : f32 to vector<2x128xf32>
    %409 = arith.subf %408, %402 : vector<2x128xf32>
    %410 = arith.mulf %409, %407 : vector<2x128xf32>
    %411 = arith.mulf %402, %352 : vector<2x128xf32>
    %412 = arith.addf %410, %411 : vector<2x128xf32>
    %413 = vector.extract_strided_slice %381 {offsets = [0, 384], sizes = [2, 384], strides = [1, 1]} : vector<2x768xf32> to vector<2x384xf32>
    %414 = vector.extract_strided_slice %413 {offsets = [0, 0], sizes = [2, 128], strides = [1, 1]} : vector<2x384xf32> to vector<2x128xf32>
    %415 = vector.extract_strided_slice %385 {offsets = [0, 0], sizes = [2, 128], strides = [1, 1]} : vector<2x384xf32> to vector<2x128xf32>
    %416 = arith.addf %414, %415 : vector<2x128xf32>
    %417 = arith.negf %416 : vector<2x128xf32>
    %418 = math.exp %417 : vector<2x128xf32>
    %cst_118 = arith.constant 1.000000e+00 : f32
    %419 = vector.broadcast %cst_118 : f32 to vector<2x128xf32>
    %420 = arith.addf %419, %418 : vector<2x128xf32>
    %421 = arith.divf %419, %420 : vector<2x128xf32>
    %422 = vector.extract_strided_slice %413 {offsets = [0, 128], sizes = [2, 128], strides = [1, 1]} : vector<2x384xf32> to vector<2x128xf32>
    %423 = vector.extract_strided_slice %385 {offsets = [0, 128], sizes = [2, 128], strides = [1, 1]} : vector<2x384xf32> to vector<2x128xf32>
    %424 = arith.addf %422, %423 : vector<2x128xf32>
    %425 = arith.negf %424 : vector<2x128xf32>
    %426 = math.exp %425 : vector<2x128xf32>
    %cst_119 = arith.constant 1.000000e+00 : f32
    %427 = vector.broadcast %cst_119 : f32 to vector<2x128xf32>
    %428 = arith.addf %427, %426 : vector<2x128xf32>
    %429 = arith.divf %427, %428 : vector<2x128xf32>
    %430 = vector.extract_strided_slice %413 {offsets = [0, 256], sizes = [2, 128], strides = [1, 1]} : vector<2x384xf32> to vector<2x128xf32>
    %431 = vector.extract_strided_slice %385 {offsets = [0, 256], sizes = [2, 128], strides = [1, 1]} : vector<2x384xf32> to vector<2x128xf32>
    %432 = arith.mulf %421, %431 : vector<2x128xf32>
    %433 = arith.addf %430, %432 : vector<2x128xf32>
    %434 = math.tanh %433 : vector<2x128xf32>
    %cst_120 = arith.constant 1.000000e+00 : f32
    %435 = vector.broadcast %cst_120 : f32 to vector<2x128xf32>
    %436 = arith.subf %435, %429 : vector<2x128xf32>
    %437 = arith.mulf %436, %434 : vector<2x128xf32>
    %438 = arith.mulf %429, %379 : vector<2x128xf32>
    %439 = arith.addf %437, %438 : vector<2x128xf32>
    %c6_121 = arith.constant 6 : index
    %c0_122 = arith.constant 0 : index
    %c0_123 = arith.constant 0 : index
    %440 = vector.load %arg9[%c6_121, %c0_122, %c0_123] : memref<8x2x768xf32, #tpu.memory_space<vmem>>, vector<1x2x768xf32>
    %441 = vector.shape_cast %440 : vector<1x2x768xf32> to vector<2x768xf32>
    %cst_124 = arith.constant dense<0.000000e+00> : vector<2x384xf32>
    %442 = tpu.matmul %412, %70, %cst_124 {dimension_numbers = #tpu.dot_dimension_numbers<[1], [0], [0], [1], [0, 0, 1, 1], [], []>} : vector<2x128xf32>, vector<128x384xf32>, vector<2x384xf32> -> vector<2x384xf32>
    %443 = arith.addf %442, %74 : vector<2x384xf32>
    %cst_125 = arith.constant dense<0.000000e+00> : vector<2x384xf32>
    %444 = tpu.matmul %439, %71, %cst_125 {dimension_numbers = #tpu.dot_dimension_numbers<[1], [0], [0], [1], [0, 0, 1, 1], [], []>} : vector<2x128xf32>, vector<128x384xf32>, vector<2x384xf32> -> vector<2x384xf32>
    %445 = arith.addf %444, %77 : vector<2x384xf32>
    %446 = vector.extract_strided_slice %441 {offsets = [0, 0], sizes = [2, 384], strides = [1, 1]} : vector<2x768xf32> to vector<2x384xf32>
    %447 = vector.extract_strided_slice %446 {offsets = [0, 0], sizes = [2, 128], strides = [1, 1]} : vector<2x384xf32> to vector<2x128xf32>
    %448 = vector.extract_strided_slice %443 {offsets = [0, 0], sizes = [2, 128], strides = [1, 1]} : vector<2x384xf32> to vector<2x128xf32>
    %449 = arith.addf %447, %448 : vector<2x128xf32>
    %450 = arith.negf %449 : vector<2x128xf32>
    %451 = math.exp %450 : vector<2x128xf32>
    %cst_126 = arith.constant 1.000000e+00 : f32
    %452 = vector.broadcast %cst_126 : f32 to vector<2x128xf32>
    %453 = arith.addf %452, %451 : vector<2x128xf32>
    %454 = arith.divf %452, %453 : vector<2x128xf32>
    %455 = vector.extract_strided_slice %446 {offsets = [0, 128], sizes = [2, 128], strides = [1, 1]} : vector<2x384xf32> to vector<2x128xf32>
    %456 = vector.extract_strided_slice %443 {offsets = [0, 128], sizes = [2, 128], strides = [1, 1]} : vector<2x384xf32> to vector<2x128xf32>
    %457 = arith.addf %455, %456 : vector<2x128xf32>
    %458 = arith.negf %457 : vector<2x128xf32>
    %459 = math.exp %458 : vector<2x128xf32>
    %cst_127 = arith.constant 1.000000e+00 : f32
    %460 = vector.broadcast %cst_127 : f32 to vector<2x128xf32>
    %461 = arith.addf %460, %459 : vector<2x128xf32>
    %462 = arith.divf %460, %461 : vector<2x128xf32>
    %463 = vector.extract_strided_slice %446 {offsets = [0, 256], sizes = [2, 128], strides = [1, 1]} : vector<2x384xf32> to vector<2x128xf32>
    %464 = vector.extract_strided_slice %443 {offsets = [0, 256], sizes = [2, 128], strides = [1, 1]} : vector<2x384xf32> to vector<2x128xf32>
    %465 = arith.mulf %454, %464 : vector<2x128xf32>
    %466 = arith.addf %463, %465 : vector<2x128xf32>
    %467 = math.tanh %466 : vector<2x128xf32>
    %cst_128 = arith.constant 1.000000e+00 : f32
    %468 = vector.broadcast %cst_128 : f32 to vector<2x128xf32>
    %469 = arith.subf %468, %462 : vector<2x128xf32>
    %470 = arith.mulf %469, %467 : vector<2x128xf32>
    %471 = arith.mulf %462, %412 : vector<2x128xf32>
    %472 = arith.addf %470, %471 : vector<2x128xf32>
    %473 = vector.extract_strided_slice %441 {offsets = [0, 384], sizes = [2, 384], strides = [1, 1]} : vector<2x768xf32> to vector<2x384xf32>
    %474 = vector.extract_strided_slice %473 {offsets = [0, 0], sizes = [2, 128], strides = [1, 1]} : vector<2x384xf32> to vector<2x128xf32>
    %475 = vector.extract_strided_slice %445 {offsets = [0, 0], sizes = [2, 128], strides = [1, 1]} : vector<2x384xf32> to vector<2x128xf32>
    %476 = arith.addf %474, %475 : vector<2x128xf32>
    %477 = arith.negf %476 : vector<2x128xf32>
    %478 = math.exp %477 : vector<2x128xf32>
    %cst_129 = arith.constant 1.000000e+00 : f32
    %479 = vector.broadcast %cst_129 : f32 to vector<2x128xf32>
    %480 = arith.addf %479, %478 : vector<2x128xf32>
    %481 = arith.divf %479, %480 : vector<2x128xf32>
    %482 = vector.extract_strided_slice %473 {offsets = [0, 128], sizes = [2, 128], strides = [1, 1]} : vector<2x384xf32> to vector<2x128xf32>
    %483 = vector.extract_strided_slice %445 {offsets = [0, 128], sizes = [2, 128], strides = [1, 1]} : vector<2x384xf32> to vector<2x128xf32>
    %484 = arith.addf %482, %483 : vector<2x128xf32>
    %485 = arith.negf %484 : vector<2x128xf32>
    %486 = math.exp %485 : vector<2x128xf32>
    %cst_130 = arith.constant 1.000000e+00 : f32
    %487 = vector.broadcast %cst_130 : f32 to vector<2x128xf32>
    %488 = arith.addf %487, %486 : vector<2x128xf32>
    %489 = arith.divf %487, %488 : vector<2x128xf32>
    %490 = vector.extract_strided_slice %473 {offsets = [0, 256], sizes = [2, 128], strides = [1, 1]} : vector<2x384xf32> to vector<2x128xf32>
    %491 = vector.extract_strided_slice %445 {offsets = [0, 256], sizes = [2, 128], strides = [1, 1]} : vector<2x384xf32> to vector<2x128xf32>
    %492 = arith.mulf %481, %491 : vector<2x128xf32>
    %493 = arith.addf %490, %492 : vector<2x128xf32>
    %494 = math.tanh %493 : vector<2x128xf32>
    %cst_131 = arith.constant 1.000000e+00 : f32
    %495 = vector.broadcast %cst_131 : f32 to vector<2x128xf32>
    %496 = arith.subf %495, %489 : vector<2x128xf32>
    %497 = arith.mulf %496, %494 : vector<2x128xf32>
    %498 = arith.mulf %489, %439 : vector<2x128xf32>
    %499 = arith.addf %497, %498 : vector<2x128xf32>
    %c7_132 = arith.constant 7 : index
    %c0_133 = arith.constant 0 : index
    %c0_134 = arith.constant 0 : index
    %500 = vector.load %arg9[%c7_132, %c0_133, %c0_134] : memref<8x2x768xf32, #tpu.memory_space<vmem>>, vector<1x2x768xf32>
    %501 = vector.shape_cast %500 : vector<1x2x768xf32> to vector<2x768xf32>
    %cst_135 = arith.constant dense<0.000000e+00> : vector<2x384xf32>
    %502 = tpu.matmul %472, %70, %cst_135 {dimension_numbers = #tpu.dot_dimension_numbers<[1], [0], [0], [1], [0, 0, 1, 1], [], []>} : vector<2x128xf32>, vector<128x384xf32>, vector<2x384xf32> -> vector<2x384xf32>
    %503 = arith.addf %502, %74 : vector<2x384xf32>
    %cst_136 = arith.constant dense<0.000000e+00> : vector<2x384xf32>
    %504 = tpu.matmul %499, %71, %cst_136 {dimension_numbers = #tpu.dot_dimension_numbers<[1], [0], [0], [1], [0, 0, 1, 1], [], []>} : vector<2x128xf32>, vector<128x384xf32>, vector<2x384xf32> -> vector<2x384xf32>
    %505 = arith.addf %504, %77 : vector<2x384xf32>
    %506 = vector.extract_strided_slice %501 {offsets = [0, 0], sizes = [2, 384], strides = [1, 1]} : vector<2x768xf32> to vector<2x384xf32>
    %507 = vector.extract_strided_slice %506 {offsets = [0, 0], sizes = [2, 128], strides = [1, 1]} : vector<2x384xf32> to vector<2x128xf32>
    %508 = vector.extract_strided_slice %503 {offsets = [0, 0], sizes = [2, 128], strides = [1, 1]} : vector<2x384xf32> to vector<2x128xf32>
    %509 = arith.addf %507, %508 : vector<2x128xf32>
    %510 = arith.negf %509 : vector<2x128xf32>
    %511 = math.exp %510 : vector<2x128xf32>
    %cst_137 = arith.constant 1.000000e+00 : f32
    %512 = vector.broadcast %cst_137 : f32 to vector<2x128xf32>
    %513 = arith.addf %512, %511 : vector<2x128xf32>
    %514 = arith.divf %512, %513 : vector<2x128xf32>
    %515 = vector.extract_strided_slice %506 {offsets = [0, 128], sizes = [2, 128], strides = [1, 1]} : vector<2x384xf32> to vector<2x128xf32>
    %516 = vector.extract_strided_slice %503 {offsets = [0, 128], sizes = [2, 128], strides = [1, 1]} : vector<2x384xf32> to vector<2x128xf32>
    %517 = arith.addf %515, %516 : vector<2x128xf32>
    %518 = arith.negf %517 : vector<2x128xf32>
    %519 = math.exp %518 : vector<2x128xf32>
    %cst_138 = arith.constant 1.000000e+00 : f32
    %520 = vector.broadcast %cst_138 : f32 to vector<2x128xf32>
    %521 = arith.addf %520, %519 : vector<2x128xf32>
    %522 = arith.divf %520, %521 : vector<2x128xf32>
    %523 = vector.extract_strided_slice %506 {offsets = [0, 256], sizes = [2, 128], strides = [1, 1]} : vector<2x384xf32> to vector<2x128xf32>
    %524 = vector.extract_strided_slice %503 {offsets = [0, 256], sizes = [2, 128], strides = [1, 1]} : vector<2x384xf32> to vector<2x128xf32>
    %525 = arith.mulf %514, %524 : vector<2x128xf32>
    %526 = arith.addf %523, %525 : vector<2x128xf32>
    %527 = math.tanh %526 : vector<2x128xf32>
    %cst_139 = arith.constant 1.000000e+00 : f32
    %528 = vector.broadcast %cst_139 : f32 to vector<2x128xf32>
    %529 = arith.subf %528, %522 : vector<2x128xf32>
    %530 = arith.mulf %529, %527 : vector<2x128xf32>
    %531 = arith.mulf %522, %472 : vector<2x128xf32>
    %532 = arith.addf %530, %531 : vector<2x128xf32>
    %533 = vector.extract_strided_slice %501 {offsets = [0, 384], sizes = [2, 384], strides = [1, 1]} : vector<2x768xf32> to vector<2x384xf32>
    %534 = vector.extract_strided_slice %533 {offsets = [0, 0], sizes = [2, 128], strides = [1, 1]} : vector<2x384xf32> to vector<2x128xf32>
    %535 = vector.extract_strided_slice %505 {offsets = [0, 0], sizes = [2, 128], strides = [1, 1]} : vector<2x384xf32> to vector<2x128xf32>
    %536 = arith.addf %534, %535 : vector<2x128xf32>
    %537 = arith.negf %536 : vector<2x128xf32>
    %538 = math.exp %537 : vector<2x128xf32>
    %cst_140 = arith.constant 1.000000e+00 : f32
    %539 = vector.broadcast %cst_140 : f32 to vector<2x128xf32>
    %540 = arith.addf %539, %538 : vector<2x128xf32>
    %541 = arith.divf %539, %540 : vector<2x128xf32>
    %542 = vector.extract_strided_slice %533 {offsets = [0, 128], sizes = [2, 128], strides = [1, 1]} : vector<2x384xf32> to vector<2x128xf32>
    %543 = vector.extract_strided_slice %505 {offsets = [0, 128], sizes = [2, 128], strides = [1, 1]} : vector<2x384xf32> to vector<2x128xf32>
    %544 = arith.addf %542, %543 : vector<2x128xf32>
    %545 = arith.negf %544 : vector<2x128xf32>
    %546 = math.exp %545 : vector<2x128xf32>
    %cst_141 = arith.constant 1.000000e+00 : f32
    %547 = vector.broadcast %cst_141 : f32 to vector<2x128xf32>
    %548 = arith.addf %547, %546 : vector<2x128xf32>
    %549 = arith.divf %547, %548 : vector<2x128xf32>
    %550 = vector.extract_strided_slice %533 {offsets = [0, 256], sizes = [2, 128], strides = [1, 1]} : vector<2x384xf32> to vector<2x128xf32>
    %551 = vector.extract_strided_slice %505 {offsets = [0, 256], sizes = [2, 128], strides = [1, 1]} : vector<2x384xf32> to vector<2x128xf32>
    %552 = arith.mulf %541, %551 : vector<2x128xf32>
    %553 = arith.addf %550, %552 : vector<2x128xf32>
    %554 = math.tanh %553 : vector<2x128xf32>
    %cst_142 = arith.constant 1.000000e+00 : f32
    %555 = vector.broadcast %cst_142 : f32 to vector<2x128xf32>
    %556 = arith.subf %555, %549 : vector<2x128xf32>
    %557 = arith.mulf %556, %554 : vector<2x128xf32>
    %558 = arith.mulf %549, %499 : vector<2x128xf32>
    %559 = arith.addf %557, %558 : vector<2x128xf32>
    %560 = vector.extract_strided_slice %112 {offsets = [0, 0], sizes = [2, 16], strides = [1, 1]} : vector<2x128xf32> to vector<2x16xf32>
    %561 = vector.extract_strided_slice %559 {offsets = [0, 0], sizes = [2, 16], strides = [1, 1]} : vector<2x128xf32> to vector<2x16xf32>
    %562 = vector.extract_strided_slice %172 {offsets = [0, 0], sizes = [2, 16], strides = [1, 1]} : vector<2x128xf32> to vector<2x16xf32>
    %563 = vector.extract_strided_slice %499 {offsets = [0, 0], sizes = [2, 16], strides = [1, 1]} : vector<2x128xf32> to vector<2x16xf32>
    %564 = vector.extract_strided_slice %232 {offsets = [0, 0], sizes = [2, 16], strides = [1, 1]} : vector<2x128xf32> to vector<2x16xf32>
    %565 = vector.extract_strided_slice %439 {offsets = [0, 0], sizes = [2, 16], strides = [1, 1]} : vector<2x128xf32> to vector<2x16xf32>
    %566 = vector.extract_strided_slice %292 {offsets = [0, 0], sizes = [2, 16], strides = [1, 1]} : vector<2x128xf32> to vector<2x16xf32>
    %567 = vector.extract_strided_slice %379 {offsets = [0, 0], sizes = [2, 16], strides = [1, 1]} : vector<2x128xf32> to vector<2x16xf32>
    %568 = vector.extract_strided_slice %352 {offsets = [0, 0], sizes = [2, 16], strides = [1, 1]} : vector<2x128xf32> to vector<2x16xf32>
    %569 = vector.extract_strided_slice %319 {offsets = [0, 0], sizes = [2, 16], strides = [1, 1]} : vector<2x128xf32> to vector<2x16xf32>
    %570 = vector.extract_strided_slice %412 {offsets = [0, 0], sizes = [2, 16], strides = [1, 1]} : vector<2x128xf32> to vector<2x16xf32>
    %571 = vector.extract_strided_slice %259 {offsets = [0, 0], sizes = [2, 16], strides = [1, 1]} : vector<2x128xf32> to vector<2x16xf32>
    %572 = vector.extract_strided_slice %472 {offsets = [0, 0], sizes = [2, 16], strides = [1, 1]} : vector<2x128xf32> to vector<2x16xf32>
    %573 = vector.extract_strided_slice %199 {offsets = [0, 0], sizes = [2, 16], strides = [1, 1]} : vector<2x128xf32> to vector<2x16xf32>
    %574 = vector.extract_strided_slice %532 {offsets = [0, 0], sizes = [2, 16], strides = [1, 1]} : vector<2x128xf32> to vector<2x16xf32>
    %575 = vector.extract_strided_slice %139 {offsets = [0, 0], sizes = [2, 16], strides = [1, 1]} : vector<2x128xf32> to vector<2x16xf32>
    %576 = tpu.concatenate %560, %561, %562, %563, %564, %565, %566, %567, %568, %569, %570, %571, %572, %573, %574, %575 in 1 : vector<2x16xf32>, vector<2x16xf32>, vector<2x16xf32>, vector<2x16xf32>, vector<2x16xf32>, vector<2x16xf32>, vector<2x16xf32>, vector<2x16xf32>, vector<2x16xf32>, vector<2x16xf32>, vector<2x16xf32>, vector<2x16xf32>, vector<2x16xf32>, vector<2x16xf32>, vector<2x16xf32>, vector<2x16xf32> -> vector<2x256xf32>
    %c0_143 = arith.constant 0 : index
    %c0_144 = arith.constant 0 : index
    %577 = vector.load %arg7[%c0_143, %c0_144] : memref<2x256xf32, #tpu.memory_space<vmem>>, vector<2x256xf32>
    tpu.vector_store %arg7[%c0_143, %c0_144], %576 {strides = array<i32>} : memref<2x256xf32, #tpu.memory_space<vmem>>, vector<2x256xf32>,
    %578 = vector.extract_strided_slice %532 {offsets = [0, 0], sizes = [2, 16], strides = [1, 1]} : vector<2x128xf32> to vector<2x16xf32>
    %579 = vector.extract_strided_slice %559 {offsets = [0, 0], sizes = [2, 16], strides = [1, 1]} : vector<2x128xf32> to vector<2x16xf32>
    %580 = tpu.concatenate %578, %579 in 1 : vector<2x16xf32>, vector<2x16xf32> -> vector<2x32xf32>
    %c0_145 = arith.constant 0 : index
    %c0_146 = arith.constant 0 : index
    %581 = vector.load %arg8[%c0_145, %c0_146] : memref<2x32xf32, #tpu.memory_space<vmem>>, vector<2x32xf32>
    tpu.vector_store %arg8[%c0_145, %c0_146], %580 {strides = array<i32>} : memref<2x32xf32, #tpu.memory_space<vmem>>, vector<2x32xf32>,
    return
  }
}

</mosaic_0001>

<llo_original>
// kernel: encoder_forward.1
$region0: #{encoder_forward.1}
  #allocation0 [shape = 'u32[]', space=smem, size = 0x4, offset = 0x4, fixed_abs, tag = 'smem constant byte address 0x4 - core index']
  #allocation1 [shape = 'u32[144,128]{1,0:T(1,128)}', space=vmem, size = 0x12000, scoped, tag = 'internal scratch']
  #allocation2 [shape = 'f32[8,2,768]{2,1,0:T(2,128)}', space=vmem, size = 0xc000, scoped, tag = 'scratch operand']
  %s0 = inlined_call_operand.vmem [shape: f32[16,4], index: 0, kind: input, shape index: {}]
  %s1 = inlined_call_operand.vmem [shape: f32[4,768], index: 1, kind: input, shape index: {}]
  %s2 = inlined_call_operand.vmem [shape: f32[1,768], index: 2, kind: input, shape index: {}]
  %s3 = inlined_call_operand.hbm [shape: f32[128,384], index: 3, kind: input, shape index: {}]
  %s4 = inlined_call_operand.hbm [shape: f32[128,384], index: 4, kind: input, shape index: {}]
  %s5 = inlined_call_operand.vmem [shape: f32[1,384], index: 5, kind: input, shape index: {}]
  %s6 = inlined_call_operand.vmem [shape: f32[1,384], index: 6, kind: input, shape index: {}]
  %s7 = inlined_call_operand.vmem [shape: f32[2,256], index: 7, kind: output, shape index: {0}]
  %s8 = inlined_call_operand.hbm [shape: f32[2,32], index: 8, kind: output, shape index: {1}]
  %9 = xla_tuple %s7, %s8
  %s10 = sld [smem:[#allocation0]]
  $region54: #{encoder_forward.1} parent=0
    _
  %s12 = ssub.s32 1, %s10
  %s13 = scalar_select 0, %s12, %s10
  $region1: #{encoder_forward.1} parent=0
    #allocation3 [shape = 'u8[196608]{0}', space=vmem, size = 0x30000, scoped, tag = 'input window, operand 3, single buffered']
    #allocation4 [shape = 's32[1]{0}', space=sflag, size = 0x4, scoped, tag = 'scoped memory for encoder_forward.1']
    #allocation5 [shape = 's32[1]{0}', space=sflag, size = 0x4, scoped, tag = 'scoped memory for encoder_forward.1']
    #allocation6 [shape = 'u8[196608]{0}', space=vmem, size = 0x30000, scoped, tag = 'input window, operand 4, single buffered']
    #allocation7 [shape = 's32[1]{0}', space=sflag, size = 0x4, scoped, tag = 'scoped memory for encoder_forward.1']
    #allocation8 [shape = 'u8[1024]{0}', space=vmem, size = 0x400, scoped, tag = 'output window, operand 1, single buffered']
    %14 = vsyncpa [#allocation4], 0
    %15 = vsyncpa [#allocation7], 0
    %16 = vsyncpa [#allocation5], 0
    // Predicated region
    $region2: #{encoder_forward.1} parent=1 // pred_check
      _
    $region3: #{encoder_forward.1} parent=1 // pred_check_branch
      %18 = sbr.rel (0) target = $region5
    $region4: #{encoder_forward.1} parent=1 // pred_region
      _
    $region5: #{encoder_forward.1} parent=1 // pred_fallthru
      _
    // Predicated region
    $region6: #{encoder_forward.1} parent=1 // pred_check
      _
    $region7: #{encoder_forward.1} parent=1 // pred_check_branch
      %20 = sbr.rel (0) target = $region9
    $region8: #{encoder_forward.1} parent=1 // pred_region
      _
    $region9: #{encoder_forward.1} parent=1 // pred_fallthru
      _
    // Predicated region
    $region10: #{encoder_forward.1} parent=1 // pred_check
      _
    $region11: #{encoder_forward.1} parent=1 // pred_check_branch
      %22 = sbr.rel (0) target = $region13
    $region12: #{encoder_forward.1} parent=1 // pred_region
      _
    $region13: #{encoder_forward.1} parent=1 // pred_fallthru
      _
    // Predicated region
    $region14: #{encoder_forward.1} parent=1 // pred_check
      _
    $region15: #{encoder_forward.1} parent=1 // pred_check_branch
      %24 = sbr.rel (0) target = $region17
    $region16: #{encoder_forward.1} parent=1 // pred_region
      %s26 = ssub.s32 6144, 6144
      %27 = vsyncadd [#allocation4], %s26
      %s28 = sshll.u32 [#allocation3], 4
      %s29 = int_to_ptr.vmem [resolvable:$true] %s28
      %34 = dma.hbm_to_vmem [thread:$0]  %s3, 6144, %s29, [#allocation4], 384, 384, 24
    $region17: #{encoder_forward.1} parent=1 // pred_fallthru
      _
    // Predicated region
    $region18: #{encoder_forward.1} parent=1 // pred_check
      _
    $region19: #{encoder_forward.1} parent=1 // pred_check_branch
      %36 = sbr.rel (0) target = $region21
    $region20: #{encoder_forward.1} parent=1 // pred_region
      %s38 = ssub.s32 6144, 6144
      %39 = vsyncadd [#allocation7], %s38
      %s40 = sshll.u32 [#allocation6], 4
      %s41 = int_to_ptr.vmem [resolvable:$true] %s40
      %46 = dma.hbm_to_vmem [thread:$0]  %s4, 6144, %s41, [#allocation7], 384, 384, 24
    $region21: #{encoder_forward.1} parent=1 // pred_fallthru
      _
    // Predicated region
    $region22: #{encoder_forward.1} parent=1 // pred_check
      _
    $region23: #{encoder_forward.1} parent=1 // pred_check_branch
      %48 = sbr.rel (0) target = $region25
    $region24: #{encoder_forward.1} parent=1 // pred_region
      _
    $region25: #{encoder_forward.1} parent=1 // pred_fallthru
      _
    // Predicated region
    $region26: #{encoder_forward.1} parent=1 // pred_check
      _
    $region27: #{encoder_forward.1} parent=1 // pred_check_branch
      %50 = sbr.rel (0) target = $region29
    $region28: #{encoder_forward.1} parent=1 // pred_region
      _
    $region29: #{encoder_forward.1} parent=1 // pred_fallthru
      _
    // Predicated region
    $region30: #{encoder_forward.1} parent=1 // pred_check
      _
    $region31: #{encoder_forward.1} parent=1 // pred_check_branch
      %52 = sbr.rel (0) target = $region33
    $region32: #{encoder_forward.1} parent=1 // pred_region
      %53 = dma.done [#allocation4], 6144
    $region33: #{encoder_forward.1} parent=1 // pred_fallthru
      _
    // Predicated region
    $region34: #{encoder_forward.1} parent=1 // pred_check
      _
    $region35: #{encoder_forward.1} parent=1 // pred_check_branch
      %55 = sbr.rel (0) target = $region37
    $region36: #{encoder_forward.1} parent=1 // pred_region
      %56 = dma.done [#allocation7], 6144
    $region37: #{encoder_forward.1} parent=1 // pred_fallthru
      _
    %v57 = vld [vmem:[%s0] sm:$0xff]
    %v58 = vld [vmem:[%s0 + $0x8] sm:$0xff]
    %v59 = vld [vmem:[%s1] sm:$0xff]
    %v60 = vld [vmem:[%s1 + $0x8] sm:$0xff]
    %v61 = vld [vmem:[%s1 + $0x10] sm:$0xff]
    %v62 = vld [vmem:[%s2] sm:$0x3f]
    %v64 = vlaneseq
    %v65 = vshrl.u32 %v64, 7
    %v66 = vsub.s32 0, %v65
    %v67 = vrot.slane %v62, %v66
    %v68 = vlaneseq
    %v69 = vshrl.u32 %v68, 7
    %v70 = vsub.s32 1, %v69
    %v71 = vrot.slane %v62, %v70
    %v72 = vlaneseq
    %v73 = vshrl.u32 %v72, 7
    %v74 = vsub.s32 2, %v73
    %v75 = vrot.slane %v62, %v74
    %v76 = vlaneseq
    %v77 = vshrl.u32 %v76, 7
    %v78 = vsub.s32 3, %v77
    %v79 = vrot.slane %v62, %v78
    %v80 = vlaneseq
    %v81 = vshrl.u32 %v80, 7
    %v82 = vsub.s32 4, %v81
    %v83 = vrot.slane %v62, %v82
    %v84 = vlaneseq
    %v85 = vshrl.u32 %v84, 7
    %v86 = vsub.s32 5, %v85
    %v87 = vrot.slane %v62, %v86
    %v97 = vcombine.high %v59, %v59
    %v98 = vcombine.high %v60, %v60
    %v99 = vcombine.high %v61, %v61
    %vm100 = vcmask 31744
    %v102 = vsel %vm100, %v57, 0
    %v105 = vsel %vm100, %v58, 0
    %vm107 = vcmask 1043456
    %v108 = vsel %vm107, %v59, 0
    %v110 = vsel %vm107, %v97, 0
    %v112 = vsel %vm107, %v60, 0
    %v114 = vsel %vm107, %v98, 0
    %v116 = vsel %vm107, %v61, 0
    %v118 = vsel %vm107, %v99, 0
    %120 = vmatprep.subr.mxu0 %v110
    %121 = vmatpush1.msra.mxu0 %v108
    %122 = vmatprep.subr.mxu0 0.0
    %123 = vmatpush1.msra.mxu0 0.0
    %124 = vmatprep.subr.mxu0 0.0
    %125 = vmatpush1.msra.mxu0 0.0
    %126 = vmatprep.subr.mxu0 0.0
    %127 = vmatpush1.msra.mxu0 0.0
    %128 = vmatprep.subr.mxu0 0.0
    %129 = vmatpush1.msra.mxu0 0.0
    %130 = vmatprep.subr.mxu0 0.0
    %131 = vmatpush1.msra.mxu0 0.0
    %132 = vmatprep.subr.mxu0 0.0
    %133 = vmatpush1.msra.mxu0 0.0
    %134 = vmatprep.subr.mxu0 0.0
    %135 = vmatpush1.msra.mxu0 0.0
    %136 = vmatprep.subr.mxu0 0.0
    %137 = vmatpush1.msra.mxu0 0.0
    %138 = vmatprep.subr.mxu0 0.0
    %139 = vmatpush1.msra.mxu0 0.0
    %140 = vmatprep.subr.mxu0 0.0
    %141 = vmatpush1.msra.mxu0 0.0
    %142 = vmatprep.subr.mxu0 0.0
    %143 = vmatpush1.msra.mxu0 0.0
    %144 = vmatprep.subr.mxu0 0.0
    %145 = vmatpush1.msra.mxu0 0.0
    %146 = vmatprep.subr.mxu0 0.0
    %147 = vmatpush1.msra.mxu0 0.0
    %148 = vmatprep.subr.mxu0 0.0
    %149 = vmatpush1.msra.mxu0 0.0
    %150 = vmatprep.subr.mxu0 0.0
    %151 = vmatpush1.msra.mxu0 0.0
    %152 = vmatprep.subr.mxu0 0.0
    %153 = vmatpush1.msra.mxu0 0.0
    %154 = vmatprep.subr.mxu0 0.0
    %155 = vmatpush1.msra.mxu0 0.0
    %156 = vmatprep.subr.mxu0 0.0
    %157 = vmatpush1.msra.mxu0 0.0
    %158 = vmatprep.subr.mxu0 0.0
    %159 = vmatpush1.msra.mxu0 0.0
    %160 = vmatprep.subr.mxu0 0.0
    %161 = vmatpush1.msra.mxu0 0.0
    %162 = vmatprep.subr.mxu0 0.0
    %163 = vmatpush1.msra.mxu0 0.0
    %164 = vmatprep.subr.mxu0 0.0
    %165 = vmatpush1.msra.mxu0 0.0
    %166 = vmatprep.subr.mxu0 0.0
    %167 = vmatpush1.msra.mxu0 0.0
    %168 = vmatprep.subr.mxu0 0.0
    %169 = vmatpush1.msra.mxu0 0.0
    %170 = vmatprep.subr.mxu0 0.0
    %171 = vmatpush1.msra.mxu0 0.0
    %172 = vmatprep.subr.mxu0 0.0
    %173 = vmatpush1.msra.mxu0 0.0
    %174 = vmatprep.subr.mxu0 0.0
    %175 = vmatpush1.msra.mxu0 0.0
    %176 = vmatprep.subr.mxu0 0.0
    %177 = vmatpush1.msra.mxu0 0.0
    %178 = vmatprep.subr.mxu0 0.0
    %179 = vmatpush1.msra.mxu0 0.0
    %180 = vmatprep.subr.mxu0 0.0
    %181 = vmatpush1.msra.mxu0 0.0
    %182 = vmatprep.subr.mxu0 0.0
    %183 = vmatpush1.msra.mxu0 0.0
    %184 = vmatprep.mubr.f32.mxu0 0.0
    %185 = vmatmul.mubr.f32.gmra.mrb[0].mxu0 %v102
    %v186 = vpop.f32.mrb[0].mxu0
    %v187 = vadd.f32 %v67, %v186
    %v188 = vpop.f32.mrb[0].mxu0
    %v189 = vadd.f32 %v71, %v188
    %190 = vmatprep.mubr.f32.mxu0 0.0
    %191 = vmatmul.mubr.f32.gmra.mrb[0].mxu0 %v105
    %v192 = vpop.f32.mrb[0].mxu0
    %v193 = vadd.f32 %v67, %v192
    %v194 = vpop.f32.mrb[0].mxu0
    %v195 = vadd.f32 %v71, %v194
    %196 = vdwg.mxu0
    %197 = vmatprep.subr.mxu0 %v114
    %198 = vmatpush1.msra.mxu0 %v112
    %199 = vmatprep.subr.mxu0 0.0
    %200 = vmatpush1.msra.mxu0 0.0
    %201 = vmatprep.subr.mxu0 0.0
    %202 = vmatpush1.msra.mxu0 0.0
    %203 = vmatprep.subr.mxu0 0.0
    %204 = vmatpush1.msra.mxu0 0.0
    %205 = vmatprep.subr.mxu0 0.0
    %206 = vmatpush1.msra.mxu0 0.0
    %207 = vmatprep.subr.mxu0 0.0
    %208 = vmatpush1.msra.mxu0 0.0
    %209 = vmatprep.subr.mxu0 0.0
    %210 = vmatpush1.msra.mxu0 0.0
    %211 = vmatprep.subr.mxu0 0.0
    %212 = vmatpush1.msra.mxu0 0.0
    %213 = vmatprep.subr.mxu0 0.0
    %214 = vmatpush1.msra.mxu0 0.0
    %215 = vmatprep.subr.mxu0 0.0
    %216 = vmatpush1.msra.mxu0 0.0
    %217 = vmatprep.subr.mxu0 0.0
    %218 = vmatpush1.msra.mxu0 0.0
    %219 = vmatprep.subr.mxu0 0.0
    %220 = vmatpush1.msra.mxu0 0.0
    %221 = vmatprep.subr.mxu0 0.0
    %222 = vmatpush1.msra.mxu0 0.0
    %223 = vmatprep.subr.mxu0 0.0
    %224 = vmatpush1.msra.mxu0 0.0
    %225 = vmatprep.subr.mxu0 0.0
    %226 = vmatpush1.msra.mxu0 0.0
    %227 = vmatprep.subr.mxu0 0.0
    %228 = vmatpush1.msra.mxu0 0.0
    %229 = vmatprep.subr.mxu0 0.0
    %230 = vmatpush1.msra.mxu0 0.0
    %231 = vmatprep.subr.mxu0 0.0
    %232 = vmatpush1.msra.mxu0 0.0
    %233 = vmatprep.subr.mxu0 0.0
    %234 = vmatpush1.msra.mxu0 0.0
    %235 = vmatprep.subr.mxu0 0.0
    %236 = vmatpush1.msra.mxu0 0.0
    %237 = vmatprep.subr.mxu0 0.0
    %238 = vmatpush1.msra.mxu0 0.0
    %239 = vmatprep.subr.mxu0 0.0
    %240 = vmatpush1.msra.mxu0 0.0
    %241 = vmatprep.subr.mxu0 0.0
    %242 = vmatpush1.msra.mxu0 0.0
    %243 = vmatprep.subr.mxu0 0.0
    %244 = vmatpush1.msra.mxu0 0.0
    %245 = vmatprep.subr.mxu0 0.0
    %246 = vmatpush1.msra.mxu0 0.0
    %247 = vmatprep.subr.mxu0 0.0
    %248 = vmatpush1.msra.mxu0 0.0
    %249 = vmatprep.subr.mxu0 0.0
    %250 = vmatpush1.msra.mxu0 0.0
    %251 = vmatprep.subr.mxu0 0.0
    %252 = vmatpush1.msra.mxu0 0.0
    %253 = vmatprep.subr.mxu0 0.0
    %254 = vmatpush1.msra.mxu0 0.0
    %255 = vmatprep.subr.mxu0 0.0
    %256 = vmatpush1.msra.mxu0 0.0
    %257 = vmatprep.subr.mxu0 0.0
    %258 = vmatpush1.msra.mxu0 0.0
    %259 = vmatprep.subr.mxu0 0.0
    %260 = vmatpush1.msra.mxu0 0.0
    %261 = vmatprep.mubr.f32.mxu0 0.0
    %262 = vmatmul.mubr.f32.gmra.mrb[0].mxu0 %v102
    %v263 = vpop.f32.mrb[0].mxu0
    %v264 = vadd.f32 %v75, %v263
    %v265 = vpop.f32.mrb[0].mxu0
    %v266 = vadd.f32 %v79, %v265
    %267 = vmatprep.mubr.f32.mxu0 0.0
    %268 = vmatmul.mubr.f32.gmra.mrb[0].mxu0 %v105
    %v269 = vpop.f32.mrb[0].mxu0
    %v270 = vadd.f32 %v75, %v269
    %v271 = vpop.f32.mrb[0].mxu0
    %v272 = vadd.f32 %v79, %v271
    %273 = vdwg.mxu0
    %274 = vmatprep.subr.mxu0 %v118
    %275 = vmatpush1.msra.mxu0 %v116
    %276 = vmatprep.subr.mxu0 0.0
    %277 = vmatpush1.msra.mxu0 0.0
    %278 = vmatprep.subr.mxu0 0.0
    %279 = vmatpush1.msra.mxu0 0.0
    %280 = vmatprep.subr.mxu0 0.0
    %281 = vmatpush1.msra.mxu0 0.0
    %282 = vmatprep.subr.mxu0 0.0
    %283 = vmatpush1.msra.mxu0 0.0
    %284 = vmatprep.subr.mxu0 0.0
    %285 = vmatpush1.msra.mxu0 0.0
    %286 = vmatprep.subr.mxu0 0.0
    %287 = vmatpush1.msra.mxu0 0.0
    %288 = vmatprep.subr.mxu0 0.0
    %289 = vmatpush1.msra.mxu0 0.0
    %290 = vmatprep.subr.mxu0 0.0
    %291 = vmatpush1.msra.mxu0 0.0
    %292 = vmatprep.subr.mxu0 0.0
    %293 = vmatpush1.msra.mxu0 0.0
    %294 = vmatprep.subr.mxu0 0.0
    %295 = vmatpush1.msra.mxu0 0.0
    %296 = vmatprep.subr.mxu0 0.0
    %297 = vmatpush1.msra.mxu0 0.0
    %298 = vmatprep.subr.mxu0 0.0
    %299 = vmatpush1.msra.mxu0 0.0
    %300 = vmatprep.subr.mxu0 0.0
    %301 = vmatpush1.msra.mxu0 0.0
    %302 = vmatprep.subr.mxu0 0.0
    %303 = vmatpush1.msra.mxu0 0.0
    %304 = vmatprep.subr.mxu0 0.0
    %305 = vmatpush1.msra.mxu0 0.0
    %306 = vmatprep.subr.mxu0 0.0
    %307 = vmatpush1.msra.mxu0 0.0
    %308 = vmatprep.subr.mxu0 0.0
    %309 = vmatpush1.msra.mxu0 0.0
    %310 = vmatprep.subr.mxu0 0.0
    %311 = vmatpush1.msra.mxu0 0.0
    %312 = vmatprep.subr.mxu0 0.0
    %313 = vmatpush1.msra.mxu0 0.0
    %314 = vmatprep.subr.mxu0 0.0
    %315 = vmatpush1.msra.mxu0 0.0
    %316 = vmatprep.subr.mxu0 0.0
    %317 = vmatpush1.msra.mxu0 0.0
    %318 = vmatprep.subr.mxu0 0.0
    %319 = vmatpush1.msra.mxu0 0.0
    %320 = vmatprep.subr.mxu0 0.0
    %321 = vmatpush1.msra.mxu0 0.0
    %322 = vmatprep.subr.mxu0 0.0
    %323 = vmatpush1.msra.mxu0 0.0
    %324 = vmatprep.subr.mxu0 0.0
    %325 = vmatpush1.msra.mxu0 0.0
    %326 = vmatprep.subr.mxu0 0.0
    %327 = vmatpush1.msra.mxu0 0.0
    %328 = vmatprep.subr.mxu0 0.0
    %329 = vmatpush1.msra.mxu0 0.0
    %330 = vmatprep.subr.mxu0 0.0
    %331 = vmatpush1.msra.mxu0 0.0
    %332 = vmatprep.subr.mxu0 0.0
    %333 = vmatpush1.msra.mxu0 0.0
    %334 = vmatprep.subr.mxu0 0.0
    %335 = vmatpush1.msra.mxu0 0.0
    %336 = vmatprep.subr.mxu0 0.0
    %337 = vmatpush1.msra.mxu0 0.0
    %338 = vmatprep.mubr.f32.mxu0 0.0
    %339 = vmatmul.mubr.f32.gmra.mrb[0].mxu0 %v102
    %v340 = vpop.f32.mrb[0].mxu0
    %v341 = vadd.f32 %v83, %v340
    %v342 = vpop.f32.mrb[0].mxu0
    %v343 = vadd.f32 %v87, %v342
    %344 = vmatprep.mubr.f32.mxu0 0.0
    %345 = vmatmul.mubr.f32.gmra.mrb[0].mxu0 %v105
    %v346 = vpop.f32.mrb[0].mxu0
    %v347 = vadd.f32 %v83, %v346
    %v348 = vpop.f32.mrb[0].mxu0
    %v349 = vadd.f32 %v87, %v348
    %350 = vdwg.mxu0
    %v354 = vcombine.low %v187, %v189
    %v356 = vunpack.c.l.s4 1983009808
    %v357 = vunpack.c.0.s8 %v356
    %v358 = vlaneseq
    %v359 = vshrl.u32 %v358, 7
    %v360 = vsub.s32 %v357, %v359
    %v361 = vrot.slane %v354, %v360
    %v363 = vunpack.c.l.s4 1983009808
    %v364 = vunpack.c.0.s8 %v363
    %v365 = vlaneseq
    %v366 = vshrl.u32 %v365, 7
    %v367 = vsub.s32 %v364, %v366
    %v368 = vrot.slane %v264, %v367
    %v369 = vcombine.low %v361, %v368
    %371 = vst [vmem:[#allocation2] sm:$0x3f] %v369
    %v375 = vcombine.high %v272, %v347
    %v376 = vcombine.high %v349, %v349
    %v378 = vunpack.c.l.s4 1983009808
    %v379 = vunpack.c.0.s8 %v378
    %v380 = vlaneseq
    %v381 = vshrl.u32 %v380, 7
    %v382 = vsub.s32 %v379, %v381
    %v383 = vrot.slane %v375, %v382
    %v385 = vunpack.c.l.s4 1983009808
    %v386 = vunpack.c.0.s8 %v385
    %v387 = vlaneseq
    %v388 = vshrl.u32 %v387, 7
    %v389 = vsub.s32 %v386, %v388
    %v390 = vrot.slane %v349, %v389
    %v392 = vunpack.c.l.s4 1983009808
    %v393 = vunpack.c.0.s8 %v392
    %v394 = vlaneseq
    %v395 = vshrl.u32 %v394, 7
    %v396 = vsub.s32 %v393, %v395
    %v397 = vrot.slane %v376, %v396
    %v398 = vcombine.high %v383, %v397
    %400 = vst [vmem:[#allocation2 + $0x6] sm:$0x3f] %v398
    %v401 = vcombine.high %v361, %v368
    %s403 = scalar_lea.vmem [#allocation2], 12
    %404 = vst [vmem:[%s403] sm:$0x3f] %v401
    %v405 = vcombine.low %v383, %v397
    %407 = vst [vmem:[%s403 + $0x6] sm:$0x3f] %v405
    %v408 = vcombine.high %v187, %v189
    %v409 = vcombine.high %v264, %v264
    %v411 = vunpack.c.l.s4 1983009808
    %v412 = vunpack.c.0.s8 %v411
    %v413 = vlaneseq
    %v414 = vshrl.u32 %v413, 7
    %v415 = vsub.s32 %v412, %v414
    %v416 = vrot.slane %v408, %v415
    %v418 = vunpack.c.l.s4 1983009808
    %v419 = vunpack.c.0.s8 %v418
    %v420 = vlaneseq
    %v421 = vshrl.u32 %v420, 7
    %v422 = vsub.s32 %v419, %v421
    %v423 = vrot.slane %v409, %v422
    %v424 = vcombine.low %v416, %v423
    %s426 = scalar_lea.vmem [#allocation2], 24
    %427 = vst [vmem:[%s426] sm:$0x3f] %v424
    %v428 = vcombine.low %v272, %v347
    %v430 = vunpack.c.l.s4 1983009808
    %v431 = vunpack.c.0.s8 %v430
    %v432 = vlaneseq
    %v433 = vshrl.u32 %v432, 7
    %v434 = vsub.s32 %v431, %v433
    %v435 = vrot.slane %v428, %v434
    %v436 = vcombine.high %v435, %v390
    %438 = vst [vmem:[%s426 + $0x6] sm:$0x3f] %v436
    %v439 = vcombine.high %v416, %v423
    %s441 = scalar_lea.vmem [#allocation2], 36
    %442 = vst [vmem:[%s441] sm:$0x3f] %v439
    %v443 = vcombine.low %v435, %v390
    %445 = vst [vmem:[%s441 + $0x6] sm:$0x3f] %v443
    %v449 = vcombine.low %v193, %v195
    %v451 = vunpack.c.l.s4 1983009808
    %v452 = vunpack.c.0.s8 %v451
    %v453 = vlaneseq
    %v454 = vshrl.u32 %v453, 7
    %v455 = vsub.s32 %v452, %v454
    %v456 = vrot.slane %v449, %v455
    %v458 = vunpack.c.l.s4 1983009808
    %v459 = vunpack.c.0.s8 %v458
    %v460 = vlaneseq
    %v461 = vshrl.u32 %v460, 7
    %v462 = vsub.s32 %v459, %v461
    %v463 = vrot.slane %v270, %v462
    %v464 = vcombine.low %v456, %v463
    %s466 = scalar_lea.vmem [#allocation2], 48
    %467 = vst [vmem:[%s466] sm:$0x3f] %v464
    %v471 = vcombine.high %v266, %v341
    %v472 = vcombine.high %v343, %v343
    %v474 = vunpack.c.l.s4 1983009808
    %v475 = vunpack.c.0.s8 %v474
    %v476 = vlaneseq
    %v477 = vshrl.u32 %v476, 7
    %v478 = vsub.s32 %v475, %v477
    %v479 = vrot.slane %v471, %v478
    %v481 = vunpack.c.l.s4 1983009808
    %v482 = vunpack.c.0.s8 %v481
    %v483 = vlaneseq
    %v484 = vshrl.u32 %v483, 7
    %v485 = vsub.s32 %v482, %v484
    %v486 = vrot.slane %v343, %v485
    %v488 = vunpack.c.l.s4 1983009808
    %v489 = vunpack.c.0.s8 %v488
    %v490 = vlaneseq
    %v491 = vshrl.u32 %v490, 7
    %v492 = vsub.s32 %v489, %v491
    %v493 = vrot.slane %v472, %v492
    %v494 = vcombine.high %v479, %v493
    %496 = vst [vmem:[%s466 + $0x6] sm:$0x3f] %v494
    %v497 = vcombine.high %v456, %v463
    %s499 = scalar_lea.vmem [#allocation2], 60
    %500 = vst [vmem:[%s499] sm:$0x3f] %v497
    %v501 = vcombine.low %v479, %v493
    %503 = vst [vmem:[%s499 + $0x6] sm:$0x3f] %v501
    %v504 = vcombine.high %v193, %v195
    %v505 = vcombine.high %v270, %v270
    %v507 = vunpack.c.l.s4 1983009808
    %v508 = vunpack.c.0.s8 %v507
    %v509 = vlaneseq
    %v510 = vshrl.u32 %v509, 7
    %v511 = vsub.s32 %v508, %v510
    %v512 = vrot.slane %v504, %v511
    %v514 = vunpack.c.l.s4 1983009808
    %v515 = vunpack.c.0.s8 %v514
    %v516 = vlaneseq
    %v517 = vshrl.u32 %v516, 7
    %v518 = vsub.s32 %v515, %v517
    %v519 = vrot.slane %v505, %v518
    %v520 = vcombine.low %v512, %v519
    %s522 = scalar_lea.vmem [#allocation2], 72
    %523 = vst [vmem:[%s522] sm:$0x3f] %v520
    %v524 = vcombine.low %v266, %v341
    %v526 = vunpack.c.l.s4 1983009808
    %v527 = vunpack.c.0.s8 %v526
    %v528 = vlaneseq
    %v529 = vshrl.u32 %v528, 7
    %v530 = vsub.s32 %v527, %v529
    %v531 = vrot.slane %v524, %v530
    %v532 = vcombine.high %v531, %v486
    %534 = vst [vmem:[%s522 + $0x6] sm:$0x3f] %v532
    %v535 = vcombine.high %v512, %v519
    %s537 = scalar_lea.vmem [#allocation2], 84
    %538 = vst [vmem:[%s537] sm:$0x3f] %v535
    %v539 = vcombine.low %v531, %v486
    %541 = vst [vmem:[%s537 + $0x6] sm:$0x3f] %v539
    %v542 = vld [vmem:[#allocation3] sm:$0xff]
    %v543 = vld [vmem:[#allocation3 + $0x8] sm:$0xff]
    %v544 = vld [vmem:[#allocation3 + $0x10] sm:$0xff]
    %v545 = vld [vmem:[#allocation3 + $0x18] sm:$0xff]
    %v546 = vld [vmem:[#allocation3 + $0x20] sm:$0xff]
    %v547 = vld [vmem:[#allocation3 + $0x28] sm:$0xff]
    %v548 = vld [vmem:[#allocation3 + $0x30] sm:$0xff]
    %v549 = vld [vmem:[#allocation3 + $0x38] sm:$0xff]
    %v550 = vld [vmem:[#allocation3 + $0x40] sm:$0xff]
    %v551 = vld [vmem:[#allocation3 + $0x48] sm:$0xff]
    %v552 = vld [vmem:[#allocation3 + $0x50] sm:$0xff]
    %v553 = vld [vmem:[#allocation3 + $0x58] sm:$0xff]
    %v554 = vld [vmem:[#allocation3 + $0x60] sm:$0xff]
    %v555 = vld [vmem:[#allocation3 + $0x68] sm:$0xff]
    %v556 = vld [vmem:[#allocation3 + $0x70] sm:$0xff]
    %v557 = vld [vmem:[#allocation3 + $0x78] sm:$0xff]
    %v558 = vld [vmem:[#allocation3 + $0x80] sm:$0xff]
    %v559 = vld [vmem:[#allocation3 + $0x88] sm:$0xff]
    %v560 = vld [vmem:[#allocation3 + $0x90] sm:$0xff]
    %v561 = vld [vmem:[#allocation3 + $0x98] sm:$0xff]
    %v562 = vld [vmem:[#allocation3 + $0xa0] sm:$0xff]
    %v563 = vld [vmem:[#allocation3 + $0xa8] sm:$0xff]
    %v564 = vld [vmem:[#allocation3 + $0xb0] sm:$0xff]
    %v565 = vld [vmem:[#allocation3 + $0xb8] sm:$0xff]
    %v566 = vld [vmem:[#allocation3 + $0xc0] sm:$0xff]
    %v567 = vld [vmem:[#allocation3 + $0xc8] sm:$0xff]
    %v568 = vld [vmem:[#allocation3 + $0xd0] sm:$0xff]
    %v569 = vld [vmem:[#allocation3 + $0xd8] sm:$0xff]
    %v570 = vld [vmem:[#allocation3 + $0xe0] sm:$0xff]
    %v571 = vld [vmem:[#allocation3 + $0xe8] sm:$0xff]
    %v572 = vld [vmem:[#allocation3 + $0xf0] sm:$0xff]
    %v573 = vld [vmem:[#allocation3 + $0xf8] sm:$0xff]
    %v574 = vld [vmem:[#allocation3 + $0x100] sm:$0xff]
    %v575 = vld [vmem:[#allocation3 + $0x108] sm:$0xff]
    %v576 = vld [vmem:[#allocation3 + $0x110] sm:$0xff]
    %v577 = vld [vmem:[#allocation3 + $0x118] sm:$0xff]
    %v578 = vld [vmem:[#allocation3 + $0x120] sm:$0xff]
    %v579 = vld [vmem:[#allocation3 + $0x128] sm:$0xff]
    %v580 = vld [vmem:[#allocation3 + $0x130] sm:$0xff]
    %v581 = vld [vmem:[#allocation3 + $0x138] sm:$0xff]
    %v582 = vld [vmem:[#allocation3 + $0x140] sm:$0xff]
    %v583 = vld [vmem:[#allocation3 + $0x148] sm:$0xff]
    %v584 = vld [vmem:[#allocation3 + $0x150] sm:$0xff]
    %v585 = vld [vmem:[#allocation3 + $0x158] sm:$0xff]
    %v586 = vld [vmem:[#allocation3 + $0x160] sm:$0xff]
    %v587 = vld [vmem:[#allocation3 + $0x168] sm:$0xff]
    %v588 = vld [vmem:[#allocation3 + $0x170] sm:$0xff]
    %v589 = vld [vmem:[#allocation3 + $0x178] sm:$0xff]
    %v590 = vld [vmem:[#allocation6] sm:$0xff]
    %v591 = vld [vmem:[#allocation6 + $0x8] sm:$0xff]
    %v592 = vld [vmem:[#allocation6 + $0x10] sm:$0xff]
    %v593 = vld [vmem:[#allocation6 + $0x18] sm:$0xff]
    %v594 = vld [vmem:[#allocation6 + $0x20] sm:$0xff]
    %v595 = vld [vmem:[#allocation6 + $0x28] sm:$0xff]
    %v596 = vld [vmem:[#allocation6 + $0x30] sm:$0xff]
    %v597 = vld [vmem:[#allocation6 + $0x38] sm:$0xff]
    %v598 = vld [vmem:[#allocation6 + $0x40] sm:$0xff]
    %v599 = vld [vmem:[#allocation6 + $0x48] sm:$0xff]
    %v600 = vld [vmem:[#allocation6 + $0x50] sm:$0xff]
    %v601 = vld [vmem:[#allocation6 + $0x58] sm:$0xff]
    %v602 = vld [vmem:[#allocation6 + $0x60] sm:$0xff]
    %v603 = vld [vmem:[#allocation6 + $0x68] sm:$0xff]
    %v604 = vld [vmem:[#allocation6 + $0x70] sm:$0xff]
    %v605 = vld [vmem:[#allocation6 + $0x78] sm:$0xff]
    %v606 = vld [vmem:[#allocation6 + $0x80] sm:$0xff]
    %v607 = vld [vmem:[#allocation6 + $0x88] sm:$0xff]
    %v608 = vld [vmem:[#allocation6 + $0x90] sm:$0xff]
    %v609 = vld [vmem:[#allocation6 + $0x98] sm:$0xff]
    %v610 = vld [vmem:[#allocation6 + $0xa0] sm:$0xff]
    %v611 = vld [vmem:[#allocation6 + $0xa8] sm:$0xff]
    %v612 = vld [vmem:[#allocation6 + $0xb0] sm:$0xff]
    %v613 = vld [vmem:[#allocation6 + $0xb8] sm:$0xff]
    %v614 = vld [vmem:[#allocation6 + $0xc0] sm:$0xff]
    %v615 = vld [vmem:[#allocation6 + $0xc8] sm:$0xff]
    %v616 = vld [vmem:[#allocation6 + $0xd0] sm:$0xff]
    %v617 = vld [vmem:[#allocation6 + $0xd8] sm:$0xff]
    %v618 = vld [vmem:[#allocation6 + $0xe0] sm:$0xff]
    %v619 = vld [vmem:[#allocation6 + $0xe8] sm:$0xff]
    %v620 = vld [vmem:[#allocation6 + $0xf0] sm:$0xff]
    %v621 = vld [vmem:[#allocation6 + $0xf8] sm:$0xff]
    %v622 = vld [vmem:[#allocation6 + $0x100] sm:$0xff]
    %v623 = vld [vmem:[#allocation6 + $0x108] sm:$0xff]
    %v624 = vld [vmem:[#allocation6 + $0x110] sm:$0xff]
    %v625 = vld [vmem:[#allocation6 + $0x118] sm:$0xff]
    %v626 = vld [vmem:[#allocation6 + $0x120] sm:$0xff]
    %v627 = vld [vmem:[#allocation6 + $0x128] sm:$0xff]
    %v628 = vld [vmem:[#allocation6 + $0x130] sm:$0xff]
    %v629 = vld [vmem:[#allocation6 + $0x138] sm:$0xff]
    %v630 = vld [vmem:[#allocation6 + $0x140] sm:$0xff]
    %v631 = vld [vmem:[#allocation6 + $0x148] sm:$0xff]
    %v632 = vld [vmem:[#allocation6 + $0x150] sm:$0xff]
    %v633 = vld [vmem:[#allocation6 + $0x158] sm:$0xff]
    %v634 = vld [vmem:[#allocation6 + $0x160] sm:$0xff]
    %v635 = vld [vmem:[#allocation6 + $0x168] sm:$0xff]
    %v636 = vld [vmem:[#allocation6 + $0x170] sm:$0xff]
    %v637 = vld [vmem:[#allocation6 + $0x178] sm:$0xff]
    %v638 = vld [vmem:[%s5] sm:$0x7]
    %v640 = vlaneseq
    %v641 = vshrl.u32 %v640, 7
    %v642 = vsub.s32 0, %v641
    %v643 = vrot.slane %v638, %v642
    %v644 = vlaneseq
    %v645 = vshrl.u32 %v644, 7
    %v646 = vsub.s32 1, %v645
    %v647 = vrot.slane %v638, %v646
    %v648 = vlaneseq
    %v649 = vshrl.u32 %v648, 7
    %v650 = vsub.s32 2, %v649
    %v651 = vrot.slane %v638, %v650
    %v655 = vld [vmem:[%s6] sm:$0x7]
    %v657 = vlaneseq
    %v658 = vshrl.u32 %v657, 7
    %v659 = vsub.s32 0, %v658
    %v660 = vrot.slane %v655, %v659
    %v661 = vlaneseq
    %v662 = vshrl.u32 %v661, 7
    %v663 = vsub.s32 1, %v662
    %v664 = vrot.slane %v655, %v663
    %v665 = vlaneseq
    %v666 = vshrl.u32 %v665, 7
    %v667 = vsub.s32 2, %v666
    %v668 = vrot.slane %v655, %v667
    %v672 = vld [vmem:[#allocation2] sm:$0xff]
    %v673 = vld [vmem:[#allocation2 + $0x8] sm:$0xf]
    %674 = vmatprep.subr.mxu0 %v543
    %675 = vmatpush1.msra.mxu0 %v542
    %676 = vmatprep.subr.mxu0 %v546
    %677 = vmatpush1.msra.mxu0 %v545
    %678 = vmatprep.subr.mxu0 %v549
    %679 = vmatpush1.msra.mxu0 %v548
    %680 = vmatprep.subr.mxu0 %v552
    %681 = vmatpush1.msra.mxu0 %v551
    %682 = vmatprep.subr.mxu0 %v555
    %683 = vmatpush1.msra.mxu0 %v554
    %684 = vmatprep.subr.mxu0 %v558
    %685 = vmatpush1.msra.mxu0 %v557
    %686 = vmatprep.subr.mxu0 %v561
    %687 = vmatpush1.msra.mxu0 %v560
    %688 = vmatprep.subr.mxu0 %v564
    %689 = vmatpush1.msra.mxu0 %v563
    %690 = vmatprep.subr.mxu0 %v567
    %691 = vmatpush1.msra.mxu0 %v566
    %692 = vmatprep.subr.mxu0 %v570
    %693 = vmatpush1.msra.mxu0 %v569
    %694 = vmatprep.subr.mxu0 %v573
    %695 = vmatpush1.msra.mxu0 %v572
    %696 = vmatprep.subr.mxu0 %v576
    %697 = vmatpush1.msra.mxu0 %v575
    %698 = vmatprep.subr.mxu0 %v579
    %699 = vmatpush1.msra.mxu0 %v578
    %700 = vmatprep.subr.mxu0 %v582
    %701 = vmatpush1.msra.mxu0 %v581
    %702 = vmatprep.subr.mxu0 %v585
    %703 = vmatpush1.msra.mxu0 %v584
    %704 = vmatprep.subr.mxu0 %v588
    %705 = vmatpush1.msra.mxu0 %v587
    %706 = vmatprep.subr.mxu0 0.0
    %707 = vmatpush1.msra.mxu0 0.0
    %708 = vmatprep.subr.mxu0 0.0
    %709 = vmatpush1.msra.mxu0 0.0
    %710 = vmatprep.subr.mxu0 0.0
    %711 = vmatpush1.msra.mxu0 0.0
    %712 = vmatprep.subr.mxu0 0.0
    %713 = vmatpush1.msra.mxu0 0.0
    %714 = vmatprep.subr.mxu0 0.0
    %715 = vmatpush1.msra.mxu0 0.0
    %716 = vmatprep.subr.mxu0 0.0
    %717 = vmatpush1.msra.mxu0 0.0
    %718 = vmatprep.subr.mxu0 0.0
    %719 = vmatpush1.msra.mxu0 0.0
    %720 = vmatprep.subr.mxu0 0.0
    %721 = vmatpush1.msra.mxu0 0.0
    %722 = vmatprep.subr.mxu0 0.0
    %723 = vmatpush1.msra.mxu0 0.0
    %724 = vmatprep.subr.mxu0 0.0
    %725 = vmatpush1.msra.mxu0 0.0
    %726 = vmatprep.subr.mxu0 0.0
    %727 = vmatpush1.msra.mxu0 0.0
    %728 = vmatprep.subr.mxu0 0.0
    %729 = vmatpush1.msra.mxu0 0.0
    %730 = vmatprep.subr.mxu0 0.0
    %731 = vmatpush1.msra.mxu0 0.0
    %732 = vmatprep.subr.mxu0 0.0
    %733 = vmatpush1.msra.mxu0 0.0
    %734 = vmatprep.subr.mxu0 0.0
    %735 = vmatpush1.msra.mxu0 0.0
    %736 = vmatprep.subr.mxu0 0.0
    %737 = vmatpush1.msra.mxu0 0.0
    %738 = vmatprep.mubr.f32.mxu0 0.0
    %739 = vmatmul.mubr.f32.gmra.mrb[0].mxu0 0.0
    %v740 = vpop.f32.mrb[0].mxu0
    %v741 = vadd.f32 %v643, %v740
    %v742 = vpop.f32.mrb[0].mxu0
    %v743 = vadd.f32 %v647, %v742
    %744 = vdwg.mxu0
    %745 = vmatprep.subr.mxu0 0.0
    %746 = vmatpush1.msra.mxu0 %v544
    %747 = vmatprep.subr.mxu0 0.0
    %748 = vmatpush1.msra.mxu0 %v547
    %749 = vmatprep.subr.mxu0 0.0
    %750 = vmatpush1.msra.mxu0 %v550
    %751 = vmatprep.subr.mxu0 0.0
    %752 = vmatpush1.msra.mxu0 %v553
    %753 = vmatprep.subr.mxu0 0.0
    %754 = vmatpush1.msra.mxu0 %v556
    %755 = vmatprep.subr.mxu0 0.0
    %756 = vmatpush1.msra.mxu0 %v559
    %757 = vmatprep.subr.mxu0 0.0
    %758 = vmatpush1.msra.mxu0 %v562
    %759 = vmatprep.subr.mxu0 0.0
    %760 = vmatpush1.msra.mxu0 %v565
    %761 = vmatprep.subr.mxu0 0.0
    %762 = vmatpush1.msra.mxu0 %v568
    %763 = vmatprep.subr.mxu0 0.0
    %764 = vmatpush1.msra.mxu0 %v571
    %765 = vmatprep.subr.mxu0 0.0
    %766 = vmatpush1.msra.mxu0 %v574
    %767 = vmatprep.subr.mxu0 0.0
    %768 = vmatpush1.msra.mxu0 %v577
    %769 = vmatprep.subr.mxu0 0.0
    %770 = vmatpush1.msra.mxu0 %v580
    %771 = vmatprep.subr.mxu0 0.0
    %772 = vmatpush1.msra.mxu0 %v583
    %773 = vmatprep.subr.mxu0 0.0
    %774 = vmatpush1.msra.mxu0 %v586
    %775 = vmatprep.subr.mxu0 0.0
    %776 = vmatpush1.msra.mxu0 %v589
    %777 = vmatprep.subr.mxu0 0.0
    %778 = vmatpush1.msra.mxu0 0.0
    %779 = vmatprep.subr.mxu0 0.0
    %780 = vmatpush1.msra.mxu0 0.0
    %781 = vmatprep.subr.mxu0 0.0
    %782 = vmatpush1.msra.mxu0 0.0
    %783 = vmatprep.subr.mxu0 0.0
    %784 = vmatpush1.msra.mxu0 0.0
    %785 = vmatprep.subr.mxu0 0.0
    %786 = vmatpush1.msra.mxu0 0.0
    %787 = vmatprep.subr.mxu0 0.0
    %788 = vmatpush1.msra.mxu0 0.0
    %789 = vmatprep.subr.mxu0 0.0
    %790 = vmatpush1.msra.mxu0 0.0
    %791 = vmatprep.subr.mxu0 0.0
    %792 = vmatpush1.msra.mxu0 0.0
    %793 = vmatprep.subr.mxu0 0.0
    %794 = vmatpush1.msra.mxu0 0.0
    %795 = vmatprep.subr.mxu0 0.0
    %796 = vmatpush1.msra.mxu0 0.0
    %797 = vmatprep.subr.mxu0 0.0
    %798 = vmatpush1.msra.mxu0 0.0
    %799 = vmatprep.subr.mxu0 0.0
    %800 = vmatpush1.msra.mxu0 0.0
    %801 = vmatprep.subr.mxu0 0.0
    %802 = vmatpush1.msra.mxu0 0.0
    %803 = vmatprep.subr.mxu0 0.0
    %804 = vmatpush1.msra.mxu0 0.0
    %805 = vmatprep.subr.mxu0 0.0
    %806 = vmatpush1.msra.mxu0 0.0
    %807 = vmatprep.subr.mxu0 0.0
    %808 = vmatpush1.msra.mxu0 0.0
    %809 = vmatprep.mubr.f32.mxu0 0.0
    %810 = vmatmul.mubr.f32.gmra.mrb[0].mxu0 0.0
    %v811 = vpop.f32.mrb[0].mxu0
    %v812 = vadd.f32 %v651, %v811
    %v813 = vpop.f32.mrb[0].mxu0
    %814 = vdwg.mxu0
    %815 = vmatprep.subr.mxu0 %v591
    %816 = vmatpush1.msra.mxu0 %v590
    %817 = vmatprep.subr.mxu0 %v594
    %818 = vmatpush1.msra.mxu0 %v593
    %819 = vmatprep.subr.mxu0 %v597
    %820 = vmatpush1.msra.mxu0 %v596
    %821 = vmatprep.subr.mxu0 %v600
    %822 = vmatpush1.msra.mxu0 %v599
    %823 = vmatprep.subr.mxu0 %v603
    %824 = vmatpush1.msra.mxu0 %v602
    %825 = vmatprep.subr.mxu0 %v606
    %826 = vmatpush1.msra.mxu0 %v605
    %827 = vmatprep.subr.mxu0 %v609
    %828 = vmatpush1.msra.mxu0 %v608
    %829 = vmatprep.subr.mxu0 %v612
    %830 = vmatpush1.msra.mxu0 %v611
    %831 = vmatprep.subr.mxu0 %v615
    %832 = vmatpush1.msra.mxu0 %v614
    %833 = vmatprep.subr.mxu0 %v618
    %834 = vmatpush1.msra.mxu0 %v617
    %835 = vmatprep.subr.mxu0 %v621
    %836 = vmatpush1.msra.mxu0 %v620
    %837 = vmatprep.subr.mxu0 %v624
    %838 = vmatpush1.msra.mxu0 %v623
    %839 = vmatprep.subr.mxu0 %v627
    %840 = vmatpush1.msra.mxu0 %v626
    %841 = vmatprep.subr.mxu0 %v630
    %842 = vmatpush1.msra.mxu0 %v629
    %843 = vmatprep.subr.mxu0 %v633
    %844 = vmatpush1.msra.mxu0 %v632
    %845 = vmatprep.subr.mxu0 %v636
    %846 = vmatpush1.msra.mxu0 %v635
    %847 = vmatprep.subr.mxu0 0.0
    %848 = vmatpush1.msra.mxu0 0.0
    %849 = vmatprep.subr.mxu0 0.0
    %850 = vmatpush1.msra.mxu0 0.0
    %851 = vmatprep.subr.mxu0 0.0
    %852 = vmatpush1.msra.mxu0 0.0
    %853 = vmatprep.subr.mxu0 0.0
    %854 = vmatpush1.msra.mxu0 0.0
    %855 = vmatprep.subr.mxu0 0.0
    %856 = vmatpush1.msra.mxu0 0.0
    %857 = vmatprep.subr.mxu0 0.0
    %858 = vmatpush1.msra.mxu0 0.0
    %859 = vmatprep.subr.mxu0 0.0
    %860 = vmatpush1.msra.mxu0 0.0
    %861 = vmatprep.subr.mxu0 0.0
    %862 = vmatpush1.msra.mxu0 0.0
    %863 = vmatprep.subr.mxu0 0.0
    %864 = vmatpush1.msra.mxu0 0.0
    %865 = vmatprep.subr.mxu0 0.0
    %866 = vmatpush1.msra.mxu0 0.0
    %867 = vmatprep.subr.mxu0 0.0
    %868 = vmatpush1.msra.mxu0 0.0
    %869 = vmatprep.subr.mxu0 0.0
    %870 = vmatpush1.msra.mxu0 0.0
    %871 = vmatprep.subr.mxu0 0.0
    %872 = vmatpush1.msra.mxu0 0.0
    %873 = vmatprep.subr.mxu0 0.0
    %874 = vmatpush1.msra.mxu0 0.0
    %875 = vmatprep.subr.mxu0 0.0
    %876 = vmatpush1.msra.mxu0 0.0
    %877 = vmatprep.subr.mxu0 0.0
    %878 = vmatpush1.msra.mxu0 0.0
    %879 = vmatprep.mubr.f32.mxu0 0.0
    %880 = vmatmul.mubr.f32.gmra.mrb[0].mxu0 0.0
    %v881 = vpop.f32.mrb[0].mxu0
    %v882 = vadd.f32 %v660, %v881
    %v883 = vpop.f32.mrb[0].mxu0
    %v884 = vadd.f32 %v664, %v883
    %885 = vdwg.mxu0
    %886 = vmatprep.subr.mxu0 0.0
    %887 = vmatpush1.msra.mxu0 %v592
    %888 = vmatprep.subr.mxu0 0.0
    %889 = vmatpush1.msra.mxu0 %v595
    %890 = vmatprep.subr.mxu0 0.0
    %891 = vmatpush1.msra.mxu0 %v598
    %892 = vmatprep.subr.mxu0 0.0
    %893 = vmatpush1.msra.mxu0 %v601
    %894 = vmatprep.subr.mxu0 0.0
    %895 = vmatpush1.msra.mxu0 %v604
    %896 = vmatprep.subr.mxu0 0.0
    %897 = vmatpush1.msra.mxu0 %v607
    %898 = vmatprep.subr.mxu0 0.0
    %899 = vmatpush1.msra.mxu0 %v610
    %900 = vmatprep.subr.mxu0 0.0
    %901 = vmatpush1.msra.mxu0 %v613
    %902 = vmatprep.subr.mxu0 0.0
    %903 = vmatpush1.msra.mxu0 %v616
    %904 = vmatprep.subr.mxu0 0.0
    %905 = vmatpush1.msra.mxu0 %v619
    %906 = vmatprep.subr.mxu0 0.0
    %907 = vmatpush1.msra.mxu0 %v622
    %908 = vmatprep.subr.mxu0 0.0
    %909 = vmatpush1.msra.mxu0 %v625
    %910 = vmatprep.subr.mxu0 0.0
    %911 = vmatpush1.msra.mxu0 %v628
    %912 = vmatprep.subr.mxu0 0.0
    %913 = vmatpush1.msra.mxu0 %v631
    %914 = vmatprep.subr.mxu0 0.0
    %915 = vmatpush1.msra.mxu0 %v634
    %916 = vmatprep.subr.mxu0 0.0
    %917 = vmatpush1.msra.mxu0 %v637
    %918 = vmatprep.subr.mxu0 0.0
    %919 = vmatpush1.msra.mxu0 0.0
    %920 = vmatprep.subr.mxu0 0.0
    %921 = vmatpush1.msra.mxu0 0.0
    %922 = vmatprep.subr.mxu0 0.0
    %923 = vmatpush1.msra.mxu0 0.0
    %924 = vmatprep.subr.mxu0 0.0
    %925 = vmatpush1.msra.mxu0 0.0
    %926 = vmatprep.subr.mxu0 0.0
    %927 = vmatpush1.msra.mxu0 0.0
    %928 = vmatprep.subr.mxu0 0.0
    %929 = vmatpush1.msra.mxu0 0.0
    %930 = vmatprep.subr.mxu0 0.0
    %931 = vmatpush1.msra.mxu0 0.0
    %932 = vmatprep.subr.mxu0 0.0
    %933 = vmatpush1.msra.mxu0 0.0
    %934 = vmatprep.subr.mxu0 0.0
    %935 = vmatpush1.msra.mxu0 0.0
    %936 = vmatprep.subr.mxu0 0.0
    %937 = vmatpush1.msra.mxu0 0.0
    %938 = vmatprep.subr.mxu0 0.0
    %939 = vmatpush1.msra.mxu0 0.0
    %940 = vmatprep.subr.mxu0 0.0
    %941 = vmatpush1.msra.mxu0 0.0
    %942 = vmatprep.subr.mxu0 0.0
    %943 = vmatpush1.msra.mxu0 0.0
    %944 = vmatprep.subr.mxu0 0.0
    %945 = vmatpush1.msra.mxu0 0.0
    %946 = vmatprep.subr.mxu0 0.0
    %947 = vmatpush1.msra.mxu0 0.0
    %948 = vmatprep.subr.mxu0 0.0
    %949 = vmatpush1.msra.mxu0 0.0
    %950 = vmatprep.mubr.f32.mxu0 0.0
    %951 = vmatmul.mubr.f32.gmra.mrb[0].mxu0 0.0
    %v952 = vpop.f32.mrb[0].mxu0
    %v953 = vadd.f32 %v668, %v952
    %v954 = vpop.f32.mrb[0].mxu0
    %955 = vdwg.mxu0
    %v956 = vadd.f32 %v672, %v741
    %v957 = vxor.u32 %v956, 2147483648
    %v958 = vmul.f32 %v957, 1.442695
    %v959 = vpow.pop %v958
    %v960 = vadd.f32 %v959, 1.0
    %v961 = vrcp.pop %v960
    %v962 = vmul.f32 1.0, %v961
    %v964 = vrot.slane %v672, 2
    %v966 = vadd.f32 %v964, %v743
    %v967 = vxor.u32 %v966, 2147483648
    %v968 = vmul.f32 %v967, 1.442695
    %v969 = vpow.pop %v968
    %v970 = vadd.f32 %v969, 1.0
    %v971 = vrcp.pop %v970
    %v972 = vmul.f32 1.0, %v971
    %v973 = vmul.f32 %v962, %v812
    %v974 = vrot.slane %v672, 4
    %v976 = vadd.f32 %v974, %v973
    %v977 = vtanh.pop %v976
    %v978 = vsub.f32 1.0, %v972
    %v979 = vmul.f32 %v978, %v977
    %v980 = vmul.f32 %v972, 0.0
    %v981 = vadd.f32 %v979, %v980
    %v982 = vrot.slane %v672, 6
    %v984 = vadd.f32 %v982, %v882
    %v985 = vxor.u32 %v984, 2147483648
    %v986 = vmul.f32 %v985, 1.442695
    %v987 = vpow.pop %v986
    %v988 = vadd.f32 %v987, 1.0
    %v989 = vrcp.pop %v988
    %v990 = vmul.f32 1.0, %v989
    %v991 = vadd.f32 %v673, %v884
    %v992 = vxor.u32 %v991, 2147483648
    %v993 = vmul.f32 %v992, 1.442695
    %v994 = vpow.pop %v993
    %v995 = vadd.f32 %v994, 1.0
    %v996 = vrcp.pop %v995
    %v997 = vmul.f32 1.0, %v996
    %v998 = vmul.f32 %v990, %v953
    %v1000 = vrot.slane %v673, 2
    %v1002 = vadd.f32 %v1000, %v998
    %v1003 = vtanh.pop %v1002
    %v1004 = vsub.f32 1.0, %v997
    %v1005 = vmul.f32 %v1004, %v1003
    %v1006 = vmul.f32 %v997, 0.0
    %v1007 = vadd.f32 %v1005, %v1006
    %v1008 = vld [vmem:[%s403] sm:$0xff]
    %v1009 = vld [vmem:[%s403 + $0x8] sm:$0xf]
    %1010 = vmatprep.subr.mxu0 %v543
    %1011 = vmatpush1.msra.mxu0 %v542
    %1012 = vmatprep.subr.mxu0 %v546
    %1013 = vmatpush1.msra.mxu0 %v545
    %1014 = vmatprep.subr.mxu0 %v549
    %1015 = vmatpush1.msra.mxu0 %v548
    %1016 = vmatprep.subr.mxu0 %v552
    %1017 = vmatpush1.msra.mxu0 %v551
    %1018 = vmatprep.subr.mxu0 %v555
    %1019 = vmatpush1.msra.mxu0 %v554
    %1020 = vmatprep.subr.mxu0 %v558
    %1021 = vmatpush1.msra.mxu0 %v557
    %1022 = vmatprep.subr.mxu0 %v561
    %1023 = vmatpush1.msra.mxu0 %v560
    %1024 = vmatprep.subr.mxu0 %v564
    %1025 = vmatpush1.msra.mxu0 %v563
    %1026 = vmatprep.subr.mxu0 %v567
    %1027 = vmatpush1.msra.mxu0 %v566
    %1028 = vmatprep.subr.mxu0 %v570
    %1029 = vmatpush1.msra.mxu0 %v569
    %1030 = vmatprep.subr.mxu0 %v573
    %1031 = vmatpush1.msra.mxu0 %v572
    %1032 = vmatprep.subr.mxu0 %v576
    %1033 = vmatpush1.msra.mxu0 %v575
    %1034 = vmatprep.subr.mxu0 %v579
    %1035 = vmatpush1.msra.mxu0 %v578
    %1036 = vmatprep.subr.mxu0 %v582
    %1037 = vmatpush1.msra.mxu0 %v581
    %1038 = vmatprep.subr.mxu0 %v585
    %1039 = vmatpush1.msra.mxu0 %v584
    %1040 = vmatprep.subr.mxu0 %v588
    %1041 = vmatpush1.msra.mxu0 %v587
    %1042 = vmatprep.subr.mxu0 0.0
    %1043 = vmatpush1.msra.mxu0 0.0
    %1044 = vmatprep.subr.mxu0 0.0
    %1045 = vmatpush1.msra.mxu0 0.0
    %1046 = vmatprep.subr.mxu0 0.0
    %1047 = vmatpush1.msra.mxu0 0.0
    %1048 = vmatprep.subr.mxu0 0.0
    %1049 = vmatpush1.msra.mxu0 0.0
    %1050 = vmatprep.subr.mxu0 0.0
    %1051 = vmatpush1.msra.mxu0 0.0
    %1052 = vmatprep.subr.mxu0 0.0
    %1053 = vmatpush1.msra.mxu0 0.0
    %1054 = vmatprep.subr.mxu0 0.0
    %1055 = vmatpush1.msra.mxu0 0.0
    %1056 = vmatprep.subr.mxu0 0.0
    %1057 = vmatpush1.msra.mxu0 0.0
    %1058 = vmatprep.subr.mxu0 0.0
    %1059 = vmatpush1.msra.mxu0 0.0
    %1060 = vmatprep.subr.mxu0 0.0
    %1061 = vmatpush1.msra.mxu0 0.0
    %1062 = vmatprep.subr.mxu0 0.0
    %1063 = vmatpush1.msra.mxu0 0.0
    %1064 = vmatprep.subr.mxu0 0.0
    %1065 = vmatpush1.msra.mxu0 0.0
    %1066 = vmatprep.subr.mxu0 0.0
    %1067 = vmatpush1.msra.mxu0 0.0
    %1068 = vmatprep.subr.mxu0 0.0
    %1069 = vmatpush1.msra.mxu0 0.0
    %1070 = vmatprep.subr.mxu0 0.0
    %1071 = vmatpush1.msra.mxu0 0.0
    %1072 = vmatprep.subr.mxu0 0.0
    %1073 = vmatpush1.msra.mxu0 0.0
    %1074 = vmatprep.mubr.f32.mxu0 0.0
    %1075 = vmatmul.mubr.f32.gmra.mrb[0].mxu0 %v981
    %v1076 = vpop.f32.mrb[0].mxu0
    %v1077 = vadd.f32 %v643, %v1076
    %v1078 = vpop.f32.mrb[0].mxu0
    %v1079 = vadd.f32 %v647, %v1078
    %1080 = vdwg.mxu0
    %1081 = vmatprep.subr.mxu0 0.0
    %1082 = vmatpush1.msra.mxu0 %v544
    %1083 = vmatprep.subr.mxu0 0.0
    %1084 = vmatpush1.msra.mxu0 %v547
    %1085 = vmatprep.subr.mxu0 0.0
    %1086 = vmatpush1.msra.mxu0 %v550
    %1087 = vmatprep.subr.mxu0 0.0
    %1088 = vmatpush1.msra.mxu0 %v553
    %1089 = vmatprep.subr.mxu0 0.0
    %1090 = vmatpush1.msra.mxu0 %v556
    %1091 = vmatprep.subr.mxu0 0.0
    %1092 = vmatpush1.msra.mxu0 %v559
    %1093 = vmatprep.subr.mxu0 0.0
    %1094 = vmatpush1.msra.mxu0 %v562
    %1095 = vmatprep.subr.mxu0 0.0
    %1096 = vmatpush1.msra.mxu0 %v565
    %1097 = vmatprep.subr.mxu0 0.0
    %1098 = vmatpush1.msra.mxu0 %v568
    %1099 = vmatprep.subr.mxu0 0.0
    %1100 = vmatpush1.msra.mxu0 %v571
    %1101 = vmatprep.subr.mxu0 0.0
    %1102 = vmatpush1.msra.mxu0 %v574
    %1103 = vmatprep.subr.mxu0 0.0
    %1104 = vmatpush1.msra.mxu0 %v577
    %1105 = vmatprep.subr.mxu0 0.0
    %1106 = vmatpush1.msra.mxu0 %v580
    %1107 = vmatprep.subr.mxu0 0.0
    %1108 = vmatpush1.msra.mxu0 %v583
    %1109 = vmatprep.subr.mxu0 0.0
    %1110 = vmatpush1.msra.mxu0 %v586
    %1111 = vmatprep.subr.mxu0 0.0
    %1112 = vmatpush1.msra.mxu0 %v589
    %1113 = vmatprep.subr.mxu0 0.0
    %1114 = vmatpush1.msra.mxu0 0.0
    %1115 = vmatprep.subr.mxu0 0.0
    %1116 = vmatpush1.msra.mxu0 0.0
    %1117 = vmatprep.subr.mxu0 0.0
    %1118 = vmatpush1.msra.mxu0 0.0
    %1119 = vmatprep.subr.mxu0 0.0
    %1120 = vmatpush1.msra.mxu0 0.0
    %1121 = vmatprep.subr.mxu0 0.0
    %1122 = vmatpush1.msra.mxu0 0.0
    %1123 = vmatprep.subr.mxu0 0.0
    %1124 = vmatpush1.msra.mxu0 0.0
    %1125 = vmatprep.subr.mxu0 0.0
    %1126 = vmatpush1.msra.mxu0 0.0
    %1127 = vmatprep.subr.mxu0 0.0
    %1128 = vmatpush1.msra.mxu0 0.0
    %1129 = vmatprep.subr.mxu0 0.0
    %1130 = vmatpush1.msra.mxu0 0.0
    %1131 = vmatprep.subr.mxu0 0.0
    %1132 = vmatpush1.msra.mxu0 0.0
    %1133 = vmatprep.subr.mxu0 0.0
    %1134 = vmatpush1.msra.mxu0 0.0
    %1135 = vmatprep.subr.mxu0 0.0
    %1136 = vmatpush1.msra.mxu0 0.0
    %1137 = vmatprep.subr.mxu0 0.0
    %1138 = vmatpush1.msra.mxu0 0.0
    %1139 = vmatprep.subr.mxu0 0.0
    %1140 = vmatpush1.msra.mxu0 0.0
    %1141 = vmatprep.subr.mxu0 0.0
    %1142 = vmatpush1.msra.mxu0 0.0
    %1143 = vmatprep.subr.mxu0 0.0
    %1144 = vmatpush1.msra.mxu0 0.0
    %1145 = vmatprep.mubr.f32.mxu0 0.0
    %1146 = vmatmul.mubr.f32.gmra.mrb[0].mxu0 %v981
    %v1147 = vpop.f32.mrb[0].mxu0
    %v1148 = vadd.f32 %v651, %v1147
    %v1149 = vpop.f32.mrb[0].mxu0
    %1150 = vdwg.mxu0
    %1151 = vmatprep.subr.mxu0 %v591
    %1152 = vmatpush1.msra.mxu0 %v590
    %1153 = vmatprep.subr.mxu0 %v594
    %1154 = vmatpush1.msra.mxu0 %v593
    %1155 = vmatprep.subr.mxu0 %v597
    %1156 = vmatpush1.msra.mxu0 %v596
    %1157 = vmatprep.subr.mxu0 %v600
    %1158 = vmatpush1.msra.mxu0 %v599
    %1159 = vmatprep.subr.mxu0 %v603
    %1160 = vmatpush1.msra.mxu0 %v602
    %1161 = vmatprep.subr.mxu0 %v606
    %1162 = vmatpush1.msra.mxu0 %v605
    %1163 = vmatprep.subr.mxu0 %v609
    %1164 = vmatpush1.msra.mxu0 %v608
    %1165 = vmatprep.subr.mxu0 %v612
    %1166 = vmatpush1.msra.mxu0 %v611
    %1167 = vmatprep.subr.mxu0 %v615
    %1168 = vmatpush1.msra.mxu0 %v614
    %1169 = vmatprep.subr.mxu0 %v618
    %1170 = vmatpush1.msra.mxu0 %v617
    %1171 = vmatprep.subr.mxu0 %v621
    %1172 = vmatpush1.msra.mxu0 %v620
    %1173 = vmatprep.subr.mxu0 %v624
    %1174 = vmatpush1.msra.mxu0 %v623
    %1175 = vmatprep.subr.mxu0 %v627
    %1176 = vmatpush1.msra.mxu0 %v626
    %1177 = vmatprep.subr.mxu0 %v630
    %1178 = vmatpush1.msra.mxu0 %v629
    %1179 = vmatprep.subr.mxu0 %v633
    %1180 = vmatpush1.msra.mxu0 %v632
    %1181 = vmatprep.subr.mxu0 %v636
    %1182 = vmatpush1.msra.mxu0 %v635
    %1183 = vmatprep.subr.mxu0 0.0
    %1184 = vmatpush1.msra.mxu0 0.0
    %1185 = vmatprep.subr.mxu0 0.0
    %1186 = vmatpush1.msra.mxu0 0.0
    %1187 = vmatprep.subr.mxu0 0.0
    %1188 = vmatpush1.msra.mxu0 0.0
    %1189 = vmatprep.subr.mxu0 0.0
    %1190 = vmatpush1.msra.mxu0 0.0
    %1191 = vmatprep.subr.mxu0 0.0
    %1192 = vmatpush1.msra.mxu0 0.0
    %1193 = vmatprep.subr.mxu0 0.0
    %1194 = vmatpush1.msra.mxu0 0.0
    %1195 = vmatprep.subr.mxu0 0.0
    %1196 = vmatpush1.msra.mxu0 0.0
    %1197 = vmatprep.subr.mxu0 0.0
    %1198 = vmatpush1.msra.mxu0 0.0
    %1199 = vmatprep.subr.mxu0 0.0
    %1200 = vmatpush1.msra.mxu0 0.0
    %1201 = vmatprep.subr.mxu0 0.0
    %1202 = vmatpush1.msra.mxu0 0.0
    %1203 = vmatprep.subr.mxu0 0.0
    %1204 = vmatpush1.msra.mxu0 0.0
    %1205 = vmatprep.subr.mxu0 0.0
    %1206 = vmatpush1.msra.mxu0 0.0
    %1207 = vmatprep.subr.mxu0 0.0
    %1208 = vmatpush1.msra.mxu0 0.0
    %1209 = vmatprep.subr.mxu0 0.0
    %1210 = vmatpush1.msra.mxu0 0.0
    %1211 = vmatprep.subr.mxu0 0.0
    %1212 = vmatpush1.msra.mxu0 0.0
    %1213 = vmatprep.subr.mxu0 0.0
    %1214 = vmatpush1.msra.mxu0 0.0
    %1215 = vmatprep.mubr.f32.mxu0 0.0
    %1216 = vmatmul.mubr.f32.gmra.mrb[0].mxu0 %v1007
    %v1217 = vpop.f32.mrb[0].mxu0
    %v1218 = vadd.f32 %v660, %v1217
    %v1219 = vpop.f32.mrb[0].mxu0
    %v1220 = vadd.f32 %v664, %v1219
    %1221 = vdwg.mxu0
    %1222 = vmatprep.subr.mxu0 0.0
    %1223 = vmatpush1.msra.mxu0 %v592
    %1224 = vmatprep.subr.mxu0 0.0
    %1225 = vmatpush1.msra.mxu0 %v595
    %1226 = vmatprep.subr.mxu0 0.0
    %1227 = vmatpush1.msra.mxu0 %v598
    %1228 = vmatprep.subr.mxu0 0.0
    %1229 = vmatpush1.msra.mxu0 %v601
    %1230 = vmatprep.subr.mxu0 0.0
    %1231 = vmatpush1.msra.mxu0 %v604
    %1232 = vmatprep.subr.mxu0 0.0
    %1233 = vmatpush1.msra.mxu0 %v607
    %1234 = vmatprep.subr.mxu0 0.0
    %1235 = vmatpush1.msra.mxu0 %v610
    %1236 = vmatprep.subr.mxu0 0.0
    %1237 = vmatpush1.msra.mxu0 %v613
    %1238 = vmatprep.subr.mxu0 0.0
    %1239 = vmatpush1.msra.mxu0 %v616
    %1240 = vmatprep.subr.mxu0 0.0
    %1241 = vmatpush1.msra.mxu0 %v619
    %1242 = vmatprep.subr.mxu0 0.0
    %1243 = vmatpush1.msra.mxu0 %v622
    %1244 = vmatprep.subr.mxu0 0.0
    %1245 = vmatpush1.msra.mxu0 %v625
    %1246 = vmatprep.subr.mxu0 0.0
    %1247 = vmatpush1.msra.mxu0 %v628
    %1248 = vmatprep.subr.mxu0 0.0
    %1249 = vmatpush1.msra.mxu0 %v631
    %1250 = vmatprep.subr.mxu0 0.0
    %1251 = vmatpush1.msra.mxu0 %v634
    %1252 = vmatprep.subr.mxu0 0.0
    %1253 = vmatpush1.msra.mxu0 %v637
    %1254 = vmatprep.subr.mxu0 0.0
    %1255 = vmatpush1.msra.mxu0 0.0
    %1256 = vmatprep.subr.mxu0 0.0
    %1257 = vmatpush1.msra.mxu0 0.0
    %1258 = vmatprep.subr.mxu0 0.0
    %1259 = vmatpush1.msra.mxu0 0.0
    %1260 = vmatprep.subr.mxu0 0.0
    %1261 = vmatpush1.msra.mxu0 0.0
    %1262 = vmatprep.subr.mxu0 0.0
    %1263 = vmatpush1.msra.mxu0 0.0
    %1264 = vmatprep.subr.mxu0 0.0
    %1265 = vmatpush1.msra.mxu0 0.0
    %1266 = vmatprep.subr.mxu0 0.0
    %1267 = vmatpush1.msra.mxu0 0.0
    %1268 = vmatprep.subr.mxu0 0.0
    %1269 = vmatpush1.msra.mxu0 0.0
    %1270 = vmatprep.subr.mxu0 0.0
    %1271 = vmatpush1.msra.mxu0 0.0
    %1272 = vmatprep.subr.mxu0 0.0
    %1273 = vmatpush1.msra.mxu0 0.0
    %1274 = vmatprep.subr.mxu0 0.0
    %1275 = vmatpush1.msra.mxu0 0.0
    %1276 = vmatprep.subr.mxu0 0.0
    %1277 = vmatpush1.msra.mxu0 0.0
    %1278 = vmatprep.subr.mxu0 0.0
    %1279 = vmatpush1.msra.mxu0 0.0
    %1280 = vmatprep.subr.mxu0 0.0
    %1281 = vmatpush1.msra.mxu0 0.0
    %1282 = vmatprep.subr.mxu0 0.0
    %1283 = vmatpush1.msra.mxu0 0.0
    %1284 = vmatprep.subr.mxu0 0.0
    %1285 = vmatpush1.msra.mxu0 0.0
    %1286 = vmatprep.mubr.f32.mxu0 0.0
    %1287 = vmatmul.mubr.f32.gmra.mrb[0].mxu0 %v1007
    %v1288 = vpop.f32.mrb[0].mxu0
    %v1289 = vadd.f32 %v668, %v1288
    %v1290 = vpop.f32.mrb[0].mxu0
    %1291 = vdwg.mxu0
    %v1292 = vadd.f32 %v1008, %v1077
    %v1293 = vxor.u32 %v1292, 2147483648
    %v1294 = vmul.f32 %v1293, 1.442695
    %v1295 = vpow.pop %v1294
    %v1296 = vadd.f32 %v1295, 1.0
    %v1297 = vrcp.pop %v1296
    %v1298 = vmul.f32 1.0, %v1297
    %v1300 = vrot.slane %v1008, 2
    %v1302 = vadd.f32 %v1300, %v1079
    %v1303 = vxor.u32 %v1302, 2147483648
    %v1304 = vmul.f32 %v1303, 1.442695
    %v1305 = vpow.pop %v1304
    %v1306 = vadd.f32 %v1305, 1.0
    %v1307 = vrcp.pop %v1306
    %v1308 = vmul.f32 1.0, %v1307
    %v1309 = vmul.f32 %v1298, %v1148
    %v1310 = vrot.slane %v1008, 4
    %v1312 = vadd.f32 %v1310, %v1309
    %v1313 = vtanh.pop %v1312
    %v1314 = vsub.f32 1.0, %v1308
    %v1315 = vmul.f32 %v1314, %v1313
    %v1316 = vmul.f32 %v1308, %v981
    %v1317 = vadd.f32 %v1315, %v1316
    %v1318 = vrot.slane %v1008, 6
    %v1320 = vadd.f32 %v1318, %v1218
    %v1321 = vxor.u32 %v1320, 2147483648
    %v1322 = vmul.f32 %v1321, 1.442695
    %v1323 = vpow.pop %v1322
    %v1324 = vadd.f32 %v1323, 1.0
    %v1325 = vrcp.pop %v1324
    %v1326 = vmul.f32 1.0, %v1325
    %v1327 = vadd.f32 %v1009, %v1220
    %v1328 = vxor.u32 %v1327, 2147483648
    %v1329 = vmul.f32 %v1328, 1.442695
    %v1330 = vpow.pop %v1329
    %v1331 = vadd.f32 %v1330, 1.0
    %v1332 = vrcp.pop %v1331
    %v1333 = vmul.f32 1.0, %v1332
    %v1334 = vmul.f32 %v1326, %v1289
    %v1336 = vrot.slane %v1009, 2
    %v1338 = vadd.f32 %v1336, %v1334
    %v1339 = vtanh.pop %v1338
    %v1340 = vsub.f32 1.0, %v1333
    %v1341 = vmul.f32 %v1340, %v1339
    %v1342 = vmul.f32 %v1333, %v1007
    %v1343 = vadd.f32 %v1341, %v1342
    %v1344 = vld [vmem:[%s426] sm:$0xff]
    %v1345 = vld [vmem:[%s426 + $0x8] sm:$0xf]
    %1346 = vmatprep.subr.mxu0 %v543
    %1347 = vmatpush1.msra.mxu0 %v542
    %1348 = vmatprep.subr.mxu0 %v546
    %1349 = vmatpush1.msra.mxu0 %v545
    %1350 = vmatprep.subr.mxu0 %v549
    %1351 = vmatpush1.msra.mxu0 %v548
    %1352 = vmatprep.subr.mxu0 %v552
    %1353 = vmatpush1.msra.mxu0 %v551
    %1354 = vmatprep.subr.mxu0 %v555
    %1355 = vmatpush1.msra.mxu0 %v554
    %1356 = vmatprep.subr.mxu0 %v558
    %1357 = vmatpush1.msra.mxu0 %v557
    %1358 = vmatprep.subr.mxu0 %v561
    %1359 = vmatpush1.msra.mxu0 %v560
    %1360 = vmatprep.subr.mxu0 %v564
    %1361 = vmatpush1.msra.mxu0 %v563
    %1362 = vmatprep.subr.mxu0 %v567
    %1363 = vmatpush1.msra.mxu0 %v566
    %1364 = vmatprep.subr.mxu0 %v570
    %1365 = vmatpush1.msra.mxu0 %v569
    %1366 = vmatprep.subr.mxu0 %v573
    %1367 = vmatpush1.msra.mxu0 %v572
    %1368 = vmatprep.subr.mxu0 %v576
    %1369 = vmatpush1.msra.mxu0 %v575
    %1370 = vmatprep.subr.mxu0 %v579
    %1371 = vmatpush1.msra.mxu0 %v578
    %1372 = vmatprep.subr.mxu0 %v582
    %1373 = vmatpush1.msra.mxu0 %v581
    %1374 = vmatprep.subr.mxu0 %v585
    %1375 = vmatpush1.msra.mxu0 %v584
    %1376 = vmatprep.subr.mxu0 %v588
    %1377 = vmatpush1.msra.mxu0 %v587
    %1378 = vmatprep.subr.mxu0 0.0
    %1379 = vmatpush1.msra.mxu0 0.0
    %1380 = vmatprep.subr.mxu0 0.0
    %1381 = vmatpush1.msra.mxu0 0.0
    %1382 = vmatprep.subr.mxu0 0.0
    %1383 = vmatpush1.msra.mxu0 0.0
    %1384 = vmatprep.subr.mxu0 0.0
    %1385 = vmatpush1.msra.mxu0 0.0
    %1386 = vmatprep.subr.mxu0 0.0
    %1387 = vmatpush1.msra.mxu0 0.0
    %1388 = vmatprep.subr.mxu0 0.0
    %1389 = vmatpush1.msra.mxu0 0.0
    %1390 = vmatprep.subr.mxu0 0.0
    %1391 = vmatpush1.msra.mxu0 0.0
    %1392 = vmatprep.subr.mxu0 0.0
    %1393 = vmatpush1.msra.mxu0 0.0
    %1394 = vmatprep.subr.mxu0 0.0
    %1395 = vmatpush1.msra.mxu0 0.0
    %1396 = vmatprep.subr.mxu0 0.0
    %1397 = vmatpush1.msra.mxu0 0.0
    %1398 = vmatprep.subr.mxu0 0.0
    %1399 = vmatpush1.msra.mxu0 0.0
    %1400 = vmatprep.subr.mxu0 0.0
    %1401 = vmatpush1.msra.mxu0 0.0
    %1402 = vmatprep.subr.mxu0 0.0
    %1403 = vmatpush1.msra.mxu0 0.0
    %1404 = vmatprep.subr.mxu0 0.0
    %1405 = vmatpush1.msra.mxu0 0.0
    %1406 = vmatprep.subr.mxu0 0.0
    %1407 = vmatpush1.msra.mxu0 0.0
    %1408 = vmatprep.subr.mxu0 0.0
    %1409 = vmatpush1.msra.mxu0 0.0
    %1410 = vmatprep.mubr.f32.mxu0 0.0
    %1411 = vmatmul.mubr.f32.gmra.mrb[0].mxu0 %v1317
    %v1412 = vpop.f32.mrb[0].mxu0
    %v1413 = vadd.f32 %v643, %v1412
    %v1414 = vpop.f32.mrb[0].mxu0
    %v1415 = vadd.f32 %v647, %v1414
    %1416 = vdwg.mxu0
    %1417 = vmatprep.subr.mxu0 0.0
    %1418 = vmatpush1.msra.mxu0 %v544
    %1419 = vmatprep.subr.mxu0 0.0
    %1420 = vmatpush1.msra.mxu0 %v547
    %1421 = vmatprep.subr.mxu0 0.0
    %1422 = vmatpush1.msra.mxu0 %v550
    %1423 = vmatprep.subr.mxu0 0.0
    %1424 = vmatpush1.msra.mxu0 %v553
    %1425 = vmatprep.subr.mxu0 0.0
    %1426 = vmatpush1.msra.mxu0 %v556
    %1427 = vmatprep.subr.mxu0 0.0
    %1428 = vmatpush1.msra.mxu0 %v559
    %1429 = vmatprep.subr.mxu0 0.0
    %1430 = vmatpush1.msra.mxu0 %v562
    %1431 = vmatprep.subr.mxu0 0.0
    %1432 = vmatpush1.msra.mxu0 %v565
    %1433 = vmatprep.subr.mxu0 0.0
    %1434 = vmatpush1.msra.mxu0 %v568
    %1435 = vmatprep.subr.mxu0 0.0
    %1436 = vmatpush1.msra.mxu0 %v571
    %1437 = vmatprep.subr.mxu0 0.0
    %1438 = vmatpush1.msra.mxu0 %v574
    %1439 = vmatprep.subr.mxu0 0.0
    %1440 = vmatpush1.msra.mxu0 %v577
    %1441 = vmatprep.subr.mxu0 0.0
    %1442 = vmatpush1.msra.mxu0 %v580
    %1443 = vmatprep.subr.mxu0 0.0
    %1444 = vmatpush1.msra.mxu0 %v583
    %1445 = vmatprep.subr.mxu0 0.0
    %1446 = vmatpush1.msra.mxu0 %v586
    %1447 = vmatprep.subr.mxu0 0.0
    %1448 = vmatpush1.msra.mxu0 %v589
    %1449 = vmatprep.subr.mxu0 0.0
    %1450 = vmatpush1.msra.mxu0 0.0
    %1451 = vmatprep.subr.mxu0 0.0
    %1452 = vmatpush1.msra.mxu0 0.0
    %1453 = vmatprep.subr.mxu0 0.0
    %1454 = vmatpush1.msra.mxu0 0.0
    %1455 = vmatprep.subr.mxu0 0.0
    %1456 = vmatpush1.msra.mxu0 0.0
    %1457 = vmatprep.subr.mxu0 0.0
    %1458 = vmatpush1.msra.mxu0 0.0
    %1459 = vmatprep.subr.mxu0 0.0
    %1460 = vmatpush1.msra.mxu0 0.0
    %1461 = vmatprep.subr.mxu0 0.0
    %1462 = vmatpush1.msra.mxu0 0.0
    %1463 = vmatprep.subr.mxu0 0.0
    %1464 = vmatpush1.msra.mxu0 0.0
    %1465 = vmatprep.subr.mxu0 0.0
    %1466 = vmatpush1.msra.mxu0 0.0
    %1467 = vmatprep.subr.mxu0 0.0
    %1468 = vmatpush1.msra.mxu0 0.0
    %1469 = vmatprep.subr.mxu0 0.0
    %1470 = vmatpush1.msra.mxu0 0.0
    %1471 = vmatprep.subr.mxu0 0.0
    %1472 = vmatpush1.msra.mxu0 0.0
    %1473 = vmatprep.subr.mxu0 0.0
    %1474 = vmatpush1.msra.mxu0 0.0
    %1475 = vmatprep.subr.mxu0 0.0
    %1476 = vmatpush1.msra.mxu0 0.0
    %1477 = vmatprep.subr.mxu0 0.0
    %1478 = vmatpush1.msra.mxu0 0.0
    %1479 = vmatprep.subr.mxu0 0.0
    %1480 = vmatpush1.msra.mxu0 0.0
    %1481 = vmatprep.mubr.f32.mxu0 0.0
    %1482 = vmatmul.mubr.f32.gmra.mrb[0].mxu0 %v1317
    %v1483 = vpop.f32.mrb[0].mxu0
    %v1484 = vadd.f32 %v651, %v1483
    %v1485 = vpop.f32.mrb[0].mxu0
    %1486 = vdwg.mxu0
    %1487 = vmatprep.subr.mxu0 %v591
    %1488 = vmatpush1.msra.mxu0 %v590
    %1489 = vmatprep.subr.mxu0 %v594
    %1490 = vmatpush1.msra.mxu0 %v593
    %1491 = vmatprep.subr.mxu0 %v597
    %1492 = vmatpush1.msra.mxu0 %v596
    %1493 = vmatprep.subr.mxu0 %v600
    %1494 = vmatpush1.msra.mxu0 %v599
    %1495 = vmatprep.subr.mxu0 %v603
    %1496 = vmatpush1.msra.mxu0 %v602
    %1497 = vmatprep.subr.mxu0 %v606
    %1498 = vmatpush1.msra.mxu0 %v605
    %1499 = vmatprep.subr.mxu0 %v609
    %1500 = vmatpush1.msra.mxu0 %v608
    %1501 = vmatprep.subr.mxu0 %v612
    %1502 = vmatpush1.msra.mxu0 %v611
    %1503 = vmatprep.subr.mxu0 %v615
    %1504 = vmatpush1.msra.mxu0 %v614
    %1505 = vmatprep.subr.mxu0 %v618
    %1506 = vmatpush1.msra.mxu0 %v617
    %1507 = vmatprep.subr.mxu0 %v621
    %1508 = vmatpush1.msra.mxu0 %v620
    %1509 = vmatprep.subr.mxu0 %v624
    %1510 = vmatpush1.msra.mxu0 %v623
    %1511 = vmatprep.subr.mxu0 %v627
    %1512 = vmatpush1.msra.mxu0 %v626
    %1513 = vmatprep.subr.mxu0 %v630
    %1514 = vmatpush1.msra.mxu0 %v629
    %1515 = vmatprep.subr.mxu0 %v633
    %1516 = vmatpush1.msra.mxu0 %v632
    %1517 = vmatprep.subr.mxu0 %v636
    %1518 = vmatpush1.msra.mxu0 %v635
    %1519 = vmatprep.subr.mxu0 0.0
    %1520 = vmatpush1.msra.mxu0 0.0
    %1521 = vmatprep.subr.mxu0 0.0
    %1522 = vmatpush1.msra.mxu0 0.0
    %1523 = vmatprep.subr.mxu0 0.0
    %1524 = vmatpush1.msra.mxu0 0.0
    %1525 = vmatprep.subr.mxu0 0.0
    %1526 = vmatpush1.msra.mxu0 0.0
    %1527 = vmatprep.subr.mxu0 0.0
    %1528 = vmatpush1.msra.mxu0 0.0
    %1529 = vmatprep.subr.mxu0 0.0
    %1530 = vmatpush1.msra.mxu0 0.0
    %1531 = vmatprep.subr.mxu0 0.0
    %1532 = vmatpush1.msra.mxu0 0.0
    %1533 = vmatprep.subr.mxu0 0.0
    %1534 = vmatpush1.msra.mxu0 0.0
    %1535 = vmatprep.subr.mxu0 0.0
    %1536 = vmatpush1.msra.mxu0 0.0
    %1537 = vmatprep.subr.mxu0 0.0
    %1538 = vmatpush1.msra.mxu0 0.0
    %1539 = vmatprep.subr.mxu0 0.0
    %1540 = vmatpush1.msra.mxu0 0.0
    %1541 = vmatprep.subr.mxu0 0.0
    %1542 = vmatpush1.msra.mxu0 0.0
    %1543 = vmatprep.subr.mxu0 0.0
    %1544 = vmatpush1.msra.mxu0 0.0
    %1545 = vmatprep.subr.mxu0 0.0
    %1546 = vmatpush1.msra.mxu0 0.0
    %1547 = vmatprep.subr.mxu0 0.0
    %1548 = vmatpush1.msra.mxu0 0.0
    %1549 = vmatprep.subr.mxu0 0.0
    %1550 = vmatpush1.msra.mxu0 0.0
    %1551 = vmatprep.mubr.f32.mxu0 0.0
    %1552 = vmatmul.mubr.f32.gmra.mrb[0].mxu0 %v1343
    %v1553 = vpop.f32.mrb[0].mxu0
    %v1554 = vadd.f32 %v660, %v1553
    %v1555 = vpop.f32.mrb[0].mxu0
    %v1556 = vadd.f32 %v664, %v1555
    %1557 = vdwg.mxu0
    %1558 = vmatprep.subr.mxu0 0.0
    %1559 = vmatpush1.msra.mxu0 %v592
    %1560 = vmatprep.subr.mxu0 0.0
    %1561 = vmatpush1.msra.mxu0 %v595
    %1562 = vmatprep.subr.mxu0 0.0
    %1563 = vmatpush1.msra.mxu0 %v598
    %1564 = vmatprep.subr.mxu0 0.0
    %1565 = vmatpush1.msra.mxu0 %v601
    %1566 = vmatprep.subr.mxu0 0.0
    %1567 = vmatpush1.msra.mxu0 %v604
    %1568 = vmatprep.subr.mxu0 0.0
    %1569 = vmatpush1.msra.mxu0 %v607
    %1570 = vmatprep.subr.mxu0 0.0
    %1571 = vmatpush1.msra.mxu0 %v610
    %1572 = vmatprep.subr.mxu0 0.0
    %1573 = vmatpush1.msra.mxu0 %v613
    %1574 = vmatprep.subr.mxu0 0.0
    %1575 = vmatpush1.msra.mxu0 %v616
    %1576 = vmatprep.subr.mxu0 0.0
    %1577 = vmatpush1.msra.mxu0 %v619
    %1578 = vmatprep.subr.mxu0 0.0
    %1579 = vmatpush1.msra.mxu0 %v622
    %1580 = vmatprep.subr.mxu0 0.0
    %1581 = vmatpush1.msra.mxu0 %v625
    %1582 = vmatprep.subr.mxu0 0.0
    %1583 = vmatpush1.msra.mxu0 %v628
    %1584 = vmatprep.subr.mxu0 0.0
    %1585 = vmatpush1.msra.mxu0 %v631
    %1586 = vmatprep.subr.mxu0 0.0
    %1587 = vmatpush1.msra.mxu0 %v634
    %1588 = vmatprep.subr.mxu0 0.0
    %1589 = vmatpush1.msra.mxu0 %v637
    %1590 = vmatprep.subr.mxu0 0.0
    %1591 = vmatpush1.msra.mxu0 0.0
    %1592 = vmatprep.subr.mxu0 0.0
    %1593 = vmatpush1.msra.mxu0 0.0
    %1594 = vmatprep.subr.mxu0 0.0
    %1595 = vmatpush1.msra.mxu0 0.0
    %1596 = vmatprep.subr.mxu0 0.0
    %1597 = vmatpush1.msra.mxu0 0.0
    %1598 = vmatprep.subr.mxu0 0.0
    %1599 = vmatpush1.msra.mxu0 0.0
    %1600 = vmatprep.subr.mxu0 0.0
    %1601 = vmatpush1.msra.mxu0 0.0
    %1602 = vmatprep.subr.mxu0 0.0
    %1603 = vmatpush1.msra.mxu0 0.0
    %1604 = vmatprep.subr.mxu0 0.0
    %1605 = vmatpush1.msra.mxu0 0.0
    %1606 = vmatprep.subr.mxu0 0.0
    %1607 = vmatpush1.msra.mxu0 0.0
    %1608 = vmatprep.subr.mxu0 0.0
    %1609 = vmatpush1.msra.mxu0 0.0
    %1610 = vmatprep.subr.mxu0 0.0
    %1611 = vmatpush1.msra.mxu0 0.0
    %1612 = vmatprep.subr.mxu0 0.0
    %1613 = vmatpush1.msra.mxu0 0.0
    %1614 = vmatprep.subr.mxu0 0.0
    %1615 = vmatpush1.msra.mxu0 0.0
    %1616 = vmatprep.subr.mxu0 0.0
    %1617 = vmatpush1.msra.mxu0 0.0
    %1618 = vmatprep.subr.mxu0 0.0
    %1619 = vmatpush1.msra.mxu0 0.0
    %1620 = vmatprep.subr.mxu0 0.0
    %1621 = vmatpush1.msra.mxu0 0.0
    %1622 = vmatprep.mubr.f32.mxu0 0.0
    %1623 = vmatmul.mubr.f32.gmra.mrb[0].mxu0 %v1343
    %v1624 = vpop.f32.mrb[0].mxu0
    %v1625 = vadd.f32 %v668, %v1624
    %v1626 = vpop.f32.mrb[0].mxu0
    %1627 = vdwg.mxu0
    %v1628 = vadd.f32 %v1344, %v1413
    %v1629 = vxor.u32 %v1628, 2147483648
    %v1630 = vmul.f32 %v1629, 1.442695
    %v1631 = vpow.pop %v1630
    %v1632 = vadd.f32 %v1631, 1.0
    %v1633 = vrcp.pop %v1632
    %v1634 = vmul.f32 1.0, %v1633
    %v1636 = vrot.slane %v1344, 2
    %v1638 = vadd.f32 %v1636, %v1415
    %v1639 = vxor.u32 %v1638, 2147483648
    %v1640 = vmul.f32 %v1639, 1.442695
    %v1641 = vpow.pop %v1640
    %v1642 = vadd.f32 %v1641, 1.0
    %v1643 = vrcp.pop %v1642
    %v1644 = vmul.f32 1.0, %v1643
    %v1645 = vmul.f32 %v1634, %v1484
    %v1646 = vrot.slane %v1344, 4
    %v1648 = vadd.f32 %v1646, %v1645
    %v1649 = vtanh.pop %v1648
    %v1650 = vsub.f32 1.0, %v1644
    %v1651 = vmul.f32 %v1650, %v1649
    %v1652 = vmul.f32 %v1644, %v1317
    %v1653 = vadd.f32 %v1651, %v1652
    %v1654 = vrot.slane %v1344, 6
    %v1656 = vadd.f32 %v1654, %v1554
    %v1657 = vxor.u32 %v1656, 2147483648
    %v1658 = vmul.f32 %v1657, 1.442695
    %v1659 = vpow.pop %v1658
    %v1660 = vadd.f32 %v1659, 1.0
    %v1661 = vrcp.pop %v1660
    %v1662 = vmul.f32 1.0, %v1661
    %v1663 = vadd.f32 %v1345, %v1556
    %v1664 = vxor.u32 %v1663, 2147483648
    %v1665 = vmul.f32 %v1664, 1.442695
    %v1666 = vpow.pop %v1665
    %v1667 = vadd.f32 %v1666, 1.0
    %v1668 = vrcp.pop %v1667
    %v1669 = vmul.f32 1.0, %v1668
    %v1670 = vmul.f32 %v1662, %v1625
    %v1672 = vrot.slane %v1345, 2
    %v1674 = vadd.f32 %v1672, %v1670
    %v1675 = vtanh.pop %v1674
    %v1676 = vsub.f32 1.0, %v1669
    %v1677 = vmul.f32 %v1676, %v1675
    %v1678 = vmul.f32 %v1669, %v1343
    %v1679 = vadd.f32 %v1677, %v1678
    %v1680 = vld [vmem:[%s441] sm:$0xff]
    %v1681 = vld [vmem:[%s441 + $0x8] sm:$0xf]
    %1682 = vmatprep.subr.mxu0 %v543
    %1683 = vmatpush1.msra.mxu0 %v542
    %1684 = vmatprep.subr.mxu0 %v546
    %1685 = vmatpush1.msra.mxu0 %v545
    %1686 = vmatprep.subr.mxu0 %v549
    %1687 = vmatpush1.msra.mxu0 %v548
    %1688 = vmatprep.subr.mxu0 %v552
    %1689 = vmatpush1.msra.mxu0 %v551
    %1690 = vmatprep.subr.mxu0 %v555
    %1691 = vmatpush1.msra.mxu0 %v554
    %1692 = vmatprep.subr.mxu0 %v558
    %1693 = vmatpush1.msra.mxu0 %v557
    %1694 = vmatprep.subr.mxu0 %v561
    %1695 = vmatpush1.msra.mxu0 %v560
    %1696 = vmatprep.subr.mxu0 %v564
    %1697 = vmatpush1.msra.mxu0 %v563
    %1698 = vmatprep.subr.mxu0 %v567
    %1699 = vmatpush1.msra.mxu0 %v566
    %1700 = vmatprep.subr.mxu0 %v570
    %1701 = vmatpush1.msra.mxu0 %v569
    %1702 = vmatprep.subr.mxu0 %v573
    %1703 = vmatpush1.msra.mxu0 %v572
    %1704 = vmatprep.subr.mxu0 %v576
    %1705 = vmatpush1.msra.mxu0 %v575
    %1706 = vmatprep.subr.mxu0 %v579
    %1707 = vmatpush1.msra.mxu0 %v578
    %1708 = vmatprep.subr.mxu0 %v582
    %1709 = vmatpush1.msra.mxu0 %v581
    %1710 = vmatprep.subr.mxu0 %v585
    %1711 = vmatpush1.msra.mxu0 %v584
    %1712 = vmatprep.subr.mxu0 %v588
    %1713 = vmatpush1.msra.mxu0 %v587
    %1714 = vmatprep.subr.mxu0 0.0
    %1715 = vmatpush1.msra.mxu0 0.0
    %1716 = vmatprep.subr.mxu0 0.0
    %1717 = vmatpush1.msra.mxu0 0.0
    %1718 = vmatprep.subr.mxu0 0.0
    %1719 = vmatpush1.msra.mxu0 0.0
    %1720 = vmatprep.subr.mxu0 0.0
    %1721 = vmatpush1.msra.mxu0 0.0
    %1722 = vmatprep.subr.mxu0 0.0
    %1723 = vmatpush1.msra.mxu0 0.0
    %1724 = vmatprep.subr.mxu0 0.0
    %1725 = vmatpush1.msra.mxu0 0.0
    %1726 = vmatprep.subr.mxu0 0.0
    %1727 = vmatpush1.msra.mxu0 0.0
    %1728 = vmatprep.subr.mxu0 0.0
    %1729 = vmatpush1.msra.mxu0 0.0
    %1730 = vmatprep.subr.mxu0 0.0
    %1731 = vmatpush1.msra.mxu0 0.0
    %1732 = vmatprep.subr.mxu0 0.0
    %1733 = vmatpush1.msra.mxu0 0.0
    %1734 = vmatprep.subr.mxu0 0.0
    %1735 = vmatpush1.msra.mxu0 0.0
    %1736 = vmatprep.subr.mxu0 0.0
    %1737 = vmatpush1.msra.mxu0 0.0
    %1738 = vmatprep.subr.mxu0 0.0
    %1739 = vmatpush1.msra.mxu0 0.0
    %1740 = vmatprep.subr.mxu0 0.0
    %1741 = vmatpush1.msra.mxu0 0.0
    %1742 = vmatprep.subr.mxu0 0.0
    %1743 = vmatpush1.msra.mxu0 0.0
    %1744 = vmatprep.subr.mxu0 0.0
    %1745 = vmatpush1.msra.mxu0 0.0
    %1746 = vmatprep.mubr.f32.mxu0 0.0
    %1747 = vmatmul.mubr.f32.gmra.mrb[0].mxu0 %v1653
    %v1748 = vpop.f32.mrb[0].mxu0
    %v1749 = vadd.f32 %v643, %v1748
    %v1750 = vpop.f32.mrb[0].mxu0
    %v1751 = vadd.f32 %v647, %v1750
    %1752 = vdwg.mxu0
    %1753 = vmatprep.subr.mxu0 0.0
    %1754 = vmatpush1.msra.mxu0 %v544
    %1755 = vmatprep.subr.mxu0 0.0
    %1756 = vmatpush1.msra.mxu0 %v547
    %1757 = vmatprep.subr.mxu0 0.0
    %1758 = vmatpush1.msra.mxu0 %v550
    %1759 = vmatprep.subr.mxu0 0.0
    %1760 = vmatpush1.msra.mxu0 %v553
    %1761 = vmatprep.subr.mxu0 0.0
    %1762 = vmatpush1.msra.mxu0 %v556
    %1763 = vmatprep.subr.mxu0 0.0
    %1764 = vmatpush1.msra.mxu0 %v559
    %1765 = vmatprep.subr.mxu0 0.0
    %1766 = vmatpush1.msra.mxu0 %v562
    %1767 = vmatprep.subr.mxu0 0.0
    %1768 = vmatpush1.msra.mxu0 %v565
    %1769 = vmatprep.subr.mxu0 0.0
    %1770 = vmatpush1.msra.mxu0 %v568
    %1771 = vmatprep.subr.mxu0 0.0
    %1772 = vmatpush1.msra.mxu0 %v571
    %1773 = vmatprep.subr.mxu0 0.0
    %1774 = vmatpush1.msra.mxu0 %v574
    %1775 = vmatprep.subr.mxu0 0.0
    %1776 = vmatpush1.msra.mxu0 %v577
    %1777 = vmatprep.subr.mxu0 0.0
    %1778 = vmatpush1.msra.mxu0 %v580
    %1779 = vmatprep.subr.mxu0 0.0
    %1780 = vmatpush1.msra.mxu0 %v583
    %1781 = vmatprep.subr.mxu0 0.0
    %1782 = vmatpush1.msra.mxu0 %v586
    %1783 = vmatprep.subr.mxu0 0.0
    %1784 = vmatpush1.msra.mxu0 %v589
    %1785 = vmatprep.subr.mxu0 0.0
    %1786 = vmatpush1.msra.mxu0 0.0
    %1787 = vmatprep.subr.mxu0 0.0
    %1788 = vmatpush1.msra.mxu0 0.0
    %1789 = vmatprep.subr.mxu0 0.0
    %1790 = vmatpush1.msra.mxu0 0.0
    %1791 = vmatprep.subr.mxu0 0.0
    %1792 = vmatpush1.msra.mxu0 0.0
    %1793 = vmatprep.subr.mxu0 0.0
    %1794 = vmatpush1.msra.mxu0 0.0
    %1795 = vmatprep.subr.mxu0 0.0
    %1796 = vmatpush1.msra.mxu0 0.0
    %1797 = vmatprep.subr.mxu0 0.0
    %1798 = vmatpush1.msra.mxu0 0.0
    %1799 = vmatprep.subr.mxu0 0.0
    %1800 = vmatpush1.msra.mxu0 0.0
    %1801 = vmatprep.subr.mxu0 0.0
    %1802 = vmatpush1.msra.mxu0 0.0
    %1803 = vmatprep.subr.mxu0 0.0
    %1804 = vmatpush1.msra.mxu0 0.0
    %1805 = vmatprep.subr.mxu0 0.0
    %1806 = vmatpush1.msra.mxu0 0.0
    %1807 = vmatprep.subr.mxu0 0.0
    %1808 = vmatpush1.msra.mxu0 0.0
    %1809 = vmatprep.subr.mxu0 0.0
    %1810 = vmatpush1.msra.mxu0 0.0
    %1811 = vmatprep.subr.mxu0 0.0
    %1812 = vmatpush1.msra.mxu0 0.0
    %1813 = vmatprep.subr.mxu0 0.0
    %1814 = vmatpush1.msra.mxu0 0.0
    %1815 = vmatprep.subr.mxu0 0.0
    %1816 = vmatpush1.msra.mxu0 0.0
    %1817 = vmatprep.mubr.f32.mxu0 0.0
    %1818 = vmatmul.mubr.f32.gmra.mrb[0].mxu0 %v1653
    %v1819 = vpop.f32.mrb[0].mxu0
    %v1820 = vadd.f32 %v651, %v1819
    %v1821 = vpop.f32.mrb[0].mxu0
    %1822 = vdwg.mxu0
    %1823 = vmatprep.subr.mxu0 %v591
    %1824 = vmatpush1.msra.mxu0 %v590
    %1825 = vmatprep.subr.mxu0 %v594
    %1826 = vmatpush1.msra.mxu0 %v593
    %1827 = vmatprep.subr.mxu0 %v597
    %1828 = vmatpush1.msra.mxu0 %v596
    %1829 = vmatprep.subr.mxu0 %v600
    %1830 = vmatpush1.msra.mxu0 %v599
    %1831 = vmatprep.subr.mxu0 %v603
    %1832 = vmatpush1.msra.mxu0 %v602
    %1833 = vmatprep.subr.mxu0 %v606
    %1834 = vmatpush1.msra.mxu0 %v605
    %1835 = vmatprep.subr.mxu0 %v609
    %1836 = vmatpush1.msra.mxu0 %v608
    %1837 = vmatprep.subr.mxu0 %v612
    %1838 = vmatpush1.msra.mxu0 %v611
    %1839 = vmatprep.subr.mxu0 %v615
    %1840 = vmatpush1.msra.mxu0 %v614
    %1841 = vmatprep.subr.mxu0 %v618
    %1842 = vmatpush1.msra.mxu0 %v617
    %1843 = vmatprep.subr.mxu0 %v621
    %1844 = vmatpush1.msra.mxu0 %v620
    %1845 = vmatprep.subr.mxu0 %v624
    %1846 = vmatpush1.msra.mxu0 %v623
    %1847 = vmatprep.subr.mxu0 %v627
    %1848 = vmatpush1.msra.mxu0 %v626
    %1849 = vmatprep.subr.mxu0 %v630
    %1850 = vmatpush1.msra.mxu0 %v629
    %1851 = vmatprep.subr.mxu0 %v633
    %1852 = vmatpush1.msra.mxu0 %v632
    %1853 = vmatprep.subr.mxu0 %v636
    %1854 = vmatpush1.msra.mxu0 %v635
    %1855 = vmatprep.subr.mxu0 0.0
    %1856 = vmatpush1.msra.mxu0 0.0
    %1857 = vmatprep.subr.mxu0 0.0
    %1858 = vmatpush1.msra.mxu0 0.0
    %1859 = vmatprep.subr.mxu0 0.0
    %1860 = vmatpush1.msra.mxu0 0.0
    %1861 = vmatprep.subr.mxu0 0.0
    %1862 = vmatpush1.msra.mxu0 0.0
    %1863 = vmatprep.subr.mxu0 0.0
    %1864 = vmatpush1.msra.mxu0 0.0
    %1865 = vmatprep.subr.mxu0 0.0
    %1866 = vmatpush1.msra.mxu0 0.0
    %1867 = vmatprep.subr.mxu0 0.0
    %1868 = vmatpush1.msra.mxu0 0.0
    %1869 = vmatprep.subr.mxu0 0.0
    %1870 = vmatpush1.msra.mxu0 0.0
    %1871 = vmatprep.subr.mxu0 0.0
    %1872 = vmatpush1.msra.mxu0 0.0
    %1873 = vmatprep.subr.mxu0 0.0
    %1874 = vmatpush1.msra.mxu0 0.0
    %1875 = vmatprep.subr.mxu0 0.0
    %1876 = vmatpush1.msra.mxu0 0.0
    %1877 = vmatprep.subr.mxu0 0.0
    %1878 = vmatpush1.msra.mxu0 0.0
    %1879 = vmatprep.subr.mxu0 0.0
    %1880 = vmatpush1.msra.mxu0 0.0
    %1881 = vmatprep.subr.mxu0 0.0
    %1882 = vmatpush1.msra.mxu0 0.0
    %1883 = vmatprep.subr.mxu0 0.0
    %1884 = vmatpush1.msra.mxu0 0.0
    %1885 = vmatprep.subr.mxu0 0.0
    %1886 = vmatpush1.msra.mxu0 0.0
    %1887 = vmatprep.mubr.f32.mxu0 0.0
    %1888 = vmatmul.mubr.f32.gmra.mrb[0].mxu0 %v1679
    %v1889 = vpop.f32.mrb[0].mxu0
    %v1890 = vadd.f32 %v660, %v1889
    %v1891 = vpop.f32.mrb[0].mxu0
    %v1892 = vadd.f32 %v664, %v1891
    %1893 = vdwg.mxu0
    %1894 = vmatprep.subr.mxu0 0.0
    %1895 = vmatpush1.msra.mxu0 %v592
    %1896 = vmatprep.subr.mxu0 0.0
    %1897 = vmatpush1.msra.mxu0 %v595
    %1898 = vmatprep.subr.mxu0 0.0
    %1899 = vmatpush1.msra.mxu0 %v598
    %1900 = vmatprep.subr.mxu0 0.0
    %1901 = vmatpush1.msra.mxu0 %v601
    %1902 = vmatprep.subr.mxu0 0.0
    %1903 = vmatpush1.msra.mxu0 %v604
    %1904 = vmatprep.subr.mxu0 0.0
    %1905 = vmatpush1.msra.mxu0 %v607
    %1906 = vmatprep.subr.mxu0 0.0
    %1907 = vmatpush1.msra.mxu0 %v610
    %1908 = vmatprep.subr.mxu0 0.0
    %1909 = vmatpush1.msra.mxu0 %v613
    %1910 = vmatprep.subr.mxu0 0.0
    %1911 = vmatpush1.msra.mxu0 %v616
    %1912 = vmatprep.subr.mxu0 0.0
    %1913 = vmatpush1.msra.mxu0 %v619
    %1914 = vmatprep.subr.mxu0 0.0
    %1915 = vmatpush1.msra.mxu0 %v622
    %1916 = vmatprep.subr.mxu0 0.0
    %1917 = vmatpush1.msra.mxu0 %v625
    %1918 = vmatprep.subr.mxu0 0.0
    %1919 = vmatpush1.msra.mxu0 %v628
    %1920 = vmatprep.subr.mxu0 0.0
    %1921 = vmatpush1.msra.mxu0 %v631
    %1922 = vmatprep.subr.mxu0 0.0
    %1923 = vmatpush1.msra.mxu0 %v634
    %1924 = vmatprep.subr.mxu0 0.0
    %1925 = vmatpush1.msra.mxu0 %v637
    %1926 = vmatprep.subr.mxu0 0.0
    %1927 = vmatpush1.msra.mxu0 0.0
    %1928 = vmatprep.subr.mxu0 0.0
    %1929 = vmatpush1.msra.mxu0 0.0
    %1930 = vmatprep.subr.mxu0 0.0
    %1931 = vmatpush1.msra.mxu0 0.0
    %1932 = vmatprep.subr.mxu0 0.0
    %1933 = vmatpush1.msra.mxu0 0.0
    %1934 = vmatprep.subr.mxu0 0.0
    %1935 = vmatpush1.msra.mxu0 0.0
    %1936 = vmatprep.subr.mxu0 0.0
    %1937 = vmatpush1.msra.mxu0 0.0
    %1938 = vmatprep.subr.mxu0 0.0
    %1939 = vmatpush1.msra.mxu0 0.0
    %1940 = vmatprep.subr.mxu0 0.0
    %1941 = vmatpush1.msra.mxu0 0.0
    %1942 = vmatprep.subr.mxu0 0.0
    %1943 = vmatpush1.msra.mxu0 0.0
    %1944 = vmatprep.subr.mxu0 0.0
    %1945 = vmatpush1.msra.mxu0 0.0
    %1946 = vmatprep.subr.mxu0 0.0
    %1947 = vmatpush1.msra.mxu0 0.0
    %1948 = vmatprep.subr.mxu0 0.0
    %1949 = vmatpush1.msra.mxu0 0.0
    %1950 = vmatprep.subr.mxu0 0.0
    %1951 = vmatpush1.msra.mxu0 0.0
    %1952 = vmatprep.subr.mxu0 0.0
    %1953 = vmatpush1.msra.mxu0 0.0
    %1954 = vmatprep.subr.mxu0 0.0
    %1955 = vmatpush1.msra.mxu0 0.0
    %1956 = vmatprep.subr.mxu0 0.0
    %1957 = vmatpush1.msra.mxu0 0.0
    %1958 = vmatprep.mubr.f32.mxu0 0.0
    %1959 = vmatmul.mubr.f32.gmra.mrb[0].mxu0 %v1679
    %v1960 = vpop.f32.mrb[0].mxu0
    %v1961 = vadd.f32 %v668, %v1960
    %v1962 = vpop.f32.mrb[0].mxu0
    %1963 = vdwg.mxu0
    %v1964 = vadd.f32 %v1680, %v1749
    %v1965 = vxor.u32 %v1964, 2147483648
    %v1966 = vmul.f32 %v1965, 1.442695
    %v1967 = vpow.pop %v1966
    %v1968 = vadd.f32 %v1967, 1.0
    %v1969 = vrcp.pop %v1968
    %v1970 = vmul.f32 1.0, %v1969
    %v1972 = vrot.slane %v1680, 2
    %v1974 = vadd.f32 %v1972, %v1751
    %v1975 = vxor.u32 %v1974, 2147483648
    %v1976 = vmul.f32 %v1975, 1.442695
    %v1977 = vpow.pop %v1976
    %v1978 = vadd.f32 %v1977, 1.0
    %v1979 = vrcp.pop %v1978
    %v1980 = vmul.f32 1.0, %v1979
    %v1981 = vmul.f32 %v1970, %v1820
    %v1982 = vrot.slane %v1680, 4
    %v1984 = vadd.f32 %v1982, %v1981
    %v1985 = vtanh.pop %v1984
    %v1986 = vsub.f32 1.0, %v1980
    %v1987 = vmul.f32 %v1986, %v1985
    %v1988 = vmul.f32 %v1980, %v1653
    %v1989 = vadd.f32 %v1987, %v1988
    %v1990 = vrot.slane %v1680, 6
    %v1992 = vadd.f32 %v1990, %v1890
    %v1993 = vxor.u32 %v1992, 2147483648
    %v1994 = vmul.f32 %v1993, 1.442695
    %v1995 = vpow.pop %v1994
    %v1996 = vadd.f32 %v1995, 1.0
    %v1997 = vrcp.pop %v1996
    %v1998 = vmul.f32 1.0, %v1997
    %v1999 = vadd.f32 %v1681, %v1892
    %v2000 = vxor.u32 %v1999, 2147483648
    %v2001 = vmul.f32 %v2000, 1.442695
    %v2002 = vpow.pop %v2001
    %v2003 = vadd.f32 %v2002, 1.0
    %v2004 = vrcp.pop %v2003
    %v2005 = vmul.f32 1.0, %v2004
    %v2006 = vmul.f32 %v1998, %v1961
    %v2008 = vrot.slane %v1681, 2
    %v2010 = vadd.f32 %v2008, %v2006
    %v2011 = vtanh.pop %v2010
    %v2012 = vsub.f32 1.0, %v2005
    %v2013 = vmul.f32 %v2012, %v2011
    %v2014 = vmul.f32 %v2005, %v1679
    %v2015 = vadd.f32 %v2013, %v2014
    %v2016 = vld [vmem:[%s466] sm:$0xff]
    %v2017 = vld [vmem:[%s466 + $0x8] sm:$0xf]
    %2018 = vmatprep.subr.mxu0 %v543
    %2019 = vmatpush1.msra.mxu0 %v542
    %2020 = vmatprep.subr.mxu0 %v546
    %2021 = vmatpush1.msra.mxu0 %v545
    %2022 = vmatprep.subr.mxu0 %v549
    %2023 = vmatpush1.msra.mxu0 %v548
    %2024 = vmatprep.subr.mxu0 %v552
    %2025 = vmatpush1.msra.mxu0 %v551
    %2026 = vmatprep.subr.mxu0 %v555
    %2027 = vmatpush1.msra.mxu0 %v554
    %2028 = vmatprep.subr.mxu0 %v558
    %2029 = vmatpush1.msra.mxu0 %v557
    %2030 = vmatprep.subr.mxu0 %v561
    %2031 = vmatpush1.msra.mxu0 %v560
    %2032 = vmatprep.subr.mxu0 %v564
    %2033 = vmatpush1.msra.mxu0 %v563
    %2034 = vmatprep.subr.mxu0 %v567
    %2035 = vmatpush1.msra.mxu0 %v566
    %2036 = vmatprep.subr.mxu0 %v570
    %2037 = vmatpush1.msra.mxu0 %v569
    %2038 = vmatprep.subr.mxu0 %v573
    %2039 = vmatpush1.msra.mxu0 %v572
    %2040 = vmatprep.subr.mxu0 %v576
    %2041 = vmatpush1.msra.mxu0 %v575
    %2042 = vmatprep.subr.mxu0 %v579
    %2043 = vmatpush1.msra.mxu0 %v578
    %2044 = vmatprep.subr.mxu0 %v582
    %2045 = vmatpush1.msra.mxu0 %v581
    %2046 = vmatprep.subr.mxu0 %v585
    %2047 = vmatpush1.msra.mxu0 %v584
    %2048 = vmatprep.subr.mxu0 %v588
    %2049 = vmatpush1.msra.mxu0 %v587
    %2050 = vmatprep.subr.mxu0 0.0
    %2051 = vmatpush1.msra.mxu0 0.0
    %2052 = vmatprep.subr.mxu0 0.0
    %2053 = vmatpush1.msra.mxu0 0.0
    %2054 = vmatprep.subr.mxu0 0.0
    %2055 = vmatpush1.msra.mxu0 0.0
    %2056 = vmatprep.subr.mxu0 0.0
    %2057 = vmatpush1.msra.mxu0 0.0
    %2058 = vmatprep.subr.mxu0 0.0
    %2059 = vmatpush1.msra.mxu0 0.0
    %2060 = vmatprep.subr.mxu0 0.0
    %2061 = vmatpush1.msra.mxu0 0.0
    %2062 = vmatprep.subr.mxu0 0.0
    %2063 = vmatpush1.msra.mxu0 0.0
    %2064 = vmatprep.subr.mxu0 0.0
    %2065 = vmatpush1.msra.mxu0 0.0
    %2066 = vmatprep.subr.mxu0 0.0
    %2067 = vmatpush1.msra.mxu0 0.0
    %2068 = vmatprep.subr.mxu0 0.0
    %2069 = vmatpush1.msra.mxu0 0.0
    %2070 = vmatprep.subr.mxu0 0.0
    %2071 = vmatpush1.msra.mxu0 0.0
    %2072 = vmatprep.subr.mxu0 0.0
    %2073 = vmatpush1.msra.mxu0 0.0
    %2074 = vmatprep.subr.mxu0 0.0
    %2075 = vmatpush1.msra.mxu0 0.0
    %2076 = vmatprep.subr.mxu0 0.0
    %2077 = vmatpush1.msra.mxu0 0.0
    %2078 = vmatprep.subr.mxu0 0.0
    %2079 = vmatpush1.msra.mxu0 0.0
    %2080 = vmatprep.subr.mxu0 0.0
    %2081 = vmatpush1.msra.mxu0 0.0
    %2082 = vmatprep.mubr.f32.mxu0 0.0
    %2083 = vmatmul.mubr.f32.gmra.mrb[0].mxu0 %v1989
    %v2084 = vpop.f32.mrb[0].mxu0
    %v2085 = vadd.f32 %v643, %v2084
    %v2086 = vpop.f32.mrb[0].mxu0
    %v2087 = vadd.f32 %v647, %v2086
    %2088 = vdwg.mxu0
    %2089 = vmatprep.subr.mxu0 0.0
    %2090 = vmatpush1.msra.mxu0 %v544
    %2091 = vmatprep.subr.mxu0 0.0
    %2092 = vmatpush1.msra.mxu0 %v547
    %2093 = vmatprep.subr.mxu0 0.0
    %2094 = vmatpush1.msra.mxu0 %v550
    %2095 = vmatprep.subr.mxu0 0.0
    %2096 = vmatpush1.msra.mxu0 %v553
    %2097 = vmatprep.subr.mxu0 0.0
    %2098 = vmatpush1.msra.mxu0 %v556
    %2099 = vmatprep.subr.mxu0 0.0
    %2100 = vmatpush1.msra.mxu0 %v559
    %2101 = vmatprep.subr.mxu0 0.0
    %2102 = vmatpush1.msra.mxu0 %v562
    %2103 = vmatprep.subr.mxu0 0.0
    %2104 = vmatpush1.msra.mxu0 %v565
    %2105 = vmatprep.subr.mxu0 0.0
    %2106 = vmatpush1.msra.mxu0 %v568
    %2107 = vmatprep.subr.mxu0 0.0
    %2108 = vmatpush1.msra.mxu0 %v571
    %2109 = vmatprep.subr.mxu0 0.0
    %2110 = vmatpush1.msra.mxu0 %v574
    %2111 = vmatprep.subr.mxu0 0.0
    %2112 = vmatpush1.msra.mxu0 %v577
    %2113 = vmatprep.subr.mxu0 0.0
    %2114 = vmatpush1.msra.mxu0 %v580
    %2115 = vmatprep.subr.mxu0 0.0
    %2116 = vmatpush1.msra.mxu0 %v583
    %2117 = vmatprep.subr.mxu0 0.0
    %2118 = vmatpush1.msra.mxu0 %v586
    %2119 = vmatprep.subr.mxu0 0.0
    %2120 = vmatpush1.msra.mxu0 %v589
    %2121 = vmatprep.subr.mxu0 0.0
    %2122 = vmatpush1.msra.mxu0 0.0
    %2123 = vmatprep.subr.mxu0 0.0
    %2124 = vmatpush1.msra.mxu0 0.0
    %2125 = vmatprep.subr.mxu0 0.0
    %2126 = vmatpush1.msra.mxu0 0.0
    %2127 = vmatprep.subr.mxu0 0.0
    %2128 = vmatpush1.msra.mxu0 0.0
    %2129 = vmatprep.subr.mxu0 0.0
    %2130 = vmatpush1.msra.mxu0 0.0
    %2131 = vmatprep.subr.mxu0 0.0
    %2132 = vmatpush1.msra.mxu0 0.0
    %2133 = vmatprep.subr.mxu0 0.0
    %2134 = vmatpush1.msra.mxu0 0.0
    %2135 = vmatprep.subr.mxu0 0.0
    %2136 = vmatpush1.msra.mxu0 0.0
    %2137 = vmatprep.subr.mxu0 0.0
    %2138 = vmatpush1.msra.mxu0 0.0
    %2139 = vmatprep.subr.mxu0 0.0
    %2140 = vmatpush1.msra.mxu0 0.0
    %2141 = vmatprep.subr.mxu0 0.0
    %2142 = vmatpush1.msra.mxu0 0.0
    %2143 = vmatprep.subr.mxu0 0.0
    %2144 = vmatpush1.msra.mxu0 0.0
    %2145 = vmatprep.subr.mxu0 0.0
    %2146 = vmatpush1.msra.mxu0 0.0
    %2147 = vmatprep.subr.mxu0 0.0
    %2148 = vmatpush1.msra.mxu0 0.0
    %2149 = vmatprep.subr.mxu0 0.0
    %2150 = vmatpush1.msra.mxu0 0.0
    %2151 = vmatprep.subr.mxu0 0.0
    %2152 = vmatpush1.msra.mxu0 0.0
    %2153 = vmatprep.mubr.f32.mxu0 0.0
    %2154 = vmatmul.mubr.f32.gmra.mrb[0].mxu0 %v1989
    %v2155 = vpop.f32.mrb[0].mxu0
    %v2156 = vadd.f32 %v651, %v2155
    %v2157 = vpop.f32.mrb[0].mxu0
    %2158 = vdwg.mxu0
    %2159 = vmatprep.subr.mxu0 %v591
    %2160 = vmatpush1.msra.mxu0 %v590
    %2161 = vmatprep.subr.mxu0 %v594
    %2162 = vmatpush1.msra.mxu0 %v593
    %2163 = vmatprep.subr.mxu0 %v597
    %2164 = vmatpush1.msra.mxu0 %v596
    %2165 = vmatprep.subr.mxu0 %v600
    %2166 = vmatpush1.msra.mxu0 %v599
    %2167 = vmatprep.subr.mxu0 %v603
    %2168 = vmatpush1.msra.mxu0 %v602
    %2169 = vmatprep.subr.mxu0 %v606
    %2170 = vmatpush1.msra.mxu0 %v605
    %2171 = vmatprep.subr.mxu0 %v609
    %2172 = vmatpush1.msra.mxu0 %v608
    %2173 = vmatprep.subr.mxu0 %v612
    %2174 = vmatpush1.msra.mxu0 %v611
    %2175 = vmatprep.subr.mxu0 %v615
    %2176 = vmatpush1.msra.mxu0 %v614
    %2177 = vmatprep.subr.mxu0 %v618
    %2178 = vmatpush1.msra.mxu0 %v617
    %2179 = vmatprep.subr.mxu0 %v621
    %2180 = vmatpush1.msra.mxu0 %v620
    %2181 = vmatprep.subr.mxu0 %v624
    %2182 = vmatpush1.msra.mxu0 %v623
    %2183 = vmatprep.subr.mxu0 %v627
    %2184 = vmatpush1.msra.mxu0 %v626
    %2185 = vmatprep.subr.mxu0 %v630
    %2186 = vmatpush1.msra.mxu0 %v629
    %2187 = vmatprep.subr.mxu0 %v633
    %2188 = vmatpush1.msra.mxu0 %v632
    %2189 = vmatprep.subr.mxu0 %v636
    %2190 = vmatpush1.msra.mxu0 %v635
    %2191 = vmatprep.subr.mxu0 0.0
    %2192 = vmatpush1.msra.mxu0 0.0
    %2193 = vmatprep.subr.mxu0 0.0
    %2194 = vmatpush1.msra.mxu0 0.0
    %2195 = vmatprep.subr.mxu0 0.0
    %2196 = vmatpush1.msra.mxu0 0.0
    %2197 = vmatprep.subr.mxu0 0.0
    %2198 = vmatpush1.msra.mxu0 0.0
    %2199 = vmatprep.subr.mxu0 0.0
    %2200 = vmatpush1.msra.mxu0 0.0
    %2201 = vmatprep.subr.mxu0 0.0
    %2202 = vmatpush1.msra.mxu0 0.0
    %2203 = vmatprep.subr.mxu0 0.0
    %2204 = vmatpush1.msra.mxu0 0.0
    %2205 = vmatprep.subr.mxu0 0.0
    %2206 = vmatpush1.msra.mxu0 0.0
    %2207 = vmatprep.subr.mxu0 0.0
    %2208 = vmatpush1.msra.mxu0 0.0
    %2209 = vmatprep.subr.mxu0 0.0
    %2210 = vmatpush1.msra.mxu0 0.0
    %2211 = vmatprep.subr.mxu0 0.0
    %2212 = vmatpush1.msra.mxu0 0.0
    %2213 = vmatprep.subr.mxu0 0.0
    %2214 = vmatpush1.msra.mxu0 0.0
    %2215 = vmatprep.subr.mxu0 0.0
    %2216 = vmatpush1.msra.mxu0 0.0
    %2217 = vmatprep.subr.mxu0 0.0
    %2218 = vmatpush1.msra.mxu0 0.0
    %2219 = vmatprep.subr.mxu0 0.0
    %2220 = vmatpush1.msra.mxu0 0.0
    %2221 = vmatprep.subr.mxu0 0.0
    %2222 = vmatpush1.msra.mxu0 0.0
    %2223 = vmatprep.mubr.f32.mxu0 0.0
    %2224 = vmatmul.mubr.f32.gmra.mrb[0].mxu0 %v2015
    %v2225 = vpop.f32.mrb[0].mxu0
    %v2226 = vadd.f32 %v660, %v2225
    %v2227 = vpop.f32.mrb[0].mxu0
    %v2228 = vadd.f32 %v664, %v2227
    %2229 = vdwg.mxu0
    %2230 = vmatprep.subr.mxu0 0.0
    %2231 = vmatpush1.msra.mxu0 %v592
    %2232 = vmatprep.subr.mxu0 0.0
    %2233 = vmatpush1.msra.mxu0 %v595
    %2234 = vmatprep.subr.mxu0 0.0
    %2235 = vmatpush1.msra.mxu0 %v598
    %2236 = vmatprep.subr.mxu0 0.0
    %2237 = vmatpush1.msra.mxu0 %v601
    %2238 = vmatprep.subr.mxu0 0.0
    %2239 = vmatpush1.msra.mxu0 %v604
    %2240 = vmatprep.subr.mxu0 0.0
    %2241 = vmatpush1.msra.mxu0 %v607
    %2242 = vmatprep.subr.mxu0 0.0
    %2243 = vmatpush1.msra.mxu0 %v610
    %2244 = vmatprep.subr.mxu0 0.0
    %2245 = vmatpush1.msra.mxu0 %v613
    %2246 = vmatprep.subr.mxu0 0.0
    %2247 = vmatpush1.msra.mxu0 %v616
    %2248 = vmatprep.subr.mxu0 0.0
    %2249 = vmatpush1.msra.mxu0 %v619
    %2250 = vmatprep.subr.mxu0 0.0
    %2251 = vmatpush1.msra.mxu0 %v622
    %2252 = vmatprep.subr.mxu0 0.0
    %2253 = vmatpush1.msra.mxu0 %v625
    %2254 = vmatprep.subr.mxu0 0.0
    %2255 = vmatpush1.msra.mxu0 %v628
    %2256 = vmatprep.subr.mxu0 0.0
    %2257 = vmatpush1.msra.mxu0 %v631
    %2258 = vmatprep.subr.mxu0 0.0
    %2259 = vmatpush1.msra.mxu0 %v634
    %2260 = vmatprep.subr.mxu0 0.0
    %2261 = vmatpush1.msra.mxu0 %v637
    %2262 = vmatprep.subr.mxu0 0.0
    %2263 = vmatpush1.msra.mxu0 0.0
    %2264 = vmatprep.subr.mxu0 0.0
    %2265 = vmatpush1.msra.mxu0 0.0
    %2266 = vmatprep.subr.mxu0 0.0
    %2267 = vmatpush1.msra.mxu0 0.0
    %2268 = vmatprep.subr.mxu0 0.0
    %2269 = vmatpush1.msra.mxu0 0.0
    %2270 = vmatprep.subr.mxu0 0.0
    %2271 = vmatpush1.msra.mxu0 0.0
    %2272 = vmatprep.subr.mxu0 0.0
    %2273 = vmatpush1.msra.mxu0 0.0
    %2274 = vmatprep.subr.mxu0 0.0
    %2275 = vmatpush1.msra.mxu0 0.0
    %2276 = vmatprep.subr.mxu0 0.0
    %2277 = vmatpush1.msra.mxu0 0.0
    %2278 = vmatprep.subr.mxu0 0.0
    %2279 = vmatpush1.msra.mxu0 0.0
    %2280 = vmatprep.subr.mxu0 0.0
    %2281 = vmatpush1.msra.mxu0 0.0
    %2282 = vmatprep.subr.mxu0 0.0
    %2283 = vmatpush1.msra.mxu0 0.0
    %2284 = vmatprep.subr.mxu0 0.0
    %2285 = vmatpush1.msra.mxu0 0.0
    %2286 = vmatprep.subr.mxu0 0.0
    %2287 = vmatpush1.msra.mxu0 0.0
    %2288 = vmatprep.subr.mxu0 0.0
    %2289 = vmatpush1.msra.mxu0 0.0
    %2290 = vmatprep.subr.mxu0 0.0
    %2291 = vmatpush1.msra.mxu0 0.0
    %2292 = vmatprep.subr.mxu0 0.0
    %2293 = vmatpush1.msra.mxu0 0.0
    %2294 = vmatprep.mubr.f32.mxu0 0.0
    %2295 = vmatmul.mubr.f32.gmra.mrb[0].mxu0 %v2015
    %v2296 = vpop.f32.mrb[0].mxu0
    %v2297 = vadd.f32 %v668, %v2296
    %v2298 = vpop.f32.mrb[0].mxu0
    %2299 = vdwg.mxu0
    %v2300 = vadd.f32 %v2016, %v2085
    %v2301 = vxor.u32 %v2300, 2147483648
    %v2302 = vmul.f32 %v2301, 1.442695
    %v2303 = vpow.pop %v2302
    %v2304 = vadd.f32 %v2303, 1.0
    %v2305 = vrcp.pop %v2304
    %v2306 = vmul.f32 1.0, %v2305
    %v2308 = vrot.slane %v2016, 2
    %v2310 = vadd.f32 %v2308, %v2087
    %v2311 = vxor.u32 %v2310, 2147483648
    %v2312 = vmul.f32 %v2311, 1.442695
    %v2313 = vpow.pop %v2312
    %v2314 = vadd.f32 %v2313, 1.0
    %v2315 = vrcp.pop %v2314
    %v2316 = vmul.f32 1.0, %v2315
    %v2317 = vmul.f32 %v2306, %v2156
    %v2318 = vrot.slane %v2016, 4
    %v2320 = vadd.f32 %v2318, %v2317
    %v2321 = vtanh.pop %v2320
    %v2322 = vsub.f32 1.0, %v2316
    %v2323 = vmul.f32 %v2322, %v2321
    %v2324 = vmul.f32 %v2316, %v1989
    %v2325 = vadd.f32 %v2323, %v2324
    %v2326 = vrot.slane %v2016, 6
    %v2328 = vadd.f32 %v2326, %v2226
    %v2329 = vxor.u32 %v2328, 2147483648
    %v2330 = vmul.f32 %v2329, 1.442695
    %v2331 = vpow.pop %v2330
    %v2332 = vadd.f32 %v2331, 1.0
    %v2333 = vrcp.pop %v2332
    %v2334 = vmul.f32 1.0, %v2333
    %v2335 = vadd.f32 %v2017, %v2228
    %v2336 = vxor.u32 %v2335, 2147483648
    %v2337 = vmul.f32 %v2336, 1.442695
    %v2338 = vpow.pop %v2337
    %v2339 = vadd.f32 %v2338, 1.0
    %v2340 = vrcp.pop %v2339
    %v2341 = vmul.f32 1.0, %v2340
    %v2342 = vmul.f32 %v2334, %v2297
    %v2344 = vrot.slane %v2017, 2
    %v2346 = vadd.f32 %v2344, %v2342
    %v2347 = vtanh.pop %v2346
    %v2348 = vsub.f32 1.0, %v2341
    %v2349 = vmul.f32 %v2348, %v2347
    %v2350 = vmul.f32 %v2341, %v2015
    %v2351 = vadd.f32 %v2349, %v2350
    %v2352 = vld [vmem:[%s499] sm:$0xff]
    %v2353 = vld [vmem:[%s499 + $0x8] sm:$0xf]
    %2354 = vmatprep.subr.mxu0 %v543
    %2355 = vmatpush1.msra.mxu0 %v542
    %2356 = vmatprep.subr.mxu0 %v546
    %2357 = vmatpush1.msra.mxu0 %v545
    %2358 = vmatprep.subr.mxu0 %v549
    %2359 = vmatpush1.msra.mxu0 %v548
    %2360 = vmatprep.subr.mxu0 %v552
    %2361 = vmatpush1.msra.mxu0 %v551
    %2362 = vmatprep.subr.mxu0 %v555
    %2363 = vmatpush1.msra.mxu0 %v554
    %2364 = vmatprep.subr.mxu0 %v558
    %2365 = vmatpush1.msra.mxu0 %v557
    %2366 = vmatprep.subr.mxu0 %v561
    %2367 = vmatpush1.msra.mxu0 %v560
    %2368 = vmatprep.subr.mxu0 %v564
    %2369 = vmatpush1.msra.mxu0 %v563
    %2370 = vmatprep.subr.mxu0 %v567
    %2371 = vmatpush1.msra.mxu0 %v566
    %2372 = vmatprep.subr.mxu0 %v570
    %2373 = vmatpush1.msra.mxu0 %v569
    %2374 = vmatprep.subr.mxu0 %v573
    %2375 = vmatpush1.msra.mxu0 %v572
    %2376 = vmatprep.subr.mxu0 %v576
    %2377 = vmatpush1.msra.mxu0 %v575
    %2378 = vmatprep.subr.mxu0 %v579
    %2379 = vmatpush1.msra.mxu0 %v578
    %2380 = vmatprep.subr.mxu0 %v582
    %2381 = vmatpush1.msra.mxu0 %v581
    %2382 = vmatprep.subr.mxu0 %v585
    %2383 = vmatpush1.msra.mxu0 %v584
    %2384 = vmatprep.subr.mxu0 %v588
    %2385 = vmatpush1.msra.mxu0 %v587
    %2386 = vmatprep.subr.mxu0 0.0
    %2387 = vmatpush1.msra.mxu0 0.0
    %2388 = vmatprep.subr.mxu0 0.0
    %2389 = vmatpush1.msra.mxu0 0.0
    %2390 = vmatprep.subr.mxu0 0.0
    %2391 = vmatpush1.msra.mxu0 0.0
    %2392 = vmatprep.subr.mxu0 0.0
    %2393 = vmatpush1.msra.mxu0 0.0
    %2394 = vmatprep.subr.mxu0 0.0
    %2395 = vmatpush1.msra.mxu0 0.0
    %2396 = vmatprep.subr.mxu0 0.0
    %2397 = vmatpush1.msra.mxu0 0.0
    %2398 = vmatprep.subr.mxu0 0.0
    %2399 = vmatpush1.msra.mxu0 0.0
    %2400 = vmatprep.subr.mxu0 0.0
    %2401 = vmatpush1.msra.mxu0 0.0
    %2402 = vmatprep.subr.mxu0 0.0
    %2403 = vmatpush1.msra.mxu0 0.0
    %2404 = vmatprep.subr.mxu0 0.0
    %2405 = vmatpush1.msra.mxu0 0.0
    %2406 = vmatprep.subr.mxu0 0.0
    %2407 = vmatpush1.msra.mxu0 0.0
    %2408 = vmatprep.subr.mxu0 0.0
    %2409 = vmatpush1.msra.mxu0 0.0
    %2410 = vmatprep.subr.mxu0 0.0
    %2411 = vmatpush1.msra.mxu0 0.0
    %2412 = vmatprep.subr.mxu0 0.0
    %2413 = vmatpush1.msra.mxu0 0.0
    %2414 = vmatprep.subr.mxu0 0.0
    %2415 = vmatpush1.msra.mxu0 0.0
    %2416 = vmatprep.subr.mxu0 0.0
    %2417 = vmatpush1.msra.mxu0 0.0
    %2418 = vmatprep.mubr.f32.mxu0 0.0
    %2419 = vmatmul.mubr.f32.gmra.mrb[0].mxu0 %v2325
    %v2420 = vpop.f32.mrb[0].mxu0
    %v2421 = vadd.f32 %v643, %v2420
    %v2422 = vpop.f32.mrb[0].mxu0
    %v2423 = vadd.f32 %v647, %v2422
    %2424 = vdwg.mxu0
    %2425 = vmatprep.subr.mxu0 0.0
    %2426 = vmatpush1.msra.mxu0 %v544
    %2427 = vmatprep.subr.mxu0 0.0
    %2428 = vmatpush1.msra.mxu0 %v547
    %2429 = vmatprep.subr.mxu0 0.0
    %2430 = vmatpush1.msra.mxu0 %v550
    %2431 = vmatprep.subr.mxu0 0.0
    %2432 = vmatpush1.msra.mxu0 %v553
    %2433 = vmatprep.subr.mxu0 0.0
    %2434 = vmatpush1.msra.mxu0 %v556
    %2435 = vmatprep.subr.mxu0 0.0
    %2436 = vmatpush1.msra.mxu0 %v559
    %2437 = vmatprep.subr.mxu0 0.0
    %2438 = vmatpush1.msra.mxu0 %v562
    %2439 = vmatprep.subr.mxu0 0.0
    %2440 = vmatpush1.msra.mxu0 %v565
    %2441 = vmatprep.subr.mxu0 0.0
    %2442 = vmatpush1.msra.mxu0 %v568
    %2443 = vmatprep.subr.mxu0 0.0
    %2444 = vmatpush1.msra.mxu0 %v571
    %2445 = vmatprep.subr.mxu0 0.0
    %2446 = vmatpush1.msra.mxu0 %v574
    %2447 = vmatprep.subr.mxu0 0.0
    %2448 = vmatpush1.msra.mxu0 %v577
    %2449 = vmatprep.subr.mxu0 0.0
    %2450 = vmatpush1.msra.mxu0 %v580
    %2451 = vmatprep.subr.mxu0 0.0
    %2452 = vmatpush1.msra.mxu0 %v583
    %2453 = vmatprep.subr.mxu0 0.0
    %2454 = vmatpush1.msra.mxu0 %v586
    %2455 = vmatprep.subr.mxu0 0.0
    %2456 = vmatpush1.msra.mxu0 %v589
    %2457 = vmatprep.subr.mxu0 0.0
    %2458 = vmatpush1.msra.mxu0 0.0
    %2459 = vmatprep.subr.mxu0 0.0
    %2460 = vmatpush1.msra.mxu0 0.0
    %2461 = vmatprep.subr.mxu0 0.0
    %2462 = vmatpush1.msra.mxu0 0.0
    %2463 = vmatprep.subr.mxu0 0.0
    %2464 = vmatpush1.msra.mxu0 0.0
    %2465 = vmatprep.subr.mxu0 0.0
    %2466 = vmatpush1.msra.mxu0 0.0
    %2467 = vmatprep.subr.mxu0 0.0
    %2468 = vmatpush1.msra.mxu0 0.0
    %2469 = vmatprep.subr.mxu0 0.0
    %2470 = vmatpush1.msra.mxu0 0.0
    %2471 = vmatprep.subr.mxu0 0.0
    %2472 = vmatpush1.msra.mxu0 0.0
    %2473 = vmatprep.subr.mxu0 0.0
    %2474 = vmatpush1.msra.mxu0 0.0
    %2475 = vmatprep.subr.mxu0 0.0
    %2476 = vmatpush1.msra.mxu0 0.0
    %2477 = vmatprep.subr.mxu0 0.0
    %2478 = vmatpush1.msra.mxu0 0.0
    %2479 = vmatprep.subr.mxu0 0.0
    %2480 = vmatpush1.msra.mxu0 0.0
    %2481 = vmatprep.subr.mxu0 0.0
    %2482 = vmatpush1.msra.mxu0 0.0
    %2483 = vmatprep.subr.mxu0 0.0
    %2484 = vmatpush1.msra.mxu0 0.0
    %2485 = vmatprep.subr.mxu0 0.0
    %2486 = vmatpush1.msra.mxu0 0.0
    %2487 = vmatprep.subr.mxu0 0.0
    %2488 = vmatpush1.msra.mxu0 0.0
    %2489 = vmatprep.mubr.f32.mxu0 0.0
    %2490 = vmatmul.mubr.f32.gmra.mrb[0].mxu0 %v2325
    %v2491 = vpop.f32.mrb[0].mxu0
    %v2492 = vadd.f32 %v651, %v2491
    %v2493 = vpop.f32.mrb[0].mxu0
    %2494 = vdwg.mxu0
    %2495 = vmatprep.subr.mxu0 %v591
    %2496 = vmatpush1.msra.mxu0 %v590
    %2497 = vmatprep.subr.mxu0 %v594
    %2498 = vmatpush1.msra.mxu0 %v593
    %2499 = vmatprep.subr.mxu0 %v597
    %2500 = vmatpush1.msra.mxu0 %v596
    %2501 = vmatprep.subr.mxu0 %v600
    %2502 = vmatpush1.msra.mxu0 %v599
    %2503 = vmatprep.subr.mxu0 %v603
    %2504 = vmatpush1.msra.mxu0 %v602
    %2505 = vmatprep.subr.mxu0 %v606
    %2506 = vmatpush1.msra.mxu0 %v605
    %2507 = vmatprep.subr.mxu0 %v609
    %2508 = vmatpush1.msra.mxu0 %v608
    %2509 = vmatprep.subr.mxu0 %v612
    %2510 = vmatpush1.msra.mxu0 %v611
    %2511 = vmatprep.subr.mxu0 %v615
    %2512 = vmatpush1.msra.mxu0 %v614
    %2513 = vmatprep.subr.mxu0 %v618
    %2514 = vmatpush1.msra.mxu0 %v617
    %2515 = vmatprep.subr.mxu0 %v621
    %2516 = vmatpush1.msra.mxu0 %v620
    %2517 = vmatprep.subr.mxu0 %v624
    %2518 = vmatpush1.msra.mxu0 %v623
    %2519 = vmatprep.subr.mxu0 %v627
    %2520 = vmatpush1.msra.mxu0 %v626
    %2521 = vmatprep.subr.mxu0 %v630
    %2522 = vmatpush1.msra.mxu0 %v629
    %2523 = vmatprep.subr.mxu0 %v633
    %2524 = vmatpush1.msra.mxu0 %v632
    %2525 = vmatprep.subr.mxu0 %v636
    %2526 = vmatpush1.msra.mxu0 %v635
    %2527 = vmatprep.subr.mxu0 0.0
    %2528 = vmatpush1.msra.mxu0 0.0
    %2529 = vmatprep.subr.mxu0 0.0
    %2530 = vmatpush1.msra.mxu0 0.0
    %2531 = vmatprep.subr.mxu0 0.0
    %2532 = vmatpush1.msra.mxu0 0.0
    %2533 = vmatprep.subr.mxu0 0.0
    %2534 = vmatpush1.msra.mxu0 0.0
    %2535 = vmatprep.subr.mxu0 0.0
    %2536 = vmatpush1.msra.mxu0 0.0
    %2537 = vmatprep.subr.mxu0 0.0
    %2538 = vmatpush1.msra.mxu0 0.0
    %2539 = vmatprep.subr.mxu0 0.0
    %2540 = vmatpush1.msra.mxu0 0.0
    %2541 = vmatprep.subr.mxu0 0.0
    %2542 = vmatpush1.msra.mxu0 0.0
    %2543 = vmatprep.subr.mxu0 0.0
    %2544 = vmatpush1.msra.mxu0 0.0
    %2545 = vmatprep.subr.mxu0 0.0
    %2546 = vmatpush1.msra.mxu0 0.0
    %2547 = vmatprep.subr.mxu0 0.0
    %2548 = vmatpush1.msra.mxu0 0.0
    %2549 = vmatprep.subr.mxu0 0.0
    %2550 = vmatpush1.msra.mxu0 0.0
    %2551 = vmatprep.subr.mxu0 0.0
    %2552 = vmatpush1.msra.mxu0 0.0
    %2553 = vmatprep.subr.mxu0 0.0
    %2554 = vmatpush1.msra.mxu0 0.0
    %2555 = vmatprep.subr.mxu0 0.0
    %2556 = vmatpush1.msra.mxu0 0.0
    %2557 = vmatprep.subr.mxu0 0.0
    %2558 = vmatpush1.msra.mxu0 0.0
    %2559 = vmatprep.mubr.f32.mxu0 0.0
    %2560 = vmatmul.mubr.f32.gmra.mrb[0].mxu0 %v2351
    %v2561 = vpop.f32.mrb[0].mxu0
    %v2562 = vadd.f32 %v660, %v2561
    %v2563 = vpop.f32.mrb[0].mxu0
    %v2564 = vadd.f32 %v664, %v2563
    %2565 = vdwg.mxu0
    %2566 = vmatprep.subr.mxu0 0.0
    %2567 = vmatpush1.msra.mxu0 %v592
    %2568 = vmatprep.subr.mxu0 0.0
    %2569 = vmatpush1.msra.mxu0 %v595
    %2570 = vmatprep.subr.mxu0 0.0
    %2571 = vmatpush1.msra.mxu0 %v598
    %2572 = vmatprep.subr.mxu0 0.0
    %2573 = vmatpush1.msra.mxu0 %v601
    %2574 = vmatprep.subr.mxu0 0.0
    %2575 = vmatpush1.msra.mxu0 %v604
    %2576 = vmatprep.subr.mxu0 0.0
    %2577 = vmatpush1.msra.mxu0 %v607
    %2578 = vmatprep.subr.mxu0 0.0
    %2579 = vmatpush1.msra.mxu0 %v610
    %2580 = vmatprep.subr.mxu0 0.0
    %2581 = vmatpush1.msra.mxu0 %v613
    %2582 = vmatprep.subr.mxu0 0.0
    %2583 = vmatpush1.msra.mxu0 %v616
    %2584 = vmatprep.subr.mxu0 0.0
    %2585 = vmatpush1.msra.mxu0 %v619
    %2586 = vmatprep.subr.mxu0 0.0
    %2587 = vmatpush1.msra.mxu0 %v622
    %2588 = vmatprep.subr.mxu0 0.0
    %2589 = vmatpush1.msra.mxu0 %v625
    %2590 = vmatprep.subr.mxu0 0.0
    %2591 = vmatpush1.msra.mxu0 %v628
    %2592 = vmatprep.subr.mxu0 0.0
    %2593 = vmatpush1.msra.mxu0 %v631
    %2594 = vmatprep.subr.mxu0 0.0
    %2595 = vmatpush1.msra.mxu0 %v634
    %2596 = vmatprep.subr.mxu0 0.0
    %2597 = vmatpush1.msra.mxu0 %v637
    %2598 = vmatprep.subr.mxu0 0.0
    %2599 = vmatpush1.msra.mxu0 0.0
    %2600 = vmatprep.subr.mxu0 0.0
    %2601 = vmatpush1.msra.mxu0 0.0
    %2602 = vmatprep.subr.mxu0 0.0
    %2603 = vmatpush1.msra.mxu0 0.0
    %2604 = vmatprep.subr.mxu0 0.0
    %2605 = vmatpush1.msra.mxu0 0.0
    %2606 = vmatprep.subr.mxu0 0.0
    %2607 = vmatpush1.msra.mxu0 0.0
    %2608 = vmatprep.subr.mxu0 0.0
    %2609 = vmatpush1.msra.mxu0 0.0
    %2610 = vmatprep.subr.mxu0 0.0
    %2611 = vmatpush1.msra.mxu0 0.0
    %2612 = vmatprep.subr.mxu0 0.0
    %2613 = vmatpush1.msra.mxu0 0.0
    %2614 = vmatprep.subr.mxu0 0.0
    %2615 = vmatpush1.msra.mxu0 0.0
    %2616 = vmatprep.subr.mxu0 0.0
    %2617 = vmatpush1.msra.mxu0 0.0
    %2618 = vmatprep.subr.mxu0 0.0
    %2619 = vmatpush1.msra.mxu0 0.0
    %2620 = vmatprep.subr.mxu0 0.0
    %2621 = vmatpush1.msra.mxu0 0.0
    %2622 = vmatprep.subr.mxu0 0.0
    %2623 = vmatpush1.msra.mxu0 0.0
    %2624 = vmatprep.subr.mxu0 0.0
    %2625 = vmatpush1.msra.mxu0 0.0
    %2626 = vmatprep.subr.mxu0 0.0
    %2627 = vmatpush1.msra.mxu0 0.0
    %2628 = vmatprep.subr.mxu0 0.0
    %2629 = vmatpush1.msra.mxu0 0.0
    %2630 = vmatprep.mubr.f32.mxu0 0.0
    %2631 = vmatmul.mubr.f32.gmra.mrb[0].mxu0 %v2351
    %v2632 = vpop.f32.mrb[0].mxu0
    %v2633 = vadd.f32 %v668, %v2632
    %v2634 = vpop.f32.mrb[0].mxu0
    %2635 = vdwg.mxu0
    %v2636 = vadd.f32 %v2352, %v2421
    %v2637 = vxor.u32 %v2636, 2147483648
    %v2638 = vmul.f32 %v2637, 1.442695
    %v2639 = vpow.pop %v2638
    %v2640 = vadd.f32 %v2639, 1.0
    %v2641 = vrcp.pop %v2640
    %v2642 = vmul.f32 1.0, %v2641
    %v2644 = vrot.slane %v2352, 2
    %v2646 = vadd.f32 %v2644, %v2423
    %v2647 = vxor.u32 %v2646, 2147483648
    %v2648 = vmul.f32 %v2647, 1.442695
    %v2649 = vpow.pop %v2648
    %v2650 = vadd.f32 %v2649, 1.0
    %v2651 = vrcp.pop %v2650
    %v2652 = vmul.f32 1.0, %v2651
    %v2653 = vmul.f32 %v2642, %v2492
    %v2654 = vrot.slane %v2352, 4
    %v2656 = vadd.f32 %v2654, %v2653
    %v2657 = vtanh.pop %v2656
    %v2658 = vsub.f32 1.0, %v2652
    %v2659 = vmul.f32 %v2658, %v2657
    %v2660 = vmul.f32 %v2652, %v2325
    %v2661 = vadd.f32 %v2659, %v2660
    %v2662 = vrot.slane %v2352, 6
    %v2664 = vadd.f32 %v2662, %v2562
    %v2665 = vxor.u32 %v2664, 2147483648
    %v2666 = vmul.f32 %v2665, 1.442695
    %v2667 = vpow.pop %v2666
    %v2668 = vadd.f32 %v2667, 1.0
    %v2669 = vrcp.pop %v2668
    %v2670 = vmul.f32 1.0, %v2669
    %v2671 = vadd.f32 %v2353, %v2564
    %v2672 = vxor.u32 %v2671, 2147483648
    %v2673 = vmul.f32 %v2672, 1.442695
    %v2674 = vpow.pop %v2673
    %v2675 = vadd.f32 %v2674, 1.0
    %v2676 = vrcp.pop %v2675
    %v2677 = vmul.f32 1.0, %v2676
    %v2678 = vmul.f32 %v2670, %v2633
    %v2680 = vrot.slane %v2353, 2
    %v2682 = vadd.f32 %v2680, %v2678
    %v2683 = vtanh.pop %v2682
    %v2684 = vsub.f32 1.0, %v2677
    %v2685 = vmul.f32 %v2684, %v2683
    %v2686 = vmul.f32 %v2677, %v2351
    %v2687 = vadd.f32 %v2685, %v2686
    %v2688 = vld [vmem:[%s522] sm:$0xff]
    %v2689 = vld [vmem:[%s522 + $0x8] sm:$0xf]
    %2690 = vmatprep.subr.mxu0 %v543
    %2691 = vmatpush1.msra.mxu0 %v542
    %2692 = vmatprep.subr.mxu0 %v546
    %2693 = vmatpush1.msra.mxu0 %v545
    %2694 = vmatprep.subr.mxu0 %v549
    %2695 = vmatpush1.msra.mxu0 %v548
    %2696 = vmatprep.subr.mxu0 %v552
    %2697 = vmatpush1.msra.mxu0 %v551
    %2698 = vmatprep.subr.mxu0 %v555
    %2699 = vmatpush1.msra.mxu0 %v554
    %2700 = vmatprep.subr.mxu0 %v558
    %2701 = vmatpush1.msra.mxu0 %v557
    %2702 = vmatprep.subr.mxu0 %v561
    %2703 = vmatpush1.msra.mxu0 %v560
    %2704 = vmatprep.subr.mxu0 %v564
    %2705 = vmatpush1.msra.mxu0 %v563
    %2706 = vmatprep.subr.mxu0 %v567
    %2707 = vmatpush1.msra.mxu0 %v566
    %2708 = vmatprep.subr.mxu0 %v570
    %2709 = vmatpush1.msra.mxu0 %v569
    %2710 = vmatprep.subr.mxu0 %v573
    %2711 = vmatpush1.msra.mxu0 %v572
    %2712 = vmatprep.subr.mxu0 %v576
    %2713 = vmatpush1.msra.mxu0 %v575
    %2714 = vmatprep.subr.mxu0 %v579
    %2715 = vmatpush1.msra.mxu0 %v578
    %2716 = vmatprep.subr.mxu0 %v582
    %2717 = vmatpush1.msra.mxu0 %v581
    %2718 = vmatprep.subr.mxu0 %v585
    %2719 = vmatpush1.msra.mxu0 %v584
    %2720 = vmatprep.subr.mxu0 %v588
    %2721 = vmatpush1.msra.mxu0 %v587
    %2722 = vmatprep.subr.mxu0 0.0
    %2723 = vmatpush1.msra.mxu0 0.0
    %2724 = vmatprep.subr.mxu0 0.0
    %2725 = vmatpush1.msra.mxu0 0.0
    %2726 = vmatprep.subr.mxu0 0.0
    %2727 = vmatpush1.msra.mxu0 0.0
    %2728 = vmatprep.subr.mxu0 0.0
    %2729 = vmatpush1.msra.mxu0 0.0
    %2730 = vmatprep.subr.mxu0 0.0
    %2731 = vmatpush1.msra.mxu0 0.0
    %2732 = vmatprep.subr.mxu0 0.0
    %2733 = vmatpush1.msra.mxu0 0.0
    %2734 = vmatprep.subr.mxu0 0.0
    %2735 = vmatpush1.msra.mxu0 0.0
    %2736 = vmatprep.subr.mxu0 0.0
    %2737 = vmatpush1.msra.mxu0 0.0
    %2738 = vmatprep.subr.mxu0 0.0
    %2739 = vmatpush1.msra.mxu0 0.0
    %2740 = vmatprep.subr.mxu0 0.0
    %2741 = vmatpush1.msra.mxu0 0.0
    %2742 = vmatprep.subr.mxu0 0.0
    %2743 = vmatpush1.msra.mxu0 0.0
    %2744 = vmatprep.subr.mxu0 0.0
    %2745 = vmatpush1.msra.mxu0 0.0
    %2746 = vmatprep.subr.mxu0 0.0
    %2747 = vmatpush1.msra.mxu0 0.0
    %2748 = vmatprep.subr.mxu0 0.0
    %2749 = vmatpush1.msra.mxu0 0.0
    %2750 = vmatprep.subr.mxu0 0.0
    %2751 = vmatpush1.msra.mxu0 0.0
    %2752 = vmatprep.subr.mxu0 0.0
    %2753 = vmatpush1.msra.mxu0 0.0
    %2754 = vmatprep.mubr.f32.mxu0 0.0
    %2755 = vmatmul.mubr.f32.gmra.mrb[0].mxu0 %v2661
    %v2756 = vpop.f32.mrb[0].mxu0
    %v2757 = vadd.f32 %v643, %v2756
    %v2758 = vpop.f32.mrb[0].mxu0
    %v2759 = vadd.f32 %v647, %v2758
    %2760 = vdwg.mxu0
    %2761 = vmatprep.subr.mxu0 0.0
    %2762 = vmatpush1.msra.mxu0 %v544
    %2763 = vmatprep.subr.mxu0 0.0
    %2764 = vmatpush1.msra.mxu0 %v547
    %2765 = vmatprep.subr.mxu0 0.0
    %2766 = vmatpush1.msra.mxu0 %v550
    %2767 = vmatprep.subr.mxu0 0.0
    %2768 = vmatpush1.msra.mxu0 %v553
    %2769 = vmatprep.subr.mxu0 0.0
    %2770 = vmatpush1.msra.mxu0 %v556
    %2771 = vmatprep.subr.mxu0 0.0
    %2772 = vmatpush1.msra.mxu0 %v559
    %2773 = vmatprep.subr.mxu0 0.0
    %2774 = vmatpush1.msra.mxu0 %v562
    %2775 = vmatprep.subr.mxu0 0.0
    %2776 = vmatpush1.msra.mxu0 %v565
    %2777 = vmatprep.subr.mxu0 0.0
    %2778 = vmatpush1.msra.mxu0 %v568
    %2779 = vmatprep.subr.mxu0 0.0
    %2780 = vmatpush1.msra.mxu0 %v571
    %2781 = vmatprep.subr.mxu0 0.0
    %2782 = vmatpush1.msra.mxu0 %v574
    %2783 = vmatprep.subr.mxu0 0.0
    %2784 = vmatpush1.msra.mxu0 %v577
    %2785 = vmatprep.subr.mxu0 0.0
    %2786 = vmatpush1.msra.mxu0 %v580
    %2787 = vmatprep.subr.mxu0 0.0
    %2788 = vmatpush1.msra.mxu0 %v583
    %2789 = vmatprep.subr.mxu0 0.0
    %2790 = vmatpush1.msra.mxu0 %v586
    %2791 = vmatprep.subr.mxu0 0.0
    %2792 = vmatpush1.msra.mxu0 %v589
    %2793 = vmatprep.subr.mxu0 0.0
    %2794 = vmatpush1.msra.mxu0 0.0
    %2795 = vmatprep.subr.mxu0 0.0
    %2796 = vmatpush1.msra.mxu0 0.0
    %2797 = vmatprep.subr.mxu0 0.0
    %2798 = vmatpush1.msra.mxu0 0.0
    %2799 = vmatprep.subr.mxu0 0.0
    %2800 = vmatpush1.msra.mxu0 0.0
    %2801 = vmatprep.subr.mxu0 0.0
    %2802 = vmatpush1.msra.mxu0 0.0
    %2803 = vmatprep.subr.mxu0 0.0
    %2804 = vmatpush1.msra.mxu0 0.0
    %2805 = vmatprep.subr.mxu0 0.0
    %2806 = vmatpush1.msra.mxu0 0.0
    %2807 = vmatprep.subr.mxu0 0.0
    %2808 = vmatpush1.msra.mxu0 0.0
    %2809 = vmatprep.subr.mxu0 0.0
    %2810 = vmatpush1.msra.mxu0 0.0
    %2811 = vmatprep.subr.mxu0 0.0
    %2812 = vmatpush1.msra.mxu0 0.0
    %2813 = vmatprep.subr.mxu0 0.0
    %2814 = vmatpush1.msra.mxu0 0.0
    %2815 = vmatprep.subr.mxu0 0.0
    %2816 = vmatpush1.msra.mxu0 0.0
    %2817 = vmatprep.subr.mxu0 0.0
    %2818 = vmatpush1.msra.mxu0 0.0
    %2819 = vmatprep.subr.mxu0 0.0
    %2820 = vmatpush1.msra.mxu0 0.0
    %2821 = vmatprep.subr.mxu0 0.0
    %2822 = vmatpush1.msra.mxu0 0.0
    %2823 = vmatprep.subr.mxu0 0.0
    %2824 = vmatpush1.msra.mxu0 0.0
    %2825 = vmatprep.mubr.f32.mxu0 0.0
    %2826 = vmatmul.mubr.f32.gmra.mrb[0].mxu0 %v2661
    %v2827 = vpop.f32.mrb[0].mxu0
    %v2828 = vadd.f32 %v651, %v2827
    %v2829 = vpop.f32.mrb[0].mxu0
    %2830 = vdwg.mxu0
    %2831 = vmatprep.subr.mxu0 %v591
    %2832 = vmatpush1.msra.mxu0 %v590
    %2833 = vmatprep.subr.mxu0 %v594
    %2834 = vmatpush1.msra.mxu0 %v593
    %2835 = vmatprep.subr.mxu0 %v597
    %2836 = vmatpush1.msra.mxu0 %v596
    %2837 = vmatprep.subr.mxu0 %v600
    %2838 = vmatpush1.msra.mxu0 %v599
    %2839 = vmatprep.subr.mxu0 %v603
    %2840 = vmatpush1.msra.mxu0 %v602
    %2841 = vmatprep.subr.mxu0 %v606
    %2842 = vmatpush1.msra.mxu0 %v605
    %2843 = vmatprep.subr.mxu0 %v609
    %2844 = vmatpush1.msra.mxu0 %v608
    %2845 = vmatprep.subr.mxu0 %v612
    %2846 = vmatpush1.msra.mxu0 %v611
    %2847 = vmatprep.subr.mxu0 %v615
    %2848 = vmatpush1.msra.mxu0 %v614
    %2849 = vmatprep.subr.mxu0 %v618
    %2850 = vmatpush1.msra.mxu0 %v617
    %2851 = vmatprep.subr.mxu0 %v621
    %2852 = vmatpush1.msra.mxu0 %v620
    %2853 = vmatprep.subr.mxu0 %v624
    %2854 = vmatpush1.msra.mxu0 %v623
    %2855 = vmatprep.subr.mxu0 %v627
    %2856 = vmatpush1.msra.mxu0 %v626
    %2857 = vmatprep.subr.mxu0 %v630
    %2858 = vmatpush1.msra.mxu0 %v629
    %2859 = vmatprep.subr.mxu0 %v633
    %2860 = vmatpush1.msra.mxu0 %v632
    %2861 = vmatprep.subr.mxu0 %v636
    %2862 = vmatpush1.msra.mxu0 %v635
    %2863 = vmatprep.subr.mxu0 0.0
    %2864 = vmatpush1.msra.mxu0 0.0
    %2865 = vmatprep.subr.mxu0 0.0
    %2866 = vmatpush1.msra.mxu0 0.0
    %2867 = vmatprep.subr.mxu0 0.0
    %2868 = vmatpush1.msra.mxu0 0.0
    %2869 = vmatprep.subr.mxu0 0.0
    %2870 = vmatpush1.msra.mxu0 0.0
    %2871 = vmatprep.subr.mxu0 0.0
    %2872 = vmatpush1.msra.mxu0 0.0
    %2873 = vmatprep.subr.mxu0 0.0
    %2874 = vmatpush1.msra.mxu0 0.0
    %2875 = vmatprep.subr.mxu0 0.0
    %2876 = vmatpush1.msra.mxu0 0.0
    %2877 = vmatprep.subr.mxu0 0.0
    %2878 = vmatpush1.msra.mxu0 0.0
    %2879 = vmatprep.subr.mxu0 0.0
    %2880 = vmatpush1.msra.mxu0 0.0
    %2881 = vmatprep.subr.mxu0 0.0
    %2882 = vmatpush1.msra.mxu0 0.0
    %2883 = vmatprep.subr.mxu0 0.0
    %2884 = vmatpush1.msra.mxu0 0.0
    %2885 = vmatprep.subr.mxu0 0.0
    %2886 = vmatpush1.msra.mxu0 0.0
    %2887 = vmatprep.subr.mxu0 0.0
    %2888 = vmatpush1.msra.mxu0 0.0
    %2889 = vmatprep.subr.mxu0 0.0
    %2890 = vmatpush1.msra.mxu0 0.0
    %2891 = vmatprep.subr.mxu0 0.0
    %2892 = vmatpush1.msra.mxu0 0.0
    %2893 = vmatprep.subr.mxu0 0.0
    %2894 = vmatpush1.msra.mxu0 0.0
    %2895 = vmatprep.mubr.f32.mxu0 0.0
    %2896 = vmatmul.mubr.f32.gmra.mrb[0].mxu0 %v2687
    %v2897 = vpop.f32.mrb[0].mxu0
    %v2898 = vadd.f32 %v660, %v2897
    %v2899 = vpop.f32.mrb[0].mxu0
    %v2900 = vadd.f32 %v664, %v2899
    %2901 = vdwg.mxu0
    %2902 = vmatprep.subr.mxu0 0.0
    %2903 = vmatpush1.msra.mxu0 %v592
    %2904 = vmatprep.subr.mxu0 0.0
    %2905 = vmatpush1.msra.mxu0 %v595
    %2906 = vmatprep.subr.mxu0 0.0
    %2907 = vmatpush1.msra.mxu0 %v598
    %2908 = vmatprep.subr.mxu0 0.0
    %2909 = vmatpush1.msra.mxu0 %v601
    %2910 = vmatprep.subr.mxu0 0.0
    %2911 = vmatpush1.msra.mxu0 %v604
    %2912 = vmatprep.subr.mxu0 0.0
    %2913 = vmatpush1.msra.mxu0 %v607
    %2914 = vmatprep.subr.mxu0 0.0
    %2915 = vmatpush1.msra.mxu0 %v610
    %2916 = vmatprep.subr.mxu0 0.0
    %2917 = vmatpush1.msra.mxu0 %v613
    %2918 = vmatprep.subr.mxu0 0.0
    %2919 = vmatpush1.msra.mxu0 %v616
    %2920 = vmatprep.subr.mxu0 0.0
    %2921 = vmatpush1.msra.mxu0 %v619
    %2922 = vmatprep.subr.mxu0 0.0
    %2923 = vmatpush1.msra.mxu0 %v622
    %2924 = vmatprep.subr.mxu0 0.0
    %2925 = vmatpush1.msra.mxu0 %v625
    %2926 = vmatprep.subr.mxu0 0.0
    %2927 = vmatpush1.msra.mxu0 %v628
    %2928 = vmatprep.subr.mxu0 0.0
    %2929 = vmatpush1.msra.mxu0 %v631
    %2930 = vmatprep.subr.mxu0 0.0
    %2931 = vmatpush1.msra.mxu0 %v634
    %2932 = vmatprep.subr.mxu0 0.0
    %2933 = vmatpush1.msra.mxu0 %v637
    %2934 = vmatprep.subr.mxu0 0.0
    %2935 = vmatpush1.msra.mxu0 0.0
    %2936 = vmatprep.subr.mxu0 0.0
    %2937 = vmatpush1.msra.mxu0 0.0
    %2938 = vmatprep.subr.mxu0 0.0
    %2939 = vmatpush1.msra.mxu0 0.0
    %2940 = vmatprep.subr.mxu0 0.0
    %2941 = vmatpush1.msra.mxu0 0.0
    %2942 = vmatprep.subr.mxu0 0.0
    %2943 = vmatpush1.msra.mxu0 0.0
    %2944 = vmatprep.subr.mxu0 0.0
    %2945 = vmatpush1.msra.mxu0 0.0
    %2946 = vmatprep.subr.mxu0 0.0
    %2947 = vmatpush1.msra.mxu0 0.0
    %2948 = vmatprep.subr.mxu0 0.0
    %2949 = vmatpush1.msra.mxu0 0.0
    %2950 = vmatprep.subr.mxu0 0.0
    %2951 = vmatpush1.msra.mxu0 0.0
    %2952 = vmatprep.subr.mxu0 0.0
    %2953 = vmatpush1.msra.mxu0 0.0
    %2954 = vmatprep.subr.mxu0 0.0
    %2955 = vmatpush1.msra.mxu0 0.0
    %2956 = vmatprep.subr.mxu0 0.0
    %2957 = vmatpush1.msra.mxu0 0.0
    %2958 = vmatprep.subr.mxu0 0.0
    %2959 = vmatpush1.msra.mxu0 0.0
    %2960 = vmatprep.subr.mxu0 0.0
    %2961 = vmatpush1.msra.mxu0 0.0
    %2962 = vmatprep.subr.mxu0 0.0
    %2963 = vmatpush1.msra.mxu0 0.0
    %2964 = vmatprep.subr.mxu0 0.0
    %2965 = vmatpush1.msra.mxu0 0.0
    %2966 = vmatprep.mubr.f32.mxu0 0.0
    %2967 = vmatmul.mubr.f32.gmra.mrb[0].mxu0 %v2687
    %v2968 = vpop.f32.mrb[0].mxu0
    %v2969 = vadd.f32 %v668, %v2968
    %v2970 = vpop.f32.mrb[0].mxu0
    %2971 = vdwg.mxu0
    %v2972 = vadd.f32 %v2688, %v2757
    %v2973 = vxor.u32 %v2972, 2147483648
    %v2974 = vmul.f32 %v2973, 1.442695
    %v2975 = vpow.pop %v2974
    %v2976 = vadd.f32 %v2975, 1.0
    %v2977 = vrcp.pop %v2976
    %v2978 = vmul.f32 1.0, %v2977
    %v2980 = vrot.slane %v2688, 2
    %v2982 = vadd.f32 %v2980, %v2759
    %v2983 = vxor.u32 %v2982, 2147483648
    %v2984 = vmul.f32 %v2983, 1.442695
    %v2985 = vpow.pop %v2984
    %v2986 = vadd.f32 %v2985, 1.0
    %v2987 = vrcp.pop %v2986
    %v2988 = vmul.f32 1.0, %v2987
    %v2989 = vmul.f32 %v2978, %v2828
    %v2990 = vrot.slane %v2688, 4
    %v2992 = vadd.f32 %v2990, %v2989
    %v2993 = vtanh.pop %v2992
    %v2994 = vsub.f32 1.0, %v2988
    %v2995 = vmul.f32 %v2994, %v2993
    %v2996 = vmul.f32 %v2988, %v2661
    %v2997 = vadd.f32 %v2995, %v2996
    %v2998 = vrot.slane %v2688, 6
    %v3000 = vadd.f32 %v2998, %v2898
    %v3001 = vxor.u32 %v3000, 2147483648
    %v3002 = vmul.f32 %v3001, 1.442695
    %v3003 = vpow.pop %v3002
    %v3004 = vadd.f32 %v3003, 1.0
    %v3005 = vrcp.pop %v3004
    %v3006 = vmul.f32 1.0, %v3005
    %v3007 = vadd.f32 %v2689, %v2900
    %v3008 = vxor.u32 %v3007, 2147483648
    %v3009 = vmul.f32 %v3008, 1.442695
    %v3010 = vpow.pop %v3009
    %v3011 = vadd.f32 %v3010, 1.0
    %v3012 = vrcp.pop %v3011
    %v3013 = vmul.f32 1.0, %v3012
    %v3014 = vmul.f32 %v3006, %v2969
    %v3016 = vrot.slane %v2689, 2
    %v3018 = vadd.f32 %v3016, %v3014
    %v3019 = vtanh.pop %v3018
    %v3020 = vsub.f32 1.0, %v3013
    %v3021 = vmul.f32 %v3020, %v3019
    %v3022 = vmul.f32 %v3013, %v2687
    %v3023 = vadd.f32 %v3021, %v3022
    %v3024 = vld [vmem:[%s537] sm:$0xff]
    %v3025 = vld [vmem:[%s537 + $0x8] sm:$0xf]
    %3026 = vmatprep.subr.mxu0 %v543
    %3027 = vmatpush1.msra.mxu0 %v542
    %3028 = vmatprep.subr.mxu0 %v546
    %3029 = vmatpush1.msra.mxu0 %v545
    %3030 = vmatprep.subr.mxu0 %v549
    %3031 = vmatpush1.msra.mxu0 %v548
    %3032 = vmatprep.subr.mxu0 %v552
    %3033 = vmatpush1.msra.mxu0 %v551
    %3034 = vmatprep.subr.mxu0 %v555
    %3035 = vmatpush1.msra.mxu0 %v554
    %3036 = vmatprep.subr.mxu0 %v558
    %3037 = vmatpush1.msra.mxu0 %v557
    %3038 = vmatprep.subr.mxu0 %v561
    %3039 = vmatpush1.msra.mxu0 %v560
    %3040 = vmatprep.subr.mxu0 %v564
    %3041 = vmatpush1.msra.mxu0 %v563
    %3042 = vmatprep.subr.mxu0 %v567
    %3043 = vmatpush1.msra.mxu0 %v566
    %3044 = vmatprep.subr.mxu0 %v570
    %3045 = vmatpush1.msra.mxu0 %v569
    %3046 = vmatprep.subr.mxu0 %v573
    %3047 = vmatpush1.msra.mxu0 %v572
    %3048 = vmatprep.subr.mxu0 %v576
    %3049 = vmatpush1.msra.mxu0 %v575
    %3050 = vmatprep.subr.mxu0 %v579
    %3051 = vmatpush1.msra.mxu0 %v578
    %3052 = vmatprep.subr.mxu0 %v582
    %3053 = vmatpush1.msra.mxu0 %v581
    %3054 = vmatprep.subr.mxu0 %v585
    %3055 = vmatpush1.msra.mxu0 %v584
    %3056 = vmatprep.subr.mxu0 %v588
    %3057 = vmatpush1.msra.mxu0 %v587
    %3058 = vmatprep.subr.mxu0 0.0
    %3059 = vmatpush1.msra.mxu0 0.0
    %3060 = vmatprep.subr.mxu0 0.0
    %3061 = vmatpush1.msra.mxu0 0.0
    %3062 = vmatprep.subr.mxu0 0.0
    %3063 = vmatpush1.msra.mxu0 0.0
    %3064 = vmatprep.subr.mxu0 0.0
    %3065 = vmatpush1.msra.mxu0 0.0
    %3066 = vmatprep.subr.mxu0 0.0
    %3067 = vmatpush1.msra.mxu0 0.0
    %3068 = vmatprep.subr.mxu0 0.0
    %3069 = vmatpush1.msra.mxu0 0.0
    %3070 = vmatprep.subr.mxu0 0.0
    %3071 = vmatpush1.msra.mxu0 0.0
    %3072 = vmatprep.subr.mxu0 0.0
    %3073 = vmatpush1.msra.mxu0 0.0
    %3074 = vmatprep.subr.mxu0 0.0
    %3075 = vmatpush1.msra.mxu0 0.0
    %3076 = vmatprep.subr.mxu0 0.0
    %3077 = vmatpush1.msra.mxu0 0.0
    %3078 = vmatprep.subr.mxu0 0.0
    %3079 = vmatpush1.msra.mxu0 0.0
    %3080 = vmatprep.subr.mxu0 0.0
    %3081 = vmatpush1.msra.mxu0 0.0
    %3082 = vmatprep.subr.mxu0 0.0
    %3083 = vmatpush1.msra.mxu0 0.0
    %3084 = vmatprep.subr.mxu0 0.0
    %3085 = vmatpush1.msra.mxu0 0.0
    %3086 = vmatprep.subr.mxu0 0.0
    %3087 = vmatpush1.msra.mxu0 0.0
    %3088 = vmatprep.subr.mxu0 0.0
    %3089 = vmatpush1.msra.mxu0 0.0
    %3090 = vmatprep.mubr.f32.mxu0 0.0
    %3091 = vmatmul.mubr.f32.gmra.mrb[0].mxu0 %v2997
    %v3092 = vpop.f32.mrb[0].mxu0
    %v3093 = vadd.f32 %v643, %v3092
    %v3094 = vpop.f32.mrb[0].mxu0
    %v3095 = vadd.f32 %v647, %v3094
    %3096 = vdwg.mxu0
    %3097 = vmatprep.subr.mxu0 0.0
    %3098 = vmatpush1.msra.mxu0 %v544
    %3099 = vmatprep.subr.mxu0 0.0
    %3100 = vmatpush1.msra.mxu0 %v547
    %3101 = vmatprep.subr.mxu0 0.0
    %3102 = vmatpush1.msra.mxu0 %v550
    %3103 = vmatprep.subr.mxu0 0.0
    %3104 = vmatpush1.msra.mxu0 %v553
    %3105 = vmatprep.subr.mxu0 0.0
    %3106 = vmatpush1.msra.mxu0 %v556
    %3107 = vmatprep.subr.mxu0 0.0
    %3108 = vmatpush1.msra.mxu0 %v559
    %3109 = vmatprep.subr.mxu0 0.0
    %3110 = vmatpush1.msra.mxu0 %v562
    %3111 = vmatprep.subr.mxu0 0.0
    %3112 = vmatpush1.msra.mxu0 %v565
    %3113 = vmatprep.subr.mxu0 0.0
    %3114 = vmatpush1.msra.mxu0 %v568
    %3115 = vmatprep.subr.mxu0 0.0
    %3116 = vmatpush1.msra.mxu0 %v571
    %3117 = vmatprep.subr.mxu0 0.0
    %3118 = vmatpush1.msra.mxu0 %v574
    %3119 = vmatprep.subr.mxu0 0.0
    %3120 = vmatpush1.msra.mxu0 %v577
    %3121 = vmatprep.subr.mxu0 0.0
    %3122 = vmatpush1.msra.mxu0 %v580
    %3123 = vmatprep.subr.mxu0 0.0
    %3124 = vmatpush1.msra.mxu0 %v583
    %3125 = vmatprep.subr.mxu0 0.0
    %3126 = vmatpush1.msra.mxu0 %v586
    %3127 = vmatprep.subr.mxu0 0.0
    %3128 = vmatpush1.msra.mxu0 %v589
    %3129 = vmatprep.subr.mxu0 0.0
    %3130 = vmatpush1.msra.mxu0 0.0
    %3131 = vmatprep.subr.mxu0 0.0
    %3132 = vmatpush1.msra.mxu0 0.0
    %3133 = vmatprep.subr.mxu0 0.0
    %3134 = vmatpush1.msra.mxu0 0.0
    %3135 = vmatprep.subr.mxu0 0.0
    %3136 = vmatpush1.msra.mxu0 0.0
    %3137 = vmatprep.subr.mxu0 0.0
    %3138 = vmatpush1.msra.mxu0 0.0
    %3139 = vmatprep.subr.mxu0 0.0
    %3140 = vmatpush1.msra.mxu0 0.0
    %3141 = vmatprep.subr.mxu0 0.0
    %3142 = vmatpush1.msra.mxu0 0.0
    %3143 = vmatprep.subr.mxu0 0.0
    %3144 = vmatpush1.msra.mxu0 0.0
    %3145 = vmatprep.subr.mxu0 0.0
    %3146 = vmatpush1.msra.mxu0 0.0
    %3147 = vmatprep.subr.mxu0 0.0
    %3148 = vmatpush1.msra.mxu0 0.0
    %3149 = vmatprep.subr.mxu0 0.0
    %3150 = vmatpush1.msra.mxu0 0.0
    %3151 = vmatprep.subr.mxu0 0.0
    %3152 = vmatpush1.msra.mxu0 0.0
    %3153 = vmatprep.subr.mxu0 0.0
    %3154 = vmatpush1.msra.mxu0 0.0
    %3155 = vmatprep.subr.mxu0 0.0
    %3156 = vmatpush1.msra.mxu0 0.0
    %3157 = vmatprep.subr.mxu0 0.0
    %3158 = vmatpush1.msra.mxu0 0.0
    %3159 = vmatprep.subr.mxu0 0.0
    %3160 = vmatpush1.msra.mxu0 0.0
    %3161 = vmatprep.mubr.f32.mxu0 0.0
    %3162 = vmatmul.mubr.f32.gmra.mrb[0].mxu0 %v2997
    %v3163 = vpop.f32.mrb[0].mxu0
    %v3164 = vadd.f32 %v651, %v3163
    %v3165 = vpop.f32.mrb[0].mxu0
    %3166 = vdwg.mxu0
    %3167 = vmatprep.subr.mxu0 %v591
    %3168 = vmatpush1.msra.mxu0 %v590
    %3169 = vmatprep.subr.mxu0 %v594
    %3170 = vmatpush1.msra.mxu0 %v593
    %3171 = vmatprep.subr.mxu0 %v597
    %3172 = vmatpush1.msra.mxu0 %v596
    %3173 = vmatprep.subr.mxu0 %v600
    %3174 = vmatpush1.msra.mxu0 %v599
    %3175 = vmatprep.subr.mxu0 %v603
    %3176 = vmatpush1.msra.mxu0 %v602
    %3177 = vmatprep.subr.mxu0 %v606
    %3178 = vmatpush1.msra.mxu0 %v605
    %3179 = vmatprep.subr.mxu0 %v609
    %3180 = vmatpush1.msra.mxu0 %v608
    %3181 = vmatprep.subr.mxu0 %v612
    %3182 = vmatpush1.msra.mxu0 %v611
    %3183 = vmatprep.subr.mxu0 %v615
    %3184 = vmatpush1.msra.mxu0 %v614
    %3185 = vmatprep.subr.mxu0 %v618
    %3186 = vmatpush1.msra.mxu0 %v617
    %3187 = vmatprep.subr.mxu0 %v621
    %3188 = vmatpush1.msra.mxu0 %v620
    %3189 = vmatprep.subr.mxu0 %v624
    %3190 = vmatpush1.msra.mxu0 %v623
    %3191 = vmatprep.subr.mxu0 %v627
    %3192 = vmatpush1.msra.mxu0 %v626
    %3193 = vmatprep.subr.mxu0 %v630
    %3194 = vmatpush1.msra.mxu0 %v629
    %3195 = vmatprep.subr.mxu0 %v633
    %3196 = vmatpush1.msra.mxu0 %v632
    %3197 = vmatprep.subr.mxu0 %v636
    %3198 = vmatpush1.msra.mxu0 %v635
    %3199 = vmatprep.subr.mxu0 0.0
    %3200 = vmatpush1.msra.mxu0 0.0
    %3201 = vmatprep.subr.mxu0 0.0
    %3202 = vmatpush1.msra.mxu0 0.0
    %3203 = vmatprep.subr.mxu0 0.0
    %3204 = vmatpush1.msra.mxu0 0.0
    %3205 = vmatprep.subr.mxu0 0.0
    %3206 = vmatpush1.msra.mxu0 0.0
    %3207 = vmatprep.subr.mxu0 0.0
    %3208 = vmatpush1.msra.mxu0 0.0
    %3209 = vmatprep.subr.mxu0 0.0
    %3210 = vmatpush1.msra.mxu0 0.0
    %3211 = vmatprep.subr.mxu0 0.0
    %3212 = vmatpush1.msra.mxu0 0.0
    %3213 = vmatprep.subr.mxu0 0.0
    %3214 = vmatpush1.msra.mxu0 0.0
    %3215 = vmatprep.subr.mxu0 0.0
    %3216 = vmatpush1.msra.mxu0 0.0
    %3217 = vmatprep.subr.mxu0 0.0
    %3218 = vmatpush1.msra.mxu0 0.0
    %3219 = vmatprep.subr.mxu0 0.0
    %3220 = vmatpush1.msra.mxu0 0.0
    %3221 = vmatprep.subr.mxu0 0.0
    %3222 = vmatpush1.msra.mxu0 0.0
    %3223 = vmatprep.subr.mxu0 0.0
    %3224 = vmatpush1.msra.mxu0 0.0
    %3225 = vmatprep.subr.mxu0 0.0
    %3226 = vmatpush1.msra.mxu0 0.0
    %3227 = vmatprep.subr.mxu0 0.0
    %3228 = vmatpush1.msra.mxu0 0.0
    %3229 = vmatprep.subr.mxu0 0.0
    %3230 = vmatpush1.msra.mxu0 0.0
    %3231 = vmatprep.mubr.f32.mxu0 0.0
    %3232 = vmatmul.mubr.f32.gmra.mrb[0].mxu0 %v3023
    %v3233 = vpop.f32.mrb[0].mxu0
    %v3234 = vadd.f32 %v660, %v3233
    %v3235 = vpop.f32.mrb[0].mxu0
    %v3236 = vadd.f32 %v664, %v3235
    %3237 = vdwg.mxu0
    %3238 = vmatprep.subr.mxu0 0.0
    %3239 = vmatpush1.msra.mxu0 %v592
    %3240 = vmatprep.subr.mxu0 0.0
    %3241 = vmatpush1.msra.mxu0 %v595
    %3242 = vmatprep.subr.mxu0 0.0
    %3243 = vmatpush1.msra.mxu0 %v598
    %3244 = vmatprep.subr.mxu0 0.0
    %3245 = vmatpush1.msra.mxu0 %v601
    %3246 = vmatprep.subr.mxu0 0.0
    %3247 = vmatpush1.msra.mxu0 %v604
    %3248 = vmatprep.subr.mxu0 0.0
    %3249 = vmatpush1.msra.mxu0 %v607
    %3250 = vmatprep.subr.mxu0 0.0
    %3251 = vmatpush1.msra.mxu0 %v610
    %3252 = vmatprep.subr.mxu0 0.0
    %3253 = vmatpush1.msra.mxu0 %v613
    %3254 = vmatprep.subr.mxu0 0.0
    %3255 = vmatpush1.msra.mxu0 %v616
    %3256 = vmatprep.subr.mxu0 0.0
    %3257 = vmatpush1.msra.mxu0 %v619
    %3258 = vmatprep.subr.mxu0 0.0
    %3259 = vmatpush1.msra.mxu0 %v622
    %3260 = vmatprep.subr.mxu0 0.0
    %3261 = vmatpush1.msra.mxu0 %v625
    %3262 = vmatprep.subr.mxu0 0.0
    %3263 = vmatpush1.msra.mxu0 %v628
    %3264 = vmatprep.subr.mxu0 0.0
    %3265 = vmatpush1.msra.mxu0 %v631
    %3266 = vmatprep.subr.mxu0 0.0
    %3267 = vmatpush1.msra.mxu0 %v634
    %3268 = vmatprep.subr.mxu0 0.0
    %3269 = vmatpush1.msra.mxu0 %v637
    %3270 = vmatprep.subr.mxu0 0.0
    %3271 = vmatpush1.msra.mxu0 0.0
    %3272 = vmatprep.subr.mxu0 0.0
    %3273 = vmatpush1.msra.mxu0 0.0
    %3274 = vmatprep.subr.mxu0 0.0
    %3275 = vmatpush1.msra.mxu0 0.0
    %3276 = vmatprep.subr.mxu0 0.0
    %3277 = vmatpush1.msra.mxu0 0.0
    %3278 = vmatprep.subr.mxu0 0.0
    %3279 = vmatpush1.msra.mxu0 0.0
    %3280 = vmatprep.subr.mxu0 0.0
    %3281 = vmatpush1.msra.mxu0 0.0
    %3282 = vmatprep.subr.mxu0 0.0
    %3283 = vmatpush1.msra.mxu0 0.0
    %3284 = vmatprep.subr.mxu0 0.0
    %3285 = vmatpush1.msra.mxu0 0.0
    %3286 = vmatprep.subr.mxu0 0.0
    %3287 = vmatpush1.msra.mxu0 0.0
    %3288 = vmatprep.subr.mxu0 0.0
    %3289 = vmatpush1.msra.mxu0 0.0
    %3290 = vmatprep.subr.mxu0 0.0
    %3291 = vmatpush1.msra.mxu0 0.0
    %3292 = vmatprep.subr.mxu0 0.0
    %3293 = vmatpush1.msra.mxu0 0.0
    %3294 = vmatprep.subr.mxu0 0.0
    %3295 = vmatpush1.msra.mxu0 0.0
    %3296 = vmatprep.subr.mxu0 0.0
    %3297 = vmatpush1.msra.mxu0 0.0
    %3298 = vmatprep.subr.mxu0 0.0
    %3299 = vmatpush1.msra.mxu0 0.0
    %3300 = vmatprep.subr.mxu0 0.0
    %3301 = vmatpush1.msra.mxu0 0.0
    %3302 = vmatprep.mubr.f32.mxu0 0.0
    %3303 = vmatmul.mubr.f32.gmra.mrb[0].mxu0 %v3023
    %v3304 = vpop.f32.mrb[0].mxu0
    %v3305 = vadd.f32 %v668, %v3304
    %v3306 = vpop.f32.mrb[0].mxu0
    %3307 = vdwg.mxu0
    %v3308 = vadd.f32 %v3024, %v3093
    %v3309 = vxor.u32 %v3308, 2147483648
    %v3310 = vmul.f32 %v3309, 1.442695
    %v3311 = vpow.pop %v3310
    %v3312 = vadd.f32 %v3311, 1.0
    %v3313 = vrcp.pop %v3312
    %v3314 = vmul.f32 1.0, %v3313
    %v3316 = vrot.slane %v3024, 2
    %v3318 = vadd.f32 %v3316, %v3095
    %v3319 = vxor.u32 %v3318, 2147483648
    %v3320 = vmul.f32 %v3319, 1.442695
    %v3321 = vpow.pop %v3320
    %v3322 = vadd.f32 %v3321, 1.0
    %v3323 = vrcp.pop %v3322
    %v3324 = vmul.f32 1.0, %v3323
    %v3325 = vmul.f32 %v3314, %v3164
    %v3326 = vrot.slane %v3024, 4
    %v3328 = vadd.f32 %v3326, %v3325
    %v3329 = vtanh.pop %v3328
    %v3330 = vsub.f32 1.0, %v3324
    %v3331 = vmul.f32 %v3330, %v3329
    %v3332 = vmul.f32 %v3324, %v2997
    %v3333 = vadd.f32 %v3331, %v3332
    %v3334 = vrot.slane %v3024, 6
    %v3336 = vadd.f32 %v3334, %v3234
    %v3337 = vxor.u32 %v3336, 2147483648
    %v3338 = vmul.f32 %v3337, 1.442695
    %v3339 = vpow.pop %v3338
    %v3340 = vadd.f32 %v3339, 1.0
    %v3341 = vrcp.pop %v3340
    %v3342 = vmul.f32 1.0, %v3341
    %v3343 = vadd.f32 %v3025, %v3236
    %v3344 = vxor.u32 %v3343, 2147483648
    %v3345 = vmul.f32 %v3344, 1.442695
    %v3346 = vpow.pop %v3345
    %v3347 = vadd.f32 %v3346, 1.0
    %v3348 = vrcp.pop %v3347
    %v3349 = vmul.f32 1.0, %v3348
    %v3350 = vmul.f32 %v3342, %v3305
    %v3352 = vrot.slane %v3025, 2
    %v3354 = vadd.f32 %v3352, %v3350
    %v3355 = vtanh.pop %v3354
    %v3356 = vsub.f32 1.0, %v3349
    %v3357 = vmul.f32 %v3356, %v3355
    %v3358 = vmul.f32 %v3349, %v3023
    %v3359 = vadd.f32 %v3357, %v3358
    %v3362 = vunpack.c.l.s4 1983009808
    %v3363 = vunpack.c.0.s8 %v3362
    %v3364 = vlaneseq
    %v3365 = vshrl.u32 %v3364, 7
    %v3366 = vsub.s32 %v3363, %v3365
    %v3367 = vrot.slane %v3359, %v3366
    %3368 = vrot.lane.b32.xlu0 %v3367, 16
    %v3369 = vpop.permute.xlu0 %3368
    %v3373 = vunpack.c.l.s4 1983009808
    %v3374 = vunpack.c.0.s8 %v3373
    %v3375 = vlaneseq
    %v3376 = vshrl.u32 %v3375, 7
    %v3377 = vsub.s32 %v3374, %v3376
    %v3378 = vrot.slane %v1317, %v3377
    %3379 = vrot.lane.b32.xlu0 %v3378, 32
    %v3380 = vpop.permute.xlu0 %3379
    %v3384 = vunpack.c.l.s4 1983009808
    %v3385 = vunpack.c.0.s8 %v3384
    %v3386 = vlaneseq
    %v3387 = vshrl.u32 %v3386, 7
    %v3388 = vsub.s32 %v3385, %v3387
    %v3389 = vrot.slane %v3023, %v3388
    %3390 = vrot.lane.b32.xlu0 %v3389, 48
    %v3391 = vpop.permute.xlu0 %3390
    %v3395 = vunpack.c.l.s4 1983009808
    %v3396 = vunpack.c.0.s8 %v3395
    %v3397 = vlaneseq
    %v3398 = vshrl.u32 %v3397, 7
    %v3399 = vsub.s32 %v3396, %v3398
    %v3400 = vrot.slane %v1653, %v3399
    %3401 = vrot.lane.b32.xlu0 %v3400, 64
    %v3402 = vpop.permute.xlu0 %3401
    %v3406 = vunpack.c.l.s4 1983009808
    %v3407 = vunpack.c.0.s8 %v3406
    %v3408 = vlaneseq
    %v3409 = vshrl.u32 %v3408, 7
    %v3410 = vsub.s32 %v3407, %v3409
    %v3411 = vrot.slane %v2687, %v3410
    %3412 = vrot.lane.b32.xlu0 %v3411, 80
    %v3413 = vpop.permute.xlu0 %3412
    %v3417 = vunpack.c.l.s4 1983009808
    %v3418 = vunpack.c.0.s8 %v3417
    %v3419 = vlaneseq
    %v3420 = vshrl.u32 %v3419, 7
    %v3421 = vsub.s32 %v3418, %v3420
    %v3422 = vrot.slane %v1989, %v3421
    %3423 = vrot.lane.b32.xlu0 %v3422, 96
    %v3424 = vpop.permute.xlu0 %3423
    %v3428 = vunpack.c.l.s4 1983009808
    %v3429 = vunpack.c.0.s8 %v3428
    %v3430 = vlaneseq
    %v3431 = vshrl.u32 %v3430, 7
    %v3432 = vsub.s32 %v3429, %v3431
    %v3433 = vrot.slane %v2351, %v3432
    %3434 = vrot.lane.b32.xlu0 %v3433, 112
    %v3435 = vpop.permute.xlu0 %3434
    %v3439 = vunpack.c.l.s4 1983009808
    %v3440 = vunpack.c.0.s8 %v3439
    %v3441 = vlaneseq
    %v3442 = vshrl.u32 %v3441, 7
    %v3443 = vsub.s32 %v3440, %v3442
    %v3444 = vrot.slane %v2015, %v3443
    %3445 = vrot.lane.b32.xlu0 %v3444, 16
    %v3446 = vpop.permute.xlu0 %3445
    %v3450 = vunpack.c.l.s4 1983009808
    %v3451 = vunpack.c.0.s8 %v3450
    %v3452 = vlaneseq
    %v3453 = vshrl.u32 %v3452, 7
    %v3454 = vsub.s32 %v3451, %v3453
    %v3455 = vrot.slane %v2661, %v3454
    %3456 = vrot.lane.b32.xlu0 %v3455, 32
    %v3457 = vpop.permute.xlu0 %3456
    %v3461 = vunpack.c.l.s4 1983009808
    %v3462 = vunpack.c.0.s8 %v3461
    %v3463 = vlaneseq
    %v3464 = vshrl.u32 %v3463, 7
    %v3465 = vsub.s32 %v3462, %v3464
    %v3466 = vrot.slane %v1679, %v3465
    %3467 = vrot.lane.b32.xlu0 %v3466, 48
    %v3468 = vpop.permute.xlu0 %3467
    %v3472 = vunpack.c.l.s4 1983009808
    %v3473 = vunpack.c.0.s8 %v3472
    %v3474 = vlaneseq
    %v3475 = vshrl.u32 %v3474, 7
    %v3476 = vsub.s32 %v3473, %v3475
    %v3477 = vrot.slane %v2997, %v3476
    %3478 = vrot.lane.b32.xlu0 %v3477, 64
    %v3479 = vpop.permute.xlu0 %3478
    %v3483 = vunpack.c.l.s4 1983009808
    %v3484 = vunpack.c.0.s8 %v3483
    %v3485 = vlaneseq
    %v3486 = vshrl.u32 %v3485, 7
    %v3487 = vsub.s32 %v3484, %v3486
    %v3488 = vrot.slane %v1343, %v3487
    %3489 = vrot.lane.b32.xlu0 %v3488, 80
    %v3490 = vpop.permute.xlu0 %3489
    %v3494 = vunpack.c.l.s4 1983009808
    %v3495 = vunpack.c.0.s8 %v3494
    %v3496 = vlaneseq
    %v3497 = vshrl.u32 %v3496, 7
    %v3498 = vsub.s32 %v3495, %v3497
    %v3499 = vrot.slane %v3333, %v3498
    %3500 = vrot.lane.b32.xlu0 %v3499, 96
    %v3501 = vpop.permute.xlu0 %3500
    %v3505 = vunpack.c.l.s4 1983009808
    %v3506 = vunpack.c.0.s8 %v3505
    %v3507 = vlaneseq
    %v3508 = vshrl.u32 %v3507, 7
    %v3509 = vsub.s32 %v3506, %v3508
    %v3510 = vrot.slane %v1007, %v3509
    %3511 = vrot.lane.b32.xlu0 %v3510, 112
    %v3512 = vpop.permute.xlu0 %3511
    %vm3514 = vcmask 130048
    %v3515 = vsel %vm3514, %v981, %v3369
    %vm3516 = vcmask 261120
    %v3517 = vsel %vm3516, %v3515, %v3380
    %vm3518 = vcmask 392192
    %v3519 = vsel %vm3518, %v3517, %v3391
    %vm3520 = vcmask 523264
    %v3521 = vsel %vm3520, %v3519, %v3402
    %vm3522 = vcmask 654336
    %v3523 = vsel %vm3522, %v3521, %v3413
    %vm3524 = vcmask 785408
    %v3525 = vsel %vm3524, %v3523, %v3424
    %vm3526 = vcmask 916480
    %v3527 = vsel %vm3526, %v3525, %v3435
    %v3528 = vsel %vm3514, %v2325, %v3446
    %v3529 = vsel %vm3516, %v3528, %v3457
    %v3530 = vsel %vm3518, %v3529, %v3468
    %v3531 = vsel %vm3520, %v3530, %v3479
    %v3532 = vsel %vm3522, %v3531, %v3490
    %v3533 = vsel %vm3524, %v3532, %v3501
    %v3534 = vsel %vm3526, %v3533, %v3512
    %v3537 = vcombine.low %v3527, %v3534
    %v3539 = vunpack.c.l.s4 1983009808
    %v3540 = vunpack.c.0.s8 %v3539
    %v3541 = vlaneseq
    %v3542 = vshrl.u32 %v3541, 7
    %v3543 = vsub.s32 %v3540, %v3542
    %v3544 = vrot.slane %v3537, %v3543
    %3546 = vst [vmem:[%s7] sm:$0xf] %v3544
    %v3547 = vsel %vm3514, %v3333, %v3369
    %vm3548 = vcmask 254976
    %3549 = vst.msk [vmem:[#allocation8] sm:$0x3] %vm3548, %v3547
    // Predicated region
    $region38: #{encoder_forward.1} parent=1 // pred_check
      _
    $region39: #{encoder_forward.1} parent=1 // pred_check_branch
      %3551 = sbr.rel (0) target = $region41
    $region40: #{encoder_forward.1} parent=1 // pred_region
      _
    $region41: #{encoder_forward.1} parent=1 // pred_fallthru
      _
    // Predicated region
    $region42: #{encoder_forward.1} parent=1 // pred_check
      _
    $region43: #{encoder_forward.1} parent=1 // pred_check_branch
      %3553 = sbr.rel (0) target = $region45
    $region44: #{encoder_forward.1} parent=1 // pred_region
      %s3555 = ssub.s32 32, 32
      %3556 = vsyncadd [#allocation5], %s3555
      %s3558 = sshll.u32 [#allocation8], 4
      %s3559 = int_to_ptr.vmem [resolvable:$true] %s3558
      %3561 = dma.vmem_to_hbm [thread:$0]  %s3559, 32, %s8, [#allocation5]
    $region45: #{encoder_forward.1} parent=1 // pred_fallthru
      _
    // Predicated region
    $region46: #{encoder_forward.1} parent=1 // pred_check
      _
    $region47: #{encoder_forward.1} parent=1 // pred_check_branch
      %3563 = sbr.rel (0) target = $region49
    $region48: #{encoder_forward.1} parent=1 // pred_region
      _
    $region49: #{encoder_forward.1} parent=1 // pred_fallthru
      _
    // Predicated region
    $region50: #{encoder_forward.1} parent=1 // pred_check
      _
    $region51: #{encoder_forward.1} parent=1 // pred_check_branch
      %3565 = sbr.rel (0) target = $region53
    $region52: #{encoder_forward.1} parent=1 // pred_region
      %3566 = dma.done [#allocation5], 32
    $region53: #{encoder_forward.1} parent=1 // pred_fallthru
      _
    %3567 = vsyncpa [#allocation4], 1
    %3568 = vsyncpa [#allocation7], 1
    %3569 = vsyncpa [#allocation5], 1

</llo_original>
